<compile_context>
chip_gen: v7x
topology: tpu7x:2x2x1
jax: 0.10.0
libtpu: 0.0.40
codegen_flags: <defaults>
</compile_context>

<pallas_src>
import jax
import jax.numpy as jnp
from jax.experimental import pallas as pl
from jax.experimental.pallas import tpu as pltpu

LANES = 128          # conv outputs are padded to 128 output channels (lane-dense
                     # stores); the contraction (K) dim always uses native channels.
EPS = 1e-5
NEG_SLOPE = 0.2


# ---------------------------------------------------------------------------
# Pallas kernels
# ---------------------------------------------------------------------------
def conv_lrelu_kernel(l_ref, w_ref, o_ref):
    """K-packed conv (one matmul) + LeakyReLU.  Block = (1, TM, K) rows of one image."""
    acc = jnp.dot(l_ref[0], w_ref[...], preferred_element_type=jnp.float32)
    acc = jnp.where(acc >= 0.0, acc, NEG_SLOPE * acc)
    o_ref[0] = acc.astype(o_ref.dtype)


def make_conv_bn_lrelu_kernel(count):
    """K-packed conv over the WHOLE batch + BatchNorm (training-mode batch stats,
    centered variance, computed from the f32 accumulator) + LeakyReLU."""
    inv = 1.0 / float(count)            # count == N*Ho*Wo == rows of the block (static)

    def kernel(l_ref, w_ref, g_ref, b_ref, o_ref):
        acc = jnp.dot(l_ref[...], w_ref[...], preferred_element_type=jnp.float32)
        mean = jnp.sum(acc, axis=0, keepdims=True) * inv
        d = acc - mean
        var = jnp.sum(d * d, axis=0, keepdims=True) * inv
        y = d * (g_ref[...] * jax.lax.rsqrt(var + EPS)) + b_ref[...]
        y = jnp.where(y >= 0.0, y, NEG_SLOPE * y)
        o_ref[...] = y.astype(o_ref.dtype)

    return kernel


def make_conv_bn_head_kernel(n_batch, rows_per_img, count):
    """conv4 + BN4 + LeakyReLU + (conv5 folded into the Linear's image half)
    + text half + bias + sigmoid, all in one kernel."""
    inv = 1.0 / float(count)

    def kernel(l_ref, w_ref, g_ref, b_ref, wfold_ref, txt_ref, wt_ref, bias_ref, o_ref):
        acc = jnp.dot(l_ref[...], w_ref[...], preferred_element_type=jnp.float32)
        mean = jnp.sum(acc, axis=0, keepdims=True) * inv
        d = acc - mean
        var = jnp.sum(d * d, axis=0, keepdims=True) * inv
        z = d * (g_ref[...] * jax.lax.rsqrt(var + EPS)) + b_ref[...]
        z = jnp.where(z >= 0.0, z, NEG_SLOPE * z)                      # (N*16, 128) f32

        # conv5 o linear_final image-half, exactly folded into a per-(row, channel)
        # weight; per-image reduce = reshape + sum (no selection matmul).
        prod = z.reshape(n_batch, rows_per_img, z.shape[-1]) * wfold_ref[...]
        img = jnp.sum(jnp.sum(prod, axis=2), axis=1, keepdims=True)    # (N, 1)
        txt = jnp.sum(txt_ref[...] * wt_ref[...], axis=1, keepdims=True)
        logit = img + txt + bias_ref[0, 0]
        o_ref[...] = jax.nn.sigmoid(logit)

    return kernel


# ---------------------------------------------------------------------------
# pallas_call wrappers
# ---------------------------------------------------------------------------
def conv_lrelu(l, w, *, tm=512):
    """l: (N, Mo, K) bf16 packed patches, w: (K, 128) bf16 -> (N, Mo, 128) bf16."""
    N, Mo, K = l.shape
    Cout = w.shape[1]
    tm = tm if Mo % tm == 0 else Mo
    return pl.pallas_call(
        conv_lrelu_kernel,
        grid=(N, Mo // tm),
        in_specs=[pl.BlockSpec((1, tm, K), lambda n, m: (n, m, 0)),
                  pl.BlockSpec((K, Cout), lambda n, m: (0, 0))],
        out_specs=pl.BlockSpec((1, tm, Cout), lambda n, m: (n, m, 0)),
        out_shape=jax.ShapeDtypeStruct((N, Mo, Cout), jnp.bfloat16),
        compiler_params=pltpu.CompilerParams(
            dimension_semantics=("parallel", "parallel")),
    )(l, w)


def conv_bn_lrelu(l, w, gamma, beta):
    """Full-batch K-packed conv with in-kernel BN + LeakyReLU.  grid=(1,) because
    the BN batch statistics couple all images; the whole layer is <=128 KiB."""
    R, K = l.shape
    Cout = w.shape[1]
    return pl.pallas_call(
        make_conv_bn_lrelu_kernel(R),
        grid=(1,),
        in_specs=[pl.BlockSpec((R, K), lambda i: (0, 0)),
                  pl.BlockSpec((K, Cout), lambda i: (0, 0)),
                  pl.BlockSpec((1, Cout), lambda i: (0, 0)),
                  pl.BlockSpec((1, Cout), lambda i: (0, 0))],
        out_specs=pl.BlockSpec((R, Cout), lambda i: (0, 0)),
        out_shape=jax.ShapeDtypeStruct((R, Cout), jnp.bfloat16),
    )(l, w, gamma, beta)


def conv_bn_head(l, w, gamma, beta, wfold, text, wt, bias, *, n_batch, rows_per_img):
    R, K = l.shape
    Cout = w.shape[1]
    hidden = text.shape[1]
    return pl.pallas_call(
        make_conv_bn_head_kernel(n_batch, rows_per_img, R),
        grid=(1,),
        in_specs=[pl.BlockSpec((R, K), lambda i: (0, 0)),
                  pl.BlockSpec((K, Cout), lambda i: (0, 0)),
                  pl.BlockSpec((1, Cout), lambda i: (0, 0)),
                  pl.BlockSpec((1, Cout), lambda i: (0, 0)),
                  pl.BlockSpec((rows_per_img, Cout), lambda i: (0, 0)),
                  pl.BlockSpec((n_batch, hidden), lambda i: (0, 0)),
                  pl.BlockSpec((1, hidden), lambda i: (0, 0)),
                  pl.BlockSpec(memory_space=pltpu.MemorySpace.SMEM)],   # scalar bias
        out_specs=pl.BlockSpec((n_batch, 1), lambda i: (0, 0)),
        out_shape=jax.ShapeDtypeStruct((n_batch, 1), jnp.float32),
    )(l, w, gamma, beta, wfold, text, wt, bias)


# ---------------------------------------------------------------------------
# Plain-JAX glue: K-packed patch extraction + weight/const prep (all tiny).
# ---------------------------------------------------------------------------
def extract_patches(x_nhwc):
    """NHWC -> (N, Ho*Wo, 16*C) packed patches of a 4x4 / stride-2 / pad-1 conv.
    Row i*Wo+j carries x_pad[2i+kh, 2j+kw, :] for kh,kw in [0,4) (kh-major), so the
    conv becomes a single (Mo, 16C) x (16C, Cout) matmul -- no in-kernel slicing."""
    N, H, W, C = x_nhwc.shape
    Ho, Wo = H // 2, W // 2
    xp = jnp.pad(x_nhwc, ((0, 0), (1, 1), (1, 1), (0, 0)))
    taps = [xp[:, kh:kh + 2 * Ho - 1:2, kw:kw + 2 * Wo - 1:2, :]
            for kh in range(4) for kw in range(4)]
    patches = jnp.stack(taps, axis=3)                  # (N, Ho, Wo, 16, C)
    return patches.reshape(N, Ho * Wo, 16 * C)


def pack_weight(w):
    """Torch (Cout, Cin, 4, 4) -> (16*Cin, 128) bf16; K index = (kh*4+kw)*Cin + c."""
    cout, cin = w.shape[0], w.shape[1]
    wk = jnp.transpose(w, (2, 3, 1, 0)).reshape(16 * cin, cout)
    return jnp.pad(wk, ((0, 0), (0, LANES - cout))).astype(jnp.bfloat16)


def pad_row(v):
    return jnp.pad(v, (0, LANES - v.shape[0])).reshape(1, LANES).astype(jnp.float32)


# ---------------------------------------------------------------------------
# Discriminator forward
# ---------------------------------------------------------------------------
def discriminator_forward(params, text_vector, image):
    N, nc, H, W = image.shape
    ndf = params["w1"].shape[0]
    hidden = text_vector.shape[1]
    ho1, ho2, ho3, ho4 = H // 2, H // 4, H // 8, H // 16
    assert H == W and ho4 == 4, "conv stack requires 64x64 input (64->32->16->8->4->1)"

    # --- weights / BN params, K-packed & lane-padded (tiny) ---
    w1, w2 = pack_weight(params["w1"]), pack_weight(params["w2"])
    w3, w4 = pack_weight(params["w3"]), pack_weight(params["w4"])
    g2, b2 = pad_row(params["g2"]), pad_row(params["b2"])
    g3, b3 = pad_row(params["g3"]), pad_row(params["b3"])
    g4, b4 = pad_row(params["g4"]), pad_row(params["b4"])

    # conv5 folded exactly into the image half of linear_final:
    # wfold[kh*4+kw, c] = sum_o w5[o, c, kh, kw] * Wl[0, hidden + o]
    wimg = params["wl"][0, hidden:]                                     # (ndf,)
    wfold = jnp.einsum("ochw,o->hwc", params["w5"], wimg).reshape(16, 8 * ndf)
    wfold = jnp.pad(wfold, ((0, 0), (0, LANES - 8 * ndf))).astype(jnp.float32)
    wt = params["wl"][:1, :hidden].astype(jnp.float32)                  # (1, hidden)
    bias = params["bl"].reshape(1, 1).astype(jnp.float32)

    # ---- conv1 + LeakyReLU (no BN) -- grid over (image, row-block), parallel ----
    l1 = extract_patches(jnp.transpose(image, (0, 2, 3, 1))).astype(jnp.bfloat16)
    a1 = conv_lrelu(l1, w1)                                             # (N, 1024, 128)

    # ---- conv2 + BN2 + LReLU (one full-batch matmul, BN stats in-kernel) ----
    l2 = extract_patches(a1.reshape(N, ho1, ho1, LANES)[..., :ndf])
    a2 = conv_bn_lrelu(l2.reshape(N * ho2 * ho2, 16 * ndf), w2, g2, b2)

    # ---- conv3 + BN3 + LReLU ----
    l3 = extract_patches(a2.reshape(N, ho2, ho2, LANES)[..., :2 * ndf])
    a3 = conv_bn_lrelu(l3.reshape(N * ho3 * ho3, 32 * ndf), w3, g3, b3)

    # ---- conv4 + BN4 + LReLU + (conv5 o Linear) + text half + bias + sigmoid ----
    l4 = extract_patches(a3.reshape(N, ho3, ho3, LANES)[..., :4 * ndf])
    out = conv_bn_head(l4.reshape(N * ho4 * ho4, 64 * ndf), w4, g4, b4,
                       wfold, text_vector.astype(jnp.float32), wt, bias,
                       n_batch=N, rows_per_img=ho4 * ho4)
    return out                                                          # (N, 1) f32


# ---------------------------------------------------------------------------
# Pure-XLA reference (f32) for numerics validation.
# ---------------------------------------------------------------------------
def reference_forward(params, text_vector, image):
    def conv(x, w, stride, pad):
        return jax.lax.conv_general_dilated(
            x, w, window_strides=(stride, stride),
            padding=((pad, pad), (pad, pad)),
            dimension_numbers=("NCHW", "OIHW", "NCHW"))

    def bn(x, g, b):                       # training-mode batch stats, biased var
        mean = jnp.mean(x, axis=(0, 2, 3), keepdims=True)
        var = jnp.mean((x - mean) ** 2, axis=(0, 2, 3), keepdims=True)
        xn = (x - mean) * jax.lax.rsqrt(var + EPS)
        return xn * g.reshape(1, -1, 1, 1) + b.reshape(1, -1, 1, 1)

    def lrelu(x):
        return jnp.where(x >= 0, x, NEG_SLOPE * x)

    x = lrelu(conv(image, params["w1"], 2, 1))
    x = lrelu(bn(conv(x, params["w2"], 2, 1), params["g2"], params["b2"]))
    x = lrelu(bn(conv(x, params["w3"], 2, 1), params["g3"], params["b3"]))
    x = lrelu(bn(conv(x, params["w4"], 2, 1), params["g4"], params["b4"]))
    x = conv(x, params["w5"], 1, 0)                     # (N, ndf, 1, 1)
    feat = x.reshape(x.shape[0], -1)
    a = jnp.concatenate([text_vector, feat], axis=1)    # [text, image] as in the spec
    logit = a @ params["wl"].T + params["bl"]
    return jax.nn.sigmoid(logit)


# ---------------------------------------------------------------------------
if __name__ == "__main__":
    # config: ndf=8 features, nc=4 image channels, text hidden=32, batch=2, 64x64.
    ndf, nc, hidden, batch = 8, 4, 32, 2
    H = W = 64

    key = jax.random.PRNGKey(0)
    ks = jax.random.split(key, 16)

    def winit(k, shape, scale=0.05):
        return scale * jax.random.normal(k, shape, dtype=jnp.float32)

    params = {
        "w1": winit(ks[0], (ndf, nc, 4, 4)),
        "w2": winit(ks[1], (ndf * 2, ndf, 4, 4)),
        "g2": 1.0 + 0.1 * jax.random.normal(ks[2], (ndf * 2,), dtype=jnp.float32),
        "b2": 0.1 * jax.random.normal(ks[3], (ndf * 2,), dtype=jnp.float32),
        "w3": winit(ks[4], (ndf * 4, ndf * 2, 4, 4)),
        "g3": 1.0 + 0.1 * jax.random.normal(ks[5], (ndf * 4,), dtype=jnp.float32),
        "b3": 0.1 * jax.random.normal(ks[6], (ndf * 4,), dtype=jnp.float32),
        "w4": winit(ks[7], (ndf * 8, ndf * 4, 4, 4)),
        "g4": 1.0 + 0.1 * jax.random.normal(ks[8], (ndf * 8,), dtype=jnp.float32),
        "b4": 0.1 * jax.random.normal(ks[9], (ndf * 8,), dtype=jnp.float32),
        "w5": winit(ks[10], (ndf, ndf * 8, 4, 4)),
        "wl": winit(ks[11], (1, hidden + ndf)),          # Linear(hidden+ndf -> 1) weight
        "bl": winit(ks[12], (1,)),                       # Linear bias
    }
    text_vector = jax.random.normal(ks[13], (batch, hidden), dtype=jnp.float32)
    image = jax.random.normal(ks[14], (batch, nc, H, W), dtype=jnp.float32)

    out = jax.block_until_ready(jax.jit(discriminator_forward)(params, text_vector, image))
    ref = jax.block_until_ready(jax.jit(reference_forward)(params, text_vector, image))

    assert out.shape == (batch, 1)
    assert bool(jnp.all(jnp.isfinite(out)))
    max_err = float(jnp.max(jnp.abs(out - ref)))
    assert max_err < 2e-2, f"numerics mismatch vs XLA reference: max |diff| = {max_err}"
    print("KERNEL_OK")
</pallas_src>

<mosaic_0001>
module attributes {stable_mosaic.version = 11 : i64} {
  func.func @conv_lrelu_kernel(%arg0: i32, %arg1: i32, %arg2: memref<1x512x64xbf16, #tpu.memory_space<vmem>>, %arg3: memref<64x128xbf16, #tpu.memory_space<vmem>>, %arg4: memref<1x512x128xbf16, #tpu.memory_space<vmem>>) attributes {dimension_semantics = [#tpu.dimension_semantics<parallel>, #tpu.dimension_semantics<parallel>], iteration_bounds = array<i64: 2, 2>, scalar_prefetch = 0 : i64, scratch_operands = 0 : i64, tpu.core_type = #tpu.core_type<tc>, window_params = [{transform_indices = @transform_0, window_bounds = array<i64: 1, 512, 64>}, {pipeline_mode = #tpu.pipeline_mode<synchronous>, transform_indices = @transform_1, window_bounds = array<i64: 64, 128>}, {transform_indices = @transform_2, window_bounds = array<i64: 1, 512, 128>}]} {
    %c0 = arith.constant 0 : index
    %c0_0 = arith.constant 0 : index
    %c0_1 = arith.constant 0 : index
    %0 = vector.load %arg2[%c0, %c0_0, %c0_1] : memref<1x512x64xbf16, #tpu.memory_space<vmem>>, vector<1x512x64xbf16>
    %1 = vector.shape_cast %0 : vector<1x512x64xbf16> to vector<512x64xbf16>
    %c0_2 = arith.constant 0 : index
    %c0_3 = arith.constant 0 : index
    %2 = vector.load %arg3[%c0_2, %c0_3] : memref<64x128xbf16, #tpu.memory_space<vmem>>, vector<64x128xbf16>
    %cst = arith.constant dense<0.000000e+00> : vector<512x128xf32>
    %3 = tpu.matmul %1, %2, %cst {dimension_numbers = #tpu.dot_dimension_numbers<[1], [0], [0], [1], [0, 0, 1, 1], [], []>} : vector<512x64xbf16>, vector<64x128xbf16>, vector<512x128xf32> -> vector<512x128xf32>
    %cst_4 = arith.constant 0.000000e+00 : f32
    %4 = vector.broadcast %cst_4 : f32 to vector<512x128xf32>
    %5 = arith.cmpf oge, %3, %4 : vector<512x128xf32>
    %cst_5 = arith.constant 2.000000e-01 : f32
    %6 = vector.broadcast %cst_5 : f32 to vector<512x128xf32>
    %7 = arith.mulf %6, %3 : vector<512x128xf32>
    %8 = arith.select %5, %3, %7 : vector<512x128xi1>, vector<512x128xf32>
    %9 = arith.truncf %8 : vector<512x128xf32> to vector<512x128xbf16>
    %c0_6 = arith.constant 0 : index
    %c0_7 = arith.constant 0 : index
    %c0_8 = arith.constant 0 : index
    %10 = vector.load %arg4[%c0_6, %c0_7, %c0_8] : memref<1x512x128xbf16, #tpu.memory_space<vmem>>, vector<1x512x128xbf16>
    %11 = vector.shape_cast %10 : vector<1x512x128xbf16> to vector<512x128xbf16>
    %12 = vector.shape_cast %9 : vector<512x128xbf16> to vector<1x512x128xbf16>
    tpu.vector_store %arg4[%c0_6, %c0_7, %c0_8], %12 {strides = array<i32>} : memref<1x512x128xbf16, #tpu.memory_space<vmem>>, vector<1x512x128xbf16>,
    return
  }
  func.func @transform_0(%arg0: i32, %arg1: i32) -> (i32, i32, i32) {
    %c0_i32 = arith.constant 0 : i32
    %c0_i32_0 = arith.constant 0 : i32
    return %arg0, %arg1, %c0_i32 : i32, i32, i32
  }
  func.func @transform_1(%arg0: i32, %arg1: i32) -> (i32, i32) {
    %c0_i32 = arith.constant 0 : i32
    %c0_i32_0 = arith.constant 0 : i32
    %c0_i32_1 = arith.constant 0 : i32
    return %c0_i32, %c0_i32_0 : i32, i32
  }
  func.func @transform_2(%arg0: i32, %arg1: i32) -> (i32, i32, i32) {
    %c0_i32 = arith.constant 0 : i32
    %c0_i32_0 = arith.constant 0 : i32
    return %arg0, %arg1, %c0_i32 : i32, i32, i32
  }
}

module attributes {stable_mosaic.version = 11 : i64} {
  func.func @kernel(%arg0: i32, %arg1: memref<512x128xbf16, #tpu.memory_space<vmem>>, %arg2: memref<128x128xbf16, #tpu.memory_space<vmem>>, %arg3: memref<1x128xf32, #tpu.memory_space<vmem>>, %arg4: memref<1x128xf32, #tpu.memory_space<vmem>>, %arg5: memref<512x128xbf16, #tpu.memory_space<vmem>>) attributes {dimension_semantics = [#tpu.dimension_semantics<arbitrary>], iteration_bounds = array<i64: 1>, scalar_prefetch = 0 : i64, scratch_operands = 0 : i64, tpu.core_type = #tpu.core_type<tc>, window_params = [{pipeline_mode = #tpu.pipeline_mode<synchronous>, transform_indices = @transform_0, window_bounds = array<i64: 512, 128>}, {pipeline_mode = #tpu.pipeline_mode<synchronous>, transform_indices = @transform_1, window_bounds = array<i64: 128, 128>}, {pipeline_mode = #tpu.pipeline_mode<synchronous>, transform_indices = @transform_2, window_bounds = array<i64: 1, 128>}, {pipeline_mode = #tpu.pipeline_mode<synchronous>, transform_indices = @transform_3, window_bounds = array<i64: 1, 128>}, {pipeline_mode = #tpu.pipeline_mode<synchronous>, transform_indices = @transform_4, window_bounds = array<i64: 512, 128>}]} {
    %c0 = arith.constant 0 : index
    %c0_0 = arith.constant 0 : index
    %0 = vector.load %arg1[%c0, %c0_0] : memref<512x128xbf16, #tpu.memory_space<vmem>>, vector<512x128xbf16>
    %c0_1 = arith.constant 0 : index
    %c0_2 = arith.constant 0 : index
    %1 = vector.load %arg2[%c0_1, %c0_2] : memref<128x128xbf16, #tpu.memory_space<vmem>>, vector<128x128xbf16>
    %cst = arith.constant dense<0.000000e+00> : vector<512x128xf32>
    %2 = tpu.matmul %0, %1, %cst {dimension_numbers = #tpu.dot_dimension_numbers<[1], [0], [0], [1], [0, 0, 1, 1], [], []>} : vector<512x128xbf16>, vector<128x128xbf16>, vector<512x128xf32> -> vector<512x128xf32>
    %cst_3 = arith.constant dense<0.000000e+00> : vector<128xf32>
    %3 = vector.multi_reduction <add>, %2, %cst_3 [0] : vector<512x128xf32> to vector<128xf32>
    %4 = vector.shape_cast %3 : vector<128xf32> to vector<1x128xf32>
    %cst_4 = arith.constant 0.001953125 : f32
    %5 = vector.broadcast %cst_4 : f32 to vector<1x128xf32>
    %6 = arith.mulf %4, %5 : vector<1x128xf32>
    %7 = vector.broadcast %6 : vector<1x128xf32> to vector<512x128xf32>
    %8 = arith.subf %2, %7 : vector<512x128xf32>
    %9 = arith.mulf %8, %8 : vector<512x128xf32>
    %cst_5 = arith.constant dense<0.000000e+00> : vector<128xf32>
    %10 = vector.multi_reduction <add>, %9, %cst_5 [0] : vector<512x128xf32> to vector<128xf32>
    %11 = vector.shape_cast %10 : vector<128xf32> to vector<1x128xf32>
    %cst_6 = arith.constant 0.001953125 : f32
    %12 = vector.broadcast %cst_6 : f32 to vector<1x128xf32>
    %13 = arith.mulf %11, %12 : vector<1x128xf32>
    %c0_7 = arith.constant 0 : index
    %c0_8 = arith.constant 0 : index
    %14 = vector.load %arg3[%c0_7, %c0_8] : memref<1x128xf32, #tpu.memory_space<vmem>>, vector<1x128xf32>
    %cst_9 = arith.constant 9.99999974E-6 : f32
    %15 = vector.broadcast %cst_9 : f32 to vector<1x128xf32>
    %16 = arith.addf %13, %15 : vector<1x128xf32>
    %17 = math.rsqrt %16 : vector<1x128xf32>
    %18 = arith.mulf %14, %17 : vector<1x128xf32>
    %19 = vector.broadcast %18 : vector<1x128xf32> to vector<512x128xf32>
    %20 = arith.mulf %8, %19 : vector<512x128xf32>
    %c0_10 = arith.constant 0 : index
    %c0_11 = arith.constant 0 : index
    %21 = vector.load %arg4[%c0_10, %c0_11] : memref<1x128xf32, #tpu.memory_space<vmem>>, vector<1x128xf32>
    %22 = vector.broadcast %21 : vector<1x128xf32> to vector<512x128xf32>
    %23 = arith.addf %20, %22 : vector<512x128xf32>
    %cst_12 = arith.constant 0.000000e+00 : f32
    %24 = vector.broadcast %cst_12 : f32 to vector<512x128xf32>
    %25 = arith.cmpf oge, %23, %24 : vector<512x128xf32>
    %cst_13 = arith.constant 2.000000e-01 : f32
    %26 = vector.broadcast %cst_13 : f32 to vector<512x128xf32>
    %27 = arith.mulf %26, %23 : vector<512x128xf32>
    %28 = arith.select %25, %23, %27 : vector<512x128xi1>, vector<512x128xf32>
    %29 = arith.truncf %28 : vector<512x128xf32> to vector<512x128xbf16>
    %c0_14 = arith.constant 0 : index
    %c0_15 = arith.constant 0 : index
    %30 = vector.load %arg5[%c0_14, %c0_15] : memref<512x128xbf16, #tpu.memory_space<vmem>>, vector<512x128xbf16>
    tpu.vector_store %arg5[%c0_14, %c0_15], %29 {strides = array<i32>} : memref<512x128xbf16, #tpu.memory_space<vmem>>, vector<512x128xbf16>,
    return
  }
  func.func @transform_0(%arg0: i32) -> (i32, i32) {
    %c0_i32 = arith.constant 0 : i32
    %c0_i32_0 = arith.constant 0 : i32
    %c0_i32_1 = arith.constant 0 : i32
    return %c0_i32, %c0_i32_0 : i32, i32
  }
  func.func @transform_1(%arg0: i32) -> (i32, i32) {
    %c0_i32 = arith.constant 0 : i32
    %c0_i32_0 = arith.constant 0 : i32
    %c0_i32_1 = arith.constant 0 : i32
    return %c0_i32, %c0_i32_0 : i32, i32
  }
  func.func @transform_2(%arg0: i32) -> (i32, i32) {
    %c0_i32 = arith.constant 0 : i32
    %c0_i32_0 = arith.constant 0 : i32
    %c0_i32_1 = arith.constant 0 : i32
    return %c0_i32, %c0_i32_0 : i32, i32
  }
  func.func @transform_3(%arg0: i32) -> (i32, i32) {
    %c0_i32 = arith.constant 0 : i32
    %c0_i32_0 = arith.constant 0 : i32
    %c0_i32_1 = arith.constant 0 : i32
    return %c0_i32, %c0_i32_0 : i32, i32
  }
  func.func @transform_4(%arg0: i32) -> (i32, i32) {
    %c0_i32 = arith.constant 0 : i32
    %c0_i32_0 = arith.constant 0 : i32
    %c0_i32_1 = arith.constant 0 : i32
    return %c0_i32, %c0_i32_0 : i32, i32
  }
}

module attributes {stable_mosaic.version = 11 : i64} {
  func.func @kernel(%arg0: i32, %arg1: memref<128x256xbf16, #tpu.memory_space<vmem>>, %arg2: memref<256x128xbf16, #tpu.memory_space<vmem>>, %arg3: memref<1x128xf32, #tpu.memory_space<vmem>>, %arg4: memref<1x128xf32, #tpu.memory_space<vmem>>, %arg5: memref<128x128xbf16, #tpu.memory_space<vmem>>) attributes {dimension_semantics = [#tpu.dimension_semantics<arbitrary>], iteration_bounds = array<i64: 1>, scalar_prefetch = 0 : i64, scratch_operands = 0 : i64, tpu.core_type = #tpu.core_type<tc>, window_params = [{pipeline_mode = #tpu.pipeline_mode<synchronous>, transform_indices = @transform_0, window_bounds = array<i64: 128, 256>}, {pipeline_mode = #tpu.pipeline_mode<synchronous>, transform_indices = @transform_1, window_bounds = array<i64: 256, 128>}, {pipeline_mode = #tpu.pipeline_mode<synchronous>, transform_indices = @transform_2, window_bounds = array<i64: 1, 128>}, {pipeline_mode = #tpu.pipeline_mode<synchronous>, transform_indices = @transform_3, window_bounds = array<i64: 1, 128>}, {pipeline_mode = #tpu.pipeline_mode<synchronous>, transform_indices = @transform_4, window_bounds = array<i64: 128, 128>}]} {
    %c0 = arith.constant 0 : index
    %c0_0 = arith.constant 0 : index
    %0 = vector.load %arg1[%c0, %c0_0] : memref<128x256xbf16, #tpu.memory_space<vmem>>, vector<128x256xbf16>
    %c0_1 = arith.constant 0 : index
    %c0_2 = arith.constant 0 : index
    %1 = vector.load %arg2[%c0_1, %c0_2] : memref<256x128xbf16, #tpu.memory_space<vmem>>, vector<256x128xbf16>
    %cst = arith.constant dense<0.000000e+00> : vector<128x128xf32>
    %2 = tpu.matmul %0, %1, %cst {dimension_numbers = #tpu.dot_dimension_numbers<[1], [0], [0], [1], [0, 0, 1, 1], [], []>} : vector<128x256xbf16>, vector<256x128xbf16>, vector<128x128xf32> -> vector<128x128xf32>
    %cst_3 = arith.constant dense<0.000000e+00> : vector<128xf32>
    %3 = vector.multi_reduction <add>, %2, %cst_3 [0] : vector<128x128xf32> to vector<128xf32>
    %4 = vector.shape_cast %3 : vector<128xf32> to vector<1x128xf32>
    %cst_4 = arith.constant 7.812500e-03 : f32
    %5 = vector.broadcast %cst_4 : f32 to vector<1x128xf32>
    %6 = arith.mulf %4, %5 : vector<1x128xf32>
    %7 = vector.broadcast %6 : vector<1x128xf32> to vector<128x128xf32>
    %8 = arith.subf %2, %7 : vector<128x128xf32>
    %9 = arith.mulf %8, %8 : vector<128x128xf32>
    %cst_5 = arith.constant dense<0.000000e+00> : vector<128xf32>
    %10 = vector.multi_reduction <add>, %9, %cst_5 [0] : vector<128x128xf32> to vector<128xf32>
    %11 = vector.shape_cast %10 : vector<128xf32> to vector<1x128xf32>
    %cst_6 = arith.constant 7.812500e-03 : f32
    %12 = vector.broadcast %cst_6 : f32 to vector<1x128xf32>
    %13 = arith.mulf %11, %12 : vector<1x128xf32>
    %c0_7 = arith.constant 0 : index
    %c0_8 = arith.constant 0 : index
    %14 = vector.load %arg3[%c0_7, %c0_8] : memref<1x128xf32, #tpu.memory_space<vmem>>, vector<1x128xf32>
    %cst_9 = arith.constant 9.99999974E-6 : f32
    %15 = vector.broadcast %cst_9 : f32 to vector<1x128xf32>
    %16 = arith.addf %13, %15 : vector<1x128xf32>
    %17 = math.rsqrt %16 : vector<1x128xf32>
    %18 = arith.mulf %14, %17 : vector<1x128xf32>
    %19 = vector.broadcast %18 : vector<1x128xf32> to vector<128x128xf32>
    %20 = arith.mulf %8, %19 : vector<128x128xf32>
    %c0_10 = arith.constant 0 : index
    %c0_11 = arith.constant 0 : index
    %21 = vector.load %arg4[%c0_10, %c0_11] : memref<1x128xf32, #tpu.memory_space<vmem>>, vector<1x128xf32>
    %22 = vector.broadcast %21 : vector<1x128xf32> to vector<128x128xf32>
    %23 = arith.addf %20, %22 : vector<128x128xf32>
    %cst_12 = arith.constant 0.000000e+00 : f32
    %24 = vector.broadcast %cst_12 : f32 to vector<128x128xf32>
    %25 = arith.cmpf oge, %23, %24 : vector<128x128xf32>
    %cst_13 = arith.constant 2.000000e-01 : f32
    %26 = vector.broadcast %cst_13 : f32 to vector<128x128xf32>
    %27 = arith.mulf %26, %23 : vector<128x128xf32>
    %28 = arith.select %25, %23, %27 : vector<128x128xi1>, vector<128x128xf32>
    %29 = arith.truncf %28 : vector<128x128xf32> to vector<128x128xbf16>
    %c0_14 = arith.constant 0 : index
    %c0_15 = arith.constant 0 : index
    %30 = vector.load %arg5[%c0_14, %c0_15] : memref<128x128xbf16, #tpu.memory_space<vmem>>, vector<128x128xbf16>
    tpu.vector_store %arg5[%c0_14, %c0_15], %29 {strides = array<i32>} : memref<128x128xbf16, #tpu.memory_space<vmem>>, vector<128x128xbf16>,
    return
  }
  func.func @transform_0(%arg0: i32) -> (i32, i32) {
    %c0_i32 = arith.constant 0 : i32
    %c0_i32_0 = arith.constant 0 : i32
    %c0_i32_1 = arith.constant 0 : i32
    return %c0_i32, %c0_i32_0 : i32, i32
  }
  func.func @transform_1(%arg0: i32) -> (i32, i32) {
    %c0_i32 = arith.constant 0 : i32
    %c0_i32_0 = arith.constant 0 : i32
    %c0_i32_1 = arith.constant 0 : i32
    return %c0_i32, %c0_i32_0 : i32, i32
  }
  func.func @transform_2(%arg0: i32) -> (i32, i32) {
    %c0_i32 = arith.constant 0 : i32
    %c0_i32_0 = arith.constant 0 : i32
    %c0_i32_1 = arith.constant 0 : i32
    return %c0_i32, %c0_i32_0 : i32, i32
  }
  func.func @transform_3(%arg0: i32) -> (i32, i32) {
    %c0_i32 = arith.constant 0 : i32
    %c0_i32_0 = arith.constant 0 : i32
    %c0_i32_1 = arith.constant 0 : i32
    return %c0_i32, %c0_i32_0 : i32, i32
  }
  func.func @transform_4(%arg0: i32) -> (i32, i32) {
    %c0_i32 = arith.constant 0 : i32
    %c0_i32_0 = arith.constant 0 : i32
    %c0_i32_1 = arith.constant 0 : i32
    return %c0_i32, %c0_i32_0 : i32, i32
  }
}

module attributes {stable_mosaic.version = 11 : i64} {
  func.func @kernel(%arg0: i32, %arg1: memref<32x512xbf16, #tpu.memory_space<vmem>>, %arg2: memref<512x128xbf16, #tpu.memory_space<vmem>>, %arg3: memref<1x128xf32, #tpu.memory_space<vmem>>, %arg4: memref<1x128xf32, #tpu.memory_space<vmem>>, %arg5: memref<16x128xf32, #tpu.memory_space<vmem>>, %arg6: memref<2x32xf32, #tpu.memory_space<vmem>>, %arg7: memref<1x32xf32, #tpu.memory_space<vmem>>, %arg8: memref<1x1xf32, #tpu.memory_space<smem>>, %arg9: memref<2x1xf32, #tpu.memory_space<vmem>>) attributes {dimension_semantics = [#tpu.dimension_semantics<arbitrary>], iteration_bounds = array<i64: 1>, scalar_prefetch = 0 : i64, scratch_operands = 0 : i64, tpu.core_type = #tpu.core_type<tc>, window_params = [{pipeline_mode = #tpu.pipeline_mode<synchronous>, transform_indices = @transform_0, window_bounds = array<i64: 32, 512>}, {pipeline_mode = #tpu.pipeline_mode<synchronous>, transform_indices = @transform_1, window_bounds = array<i64: 512, 128>}, {pipeline_mode = #tpu.pipeline_mode<synchronous>, transform_indices = @transform_2, window_bounds = array<i64: 1, 128>}, {pipeline_mode = #tpu.pipeline_mode<synchronous>, transform_indices = @transform_3, window_bounds = array<i64: 1, 128>}, {pipeline_mode = #tpu.pipeline_mode<synchronous>, transform_indices = @transform_4, window_bounds = array<i64: 16, 128>}, {pipeline_mode = #tpu.pipeline_mode<synchronous>, transform_indices = @transform_5, window_bounds = array<i64: 2, 32>}, {pipeline_mode = #tpu.pipeline_mode<synchronous>, transform_indices = @transform_6, window_bounds = array<i64: 1, 32>}, {transform_indices = @transform_7, window_bounds = array<i64: 1, 1>}, {pipeline_mode = #tpu.pipeline_mode<synchronous>, transform_indices = @transform_8, window_bounds = array<i64: 2, 1>}]} {
    %c0 = arith.constant 0 : index
    %c0_0 = arith.constant 0 : index
    %0 = vector.load %arg1[%c0, %c0_0] : memref<32x512xbf16, #tpu.memory_space<vmem>>, vector<32x512xbf16>
    %c0_1 = arith.constant 0 : index
    %c0_2 = arith.constant 0 : index
    %1 = vector.load %arg2[%c0_1, %c0_2] : memref<512x128xbf16, #tpu.memory_space<vmem>>, vector<512x128xbf16>
    %cst = arith.constant dense<0.000000e+00> : vector<32x128xf32>
    %2 = tpu.matmul %0, %1, %cst {dimension_numbers = #tpu.dot_dimension_numbers<[1], [0], [0], [1], [0, 0, 1, 1], [], []>} : vector<32x512xbf16>, vector<512x128xbf16>, vector<32x128xf32> -> vector<32x128xf32>
    %cst_3 = arith.constant dense<0.000000e+00> : vector<128xf32>
    %3 = vector.multi_reduction <add>, %2, %cst_3 [0] : vector<32x128xf32> to vector<128xf32>
    %4 = vector.shape_cast %3 : vector<128xf32> to vector<1x128xf32>
    %cst_4 = arith.constant 3.125000e-02 : f32
    %5 = vector.broadcast %cst_4 : f32 to vector<1x128xf32>
    %6 = arith.mulf %4, %5 : vector<1x128xf32>
    %7 = vector.broadcast %6 : vector<1x128xf32> to vector<32x128xf32>
    %8 = arith.subf %2, %7 : vector<32x128xf32>
    %9 = arith.mulf %8, %8 : vector<32x128xf32>
    %cst_5 = arith.constant dense<0.000000e+00> : vector<128xf32>
    %10 = vector.multi_reduction <add>, %9, %cst_5 [0] : vector<32x128xf32> to vector<128xf32>
    %11 = vector.shape_cast %10 : vector<128xf32> to vector<1x128xf32>
    %cst_6 = arith.constant 3.125000e-02 : f32
    %12 = vector.broadcast %cst_6 : f32 to vector<1x128xf32>
    %13 = arith.mulf %11, %12 : vector<1x128xf32>
    %c0_7 = arith.constant 0 : index
    %c0_8 = arith.constant 0 : index
    %14 = vector.load %arg3[%c0_7, %c0_8] : memref<1x128xf32, #tpu.memory_space<vmem>>, vector<1x128xf32>
    %cst_9 = arith.constant 9.99999974E-6 : f32
    %15 = vector.broadcast %cst_9 : f32 to vector<1x128xf32>
    %16 = arith.addf %13, %15 : vector<1x128xf32>
    %17 = math.rsqrt %16 : vector<1x128xf32>
    %18 = arith.mulf %14, %17 : vector<1x128xf32>
    %19 = vector.broadcast %18 : vector<1x128xf32> to vector<32x128xf32>
    %20 = arith.mulf %8, %19 : vector<32x128xf32>
    %c0_10 = arith.constant 0 : index
    %c0_11 = arith.constant 0 : index
    %21 = vector.load %arg4[%c0_10, %c0_11] : memref<1x128xf32, #tpu.memory_space<vmem>>, vector<1x128xf32>
    %22 = vector.broadcast %21 : vector<1x128xf32> to vector<32x128xf32>
    %23 = arith.addf %20, %22 : vector<32x128xf32>
    %cst_12 = arith.constant 0.000000e+00 : f32
    %24 = vector.broadcast %cst_12 : f32 to vector<32x128xf32>
    %25 = arith.cmpf oge, %23, %24 : vector<32x128xf32>
    %cst_13 = arith.constant 2.000000e-01 : f32
    %26 = vector.broadcast %cst_13 : f32 to vector<32x128xf32>
    %27 = arith.mulf %26, %23 : vector<32x128xf32>
    %28 = arith.select %25, %23, %27 : vector<32x128xi1>, vector<32x128xf32>
    %29 = vector.shape_cast %28 : vector<32x128xf32> to vector<2x16x128xf32>
    %c0_14 = arith.constant 0 : index
    %c0_15 = arith.constant 0 : index
    %30 = vector.load %arg5[%c0_14, %c0_15] : memref<16x128xf32, #tpu.memory_space<vmem>>, vector<16x128xf32>
    %31 = vector.shape_cast %30 : vector<16x128xf32> to vector<1x16x128xf32>
    %32 = vector.broadcast %31 : vector<1x16x128xf32> to vector<2x16x128xf32>
    %33 = arith.mulf %29, %32 : vector<2x16x128xf32>
    %cst_16 = arith.constant dense<0.000000e+00> : vector<2x16xf32>
    %34 = vector.multi_reduction <add>, %33, %cst_16 [2] : vector<2x16x128xf32> to vector<2x16xf32>
    %cst_17 = arith.constant dense<0.000000e+00> : vector<2xf32>
    %35 = vector.multi_reduction <add>, %34, %cst_17 [1] : vector<2x16xf32> to vector<2xf32>
    %36 = vector.shape_cast %35 : vector<2xf32> to vector<2x1xf32>
    %c0_18 = arith.constant 0 : index
    %c0_19 = arith.constant 0 : index
    %37 = vector.load %arg6[%c0_18, %c0_19] : memref<2x32xf32, #tpu.memory_space<vmem>>, vector<2x32xf32>
    %c0_20 = arith.constant 0 : index
    %c0_21 = arith.constant 0 : index
    %38 = vector.load %arg7[%c0_20, %c0_21] : memref<1x32xf32, #tpu.memory_space<vmem>>, vector<1x32xf32>
    %39 = vector.broadcast %38 : vector<1x32xf32> to vector<2x32xf32>
    %40 = arith.mulf %37, %39 : vector<2x32xf32>
    %cst_22 = arith.constant dense<0.000000e+00> : vector<2xf32>
    %41 = vector.multi_reduction <add>, %40, %cst_22 [1] : vector<2x32xf32> to vector<2xf32>
    %42 = vector.shape_cast %41 : vector<2xf32> to vector<2x1xf32>
    %43 = arith.addf %36, %42 : vector<2x1xf32>
    %c0_23 = arith.constant 0 : index
    %c0_24 = arith.constant 0 : index
    %44 = memref.load %arg8[%c0_23, %c0_24] : memref<1x1xf32, #tpu.memory_space<smem>>
    %45 = vector.broadcast %44 : f32 to vector<2x1xf32>
    %46 = arith.addf %43, %45 : vector<2x1xf32>
    %47 = arith.negf %46 : vector<2x1xf32>
    %48 = math.exp %47 : vector<2x1xf32>
    %cst_25 = arith.constant 1.000000e+00 : f32
    %49 = vector.broadcast %cst_25 : f32 to vector<2x1xf32>
    %50 = arith.addf %49, %48 : vector<2x1xf32>
    %51 = arith.divf %49, %50 : vector<2x1xf32>
    %c0_26 = arith.constant 0 : index
    %c0_27 = arith.constant 0 : index
    %52 = vector.load %arg9[%c0_26, %c0_27] : memref<2x1xf32, #tpu.memory_space<vmem>>, vector<2x1xf32>
    tpu.vector_store %arg9[%c0_26, %c0_27], %51 {strides = array<i32>} : memref<2x1xf32, #tpu.memory_space<vmem>>, vector<2x1xf32>,
    return
  }
  func.func @transform_0(%arg0: i32) -> (i32, i32) {
    %c0_i32 = arith.constant 0 : i32
    %c0_i32_0 = arith.constant 0 : i32
    %c0_i32_1 = arith.constant 0 : i32
    return %c0_i32, %c0_i32_0 : i32, i32
  }
  func.func @transform_1(%arg0: i32) -> (i32, i32) {
    %c0_i32 = arith.constant 0 : i32
    %c0_i32_0 = arith.constant 0 : i32
    %c0_i32_1 = arith.constant 0 : i32
    return %c0_i32, %c0_i32_0 : i32, i32
  }
  func.func @transform_2(%arg0: i32) -> (i32, i32) {
    %c0_i32 = arith.constant 0 : i32
    %c0_i32_0 = arith.constant 0 : i32
    %c0_i32_1 = arith.constant 0 : i32
    return %c0_i32, %c0_i32_0 : i32, i32
  }
  func.func @transform_3(%arg0: i32) -> (i32, i32) {
    %c0_i32 = arith.constant 0 : i32
    %c0_i32_0 = arith.constant 0 : i32
    %c0_i32_1 = arith.constant 0 : i32
    return %c0_i32, %c0_i32_0 : i32, i32
  }
  func.func @transform_4(%arg0: i32) -> (i32, i32) {
    %c0_i32 = arith.constant 0 : i32
    %c0_i32_0 = arith.constant 0 : i32
    %c0_i32_1 = arith.constant 0 : i32
    return %c0_i32, %c0_i32_0 : i32, i32
  }
  func.func @transform_5(%arg0: i32) -> (i32, i32) {
    %c0_i32 = arith.constant 0 : i32
    %c0_i32_0 = arith.constant 0 : i32
    %c0_i32_1 = arith.constant 0 : i32
    return %c0_i32, %c0_i32_0 : i32, i32
  }
  func.func @transform_6(%arg0: i32) -> (i32, i32) {
    %c0_i32 = arith.constant 0 : i32
    %c0_i32_0 = arith.constant 0 : i32
    %c0_i32_1 = arith.constant 0 : i32
    return %c0_i32, %c0_i32_0 : i32, i32
  }
  func.func @transform_7(%arg0: i32) -> (i32, i32) {
    %c0_i32 = arith.constant 0 : i32
    %c0_i32_0 = arith.constant 0 : i32
    %c0_i32_1 = arith.constant 0 : i32
    return %c0_i32, %c0_i32_0 : i32, i32
  }
  func.func @transform_8(%arg0: i32) -> (i32, i32) {
    %c0_i32 = arith.constant 0 : i32
    %c0_i32_0 = arith.constant 0 : i32
    %c0_i32_1 = arith.constant 0 : i32
    return %c0_i32, %c0_i32_0 : i32, i32
  }
}

</mosaic_0001>

<llo_original>
// kernel: discriminator_forward.4
$region0: #{discriminator_forward.4}
  #allocation0 [shape = 'u32[]', space=smem, size = 0x4, offset = 0x4, fixed_abs, tag = 'smem constant byte address 0x4 - core index']
  #allocation1 [shape = 'u32[144,128]{1,0:T(1,128)}', space=vmem, size = 0x12000, scoped, tag = 'internal scratch']
  %s0 = inlined_call_operand.vmem [shape: bf16[2,1024,64], index: 0, kind: input, shape index: {}]
  %s1 = inlined_call_operand.vmem [shape: bf16[64,128], index: 1, kind: input, shape index: {}]
  %s2 = inlined_call_operand.vmem [shape: bf16[2,1024,128], index: 2, kind: output, shape index: {}]
  %s3 = sld [smem:[#allocation0]]
  $region41: #{discriminator_forward.4} parent=0
    _
  %s5 = ssub.s32 1, %s3
  %s6 = scalar_select 0, %s5, %s3
  loop: start=0, step=1, limit=6
  $region2: #{discriminator_forward.4} parent=0 // loop_pre_header
    _
  $region3: #{discriminator_forward.4} parent=0 // loop_header
    %s8 = sphi 0, %s12
    %p9 = scmp.ge.s32.totalorder %s8, 6
    %s15 = sphi 0, %s27
    %s16 = sphi 0, %s23
    %s17 = sphi 0, %s15
    %s18 = sphi 0, %s16
    %s19 = sphi 0, %s17
    %s20 = sphi 0, %s18
    %s32 = sphi 0, %s34
    %s35 = sphi 0, %s32
    %s36 = sphi 0, %s35
    %s52 = sphi 0, %s36
    %s56 = sphi 0, %s56
    %s58 = sphi 0, %s56
    %s59 = sphi 0, %s58
    %s73 = sphi 0, %s59
    %s81 = sphi 0, %s83
    %s84 = sphi 0, %s81
    %s85 = sphi 0, %s84
    %s101 = sphi 0, %s85
  $region4: #{discriminator_forward.4} parent=0 // loop_header_branch
    %11 = sbr.rel (%p9) target = $region8
  $region5: #{discriminator_forward.4} parent=0 // loop_body
    %s13 = ssub.s32 %s8, 1
    %s14 = ssub.s32 %s8, 2
    %s21 = sadd.s32 1, %s16
    %p22 = scmp.ge.s32.totalorder %s21, 2
    %s23 = scalar_select %p22, 0, %s21
    %s24 = sadd.s32 1, %s15
    %s25 = scalar_select %p22, %s24, %s15
    %p26 = scmp.ge.s32.totalorder %s25, 2
    %s27 = scalar_select %p26, 0, %s25
    %s28 = ssub.s32 %s15, %s27
    %s29 = ssub.s32 %s16, %s23
    %s30 = sor.u32 %s28, %s29
    %p31 = scmp.eq.s32.totalorder %s30, 0
    %s33 = sadd.s32 %s32, 1
    %s34 = scalar_select %p31, %s32, %s33
    %p37 = pneg %p31
    %p38 = scmp.eq.s32.totalorder %s8, 3
    %p39 = por %p37, %p38
    %p40 = scmp.ne.s32.totalorder %s32, %s35
    %p41 = scmp.eq.s32.totalorder %s8, 0
    %p42 = por %p40, %p41
    %p43 = scmp.ne.s32.totalorder %s32, %s35
    %p44 = scmp.eq.s32.totalorder %s13, 3
    %p45 = por %p43, %p44
    %p46 = scmp.ne.s32.totalorder %s35, %s36
    %p47 = scmp.eq.s32.totalorder %s13, 0
    %p48 = por %p46, %p47
    %p49 = scmp.ne.s32.totalorder %s35, %s36
    %p50 = scmp.eq.s32.totalorder %s14, 3
    %p51 = por %p49, %p50
    %p53 = scmp.ne.s32.totalorder %s36, %s52
    %p54 = scmp.eq.s32.totalorder %s14, 0
    %p55 = por %p53, %p54
    %s57 = sadd.s32 %s56, 1
    %p60 = scmp.eq.s32.totalorder %s8, 3
    %p61 = scmp.ne.s32.totalorder %s56, %s58
    %p62 = scmp.eq.s32.totalorder %s8, 0
    %p63 = por %p61, %p62
    %p64 = scmp.ne.s32.totalorder %s56, %s58
    %p65 = scmp.eq.s32.totalorder %s13, 3
    %p66 = por %p64, %p65
    %p67 = scmp.ne.s32.totalorder %s58, %s59
    %p68 = scmp.eq.s32.totalorder %s13, 0
    %p69 = por %p67, %p68
    %p70 = scmp.ne.s32.totalorder %s58, %s59
    %p71 = scmp.eq.s32.totalorder %s14, 3
    %p72 = por %p70, %p71
    %p74 = scmp.ne.s32.totalorder %s59, %s73
    %p75 = scmp.eq.s32.totalorder %s14, 0
    %p76 = por %p74, %p75
    %s77 = ssub.s32 %s15, %s27
    %s78 = ssub.s32 %s16, %s23
    %s79 = sor.u32 %s77, %s78
    %p80 = scmp.eq.s32.totalorder %s79, 0
    %s82 = sadd.s32 %s81, 1
    %s83 = scalar_select %p80, %s81, %s82
    %p86 = pneg %p80
    %p87 = scmp.eq.s32.totalorder %s8, 3
    %p88 = por %p86, %p87
    %p89 = scmp.ne.s32.totalorder %s81, %s84
    %p90 = scmp.eq.s32.totalorder %s8, 0
    %p91 = por %p89, %p90
    %p92 = scmp.ne.s32.totalorder %s81, %s84
    %p93 = scmp.eq.s32.totalorder %s13, 3
    %p94 = por %p92, %p93
    %p95 = scmp.ne.s32.totalorder %s84, %s85
    %p96 = scmp.eq.s32.totalorder %s13, 0
    %p97 = por %p95, %p96
    %p98 = scmp.ne.s32.totalorder %s84, %s85
    %p99 = scmp.eq.s32.totalorder %s14, 3
    %p100 = por %p98, %p99
    %p102 = scmp.ne.s32.totalorder %s85, %s101
    %p103 = scmp.eq.s32.totalorder %s14, 0
    %p104 = por %p102, %p103
    %p105 = scmp.le.s32.totalorder 1, %s8
    %p106 = scmp.lt.s32.totalorder %s8, 5
    %p107 = pnand %p105, %p106
    %p108 = pneg %p107
    // Predicated region
    $region9: #{discriminator_forward.4} parent=5 // pred_check
      _
    $region10: #{discriminator_forward.4} parent=5 // pred_check_branch
      %110 = sbr.rel (%p107) target = $region12
    $region11: #{discriminator_forward.4} parent=5 // pred_region
      %s111 = ssub.s32 %s8, 1
      // Predicated region
      $region13: #{discriminator_forward.4} parent=11 // pred_check
        %p112 = pneg %p69
      $region14: #{discriminator_forward.4} parent=11 // pred_check_branch
        %114 = sbr.rel (%p112) target = $region16
      $region15: #{discriminator_forward.4} parent=11 // pred_region
        _
      $region16: #{discriminator_forward.4} parent=11 // pred_fallthru
        _
    $region12: #{discriminator_forward.4} parent=5 // pred_fallthru
      _
    %p115 = scmp.lt.s32.totalorder %s8, 4
    // Predicated region
    $region17: #{discriminator_forward.4} parent=5 // pred_check
      %p116 = pneg %p115
    $region18: #{discriminator_forward.4} parent=5 // pred_check_branch
      %118 = sbr.rel (%p116) target = $region20
    $region19: #{discriminator_forward.4} parent=5 // pred_region
      // Predicated region
      $region21: #{discriminator_forward.4} parent=19 // pred_check
        %p119 = pneg %p42
      $region22: #{discriminator_forward.4} parent=19 // pred_check_branch
        %121 = sbr.rel (%p119) target = $region24
      $region23: #{discriminator_forward.4} parent=19 // pred_region
        %s122 = smul.u32 64, %s16
        %p123 = scmp.lt.s32.totalorder %s15, 1
        %s124 = scalar_select %p123, %s15, 1
        %p125 = scmp.lt.s32.totalorder %s122, 127
        %s126 = scalar_select %p125, %s122, 127
        %s127 = smul.addr %s124, 128
        %s128 = sadd.s32 %s126, %s127
        %s129 = smul.addr %s128, 4
        %s130 = scalar_lea.vmem %s0, %s129
        %s131 = smul.u32 64, %s16
      $region24: #{discriminator_forward.4} parent=19 // pred_fallthru
        _
    $region20: #{discriminator_forward.4} parent=5 // pred_fallthru
      _
    %p132 = scmp.le.s32.totalorder 1, %s8
    %p133 = scmp.lt.s32.totalorder %s8, 5
    %p134 = pnand %p132, %p133
    %p135 = pneg %p134
    // Predicated region
    $region25: #{discriminator_forward.4} parent=5 // pred_check
      _
    $region26: #{discriminator_forward.4} parent=5 // pred_check_branch
      %137 = sbr.rel (%p134) target = $region28
    $region27: #{discriminator_forward.4} parent=5 // pred_region
      %s138 = ssub.s32 %s8, 1
      %s139 = smul.u32 64, %s18
      %p140 = scmp.lt.s32.totalorder %s17, 1
      %s141 = scalar_select %p140, %s17, 1
      %p142 = scmp.lt.s32.totalorder %s139, 127
      %s143 = scalar_select %p142, %s139, 127
      %s144 = smul.addr %s141, 128
      %s145 = sadd.s32 %s143, %s144
      %s146 = smul.addr %s145, 4
      %s147 = scalar_lea.vmem %s0, %s146
      %p148 = pneg %p48
      %p149 = pneg %p45
      %p150 = pneg %p69
      %p151 = pneg %p66
      %p152 = pneg %p97
      %p153 = pneg %p94
      %s154 = smul.u32 64, %s18
      %p155 = scmp.lt.s32.totalorder %s17, 1
      %s156 = scalar_select %p155, %s17, 1
      %p157 = scmp.lt.s32.totalorder %s154, 127
      %s158 = scalar_select %p157, %s154, 127
      %s159 = smul.addr %s156, 128
      %s160 = sadd.s32 %s158, %s159
      %s161 = smul.addr %s160, 4
      %s162 = scalar_lea.vmem %s2, %s161
      %s163 = smul.u32 64, %s18
      %p164 = scmp.lt.s32.totalorder %s17, 1
      %s165 = scalar_select %p164, %s17, 1
      %p166 = scmp.lt.s32.totalorder %s163, 127
      %s167 = scalar_select %p166, %s163, 127
      %s168 = smul.addr %s165, 128
      %s169 = sadd.s32 %s167, %s168
      %s170 = smul.addr %s169, 4
      %s171 = scalar_lea.vmem %s0, %s170
      %s172 = smul.u32 64, %s18
      %s173 = smul.u32 64, %s18
      %p174 = scmp.lt.s32.totalorder %s17, 1
      %s175 = scalar_select %p174, %s17, 1
      %p176 = scmp.lt.s32.totalorder %s173, 127
      %s177 = scalar_select %p176, %s173, 127
      %s178 = smul.addr %s175, 128
      %s179 = sadd.s32 %s177, %s178
      %s180 = smul.addr %s179, 4
      %s181 = scalar_lea.vmem %s2, %s180
      %s182 = smul.u32 64, %s18
      %v184 = vld [vmem:[%s171] sm:$0xf]
      %v185 = vld [vmem:[%s171 + $0x4] sm:$0xf]
      %v186 = vld [vmem:[%s171 + $0x8] sm:$0xf]
      %v187 = vld [vmem:[%s171 + $0xc] sm:$0xf]
      %v188 = vld [vmem:[%s171 + $0x10] sm:$0xf]
      %v189 = vld [vmem:[%s171 + $0x14] sm:$0xf]
      %v190 = vld [vmem:[%s171 + $0x18] sm:$0xf]
      %v191 = vld [vmem:[%s171 + $0x1c] sm:$0xf]
      %v192 = vld [vmem:[%s171 + $0x20] sm:$0xf]
      %v193 = vld [vmem:[%s171 + $0x24] sm:$0xf]
      %v194 = vld [vmem:[%s171 + $0x28] sm:$0xf]
      %v195 = vld [vmem:[%s171 + $0x2c] sm:$0xf]
      %v196 = vld [vmem:[%s171 + $0x30] sm:$0xf]
      %v197 = vld [vmem:[%s171 + $0x34] sm:$0xf]
      %v198 = vld [vmem:[%s171 + $0x38] sm:$0xf]
      %v199 = vld [vmem:[%s171 + $0x3c] sm:$0xf]
      %v200 = vld [vmem:[%s171 + $0x40] sm:$0xf]
      %v201 = vld [vmem:[%s171 + $0x44] sm:$0xf]
      %v202 = vld [vmem:[%s171 + $0x48] sm:$0xf]
      %v203 = vld [vmem:[%s171 + $0x4c] sm:$0xf]
      %v204 = vld [vmem:[%s171 + $0x50] sm:$0xf]
      %v205 = vld [vmem:[%s171 + $0x54] sm:$0xf]
      %v206 = vld [vmem:[%s171 + $0x58] sm:$0xf]
      %v207 = vld [vmem:[%s171 + $0x5c] sm:$0xf]
      %v208 = vld [vmem:[%s171 + $0x60] sm:$0xf]
      %v209 = vld [vmem:[%s171 + $0x64] sm:$0xf]
      %v210 = vld [vmem:[%s171 + $0x68] sm:$0xf]
      %v211 = vld [vmem:[%s171 + $0x6c] sm:$0xf]
      %v212 = vld [vmem:[%s171 + $0x70] sm:$0xf]
      %v213 = vld [vmem:[%s171 + $0x74] sm:$0xf]
      %v214 = vld [vmem:[%s171 + $0x78] sm:$0xf]
      %v215 = vld [vmem:[%s171 + $0x7c] sm:$0xf]
      %v216 = vld [vmem:[%s171 + $0x80] sm:$0xf]
      %v217 = vld [vmem:[%s171 + $0x84] sm:$0xf]
      %v218 = vld [vmem:[%s171 + $0x88] sm:$0xf]
      %v219 = vld [vmem:[%s171 + $0x8c] sm:$0xf]
      %v220 = vld [vmem:[%s171 + $0x90] sm:$0xf]
      %v221 = vld [vmem:[%s171 + $0x94] sm:$0xf]
      %v222 = vld [vmem:[%s171 + $0x98] sm:$0xf]
      %v223 = vld [vmem:[%s171 + $0x9c] sm:$0xf]
      %v224 = vld [vmem:[%s171 + $0xa0] sm:$0xf]
      %v225 = vld [vmem:[%s171 + $0xa4] sm:$0xf]
      %v226 = vld [vmem:[%s171 + $0xa8] sm:$0xf]
      %v227 = vld [vmem:[%s171 + $0xac] sm:$0xf]
      %v228 = vld [vmem:[%s171 + $0xb0] sm:$0xf]
      %v229 = vld [vmem:[%s171 + $0xb4] sm:$0xf]
      %v230 = vld [vmem:[%s171 + $0xb8] sm:$0xf]
      %v231 = vld [vmem:[%s171 + $0xbc] sm:$0xf]
      %v232 = vld [vmem:[%s171 + $0xc0] sm:$0xf]
      %v233 = vld [vmem:[%s171 + $0xc4] sm:$0xf]
      %v234 = vld [vmem:[%s171 + $0xc8] sm:$0xf]
      %v235 = vld [vmem:[%s171 + $0xcc] sm:$0xf]
      %v236 = vld [vmem:[%s171 + $0xd0] sm:$0xf]
      %v237 = vld [vmem:[%s171 + $0xd4] sm:$0xf]
      %v238 = vld [vmem:[%s171 + $0xd8] sm:$0xf]
      %v239 = vld [vmem:[%s171 + $0xdc] sm:$0xf]
      %v240 = vld [vmem:[%s171 + $0xe0] sm:$0xf]
      %v241 = vld [vmem:[%s171 + $0xe4] sm:$0xf]
      %v242 = vld [vmem:[%s171 + $0xe8] sm:$0xf]
      %v243 = vld [vmem:[%s171 + $0xec] sm:$0xf]
      %v244 = vld [vmem:[%s171 + $0xf0] sm:$0xf]
      %v245 = vld [vmem:[%s171 + $0xf4] sm:$0xf]
      %v246 = vld [vmem:[%s171 + $0xf8] sm:$0xf]
      %v247 = vld [vmem:[%s171 + $0xfc] sm:$0xf]
      %v248 = vld [vmem:[%s1] sm:$0xf]
      %v249 = vld [vmem:[%s1 + $0x4] sm:$0xf]
      %v250 = vld [vmem:[%s1 + $0x8] sm:$0xf]
      %v251 = vld [vmem:[%s1 + $0xc] sm:$0xf]
      %v252 = vld [vmem:[%s1 + $0x10] sm:$0xf]
      %v253 = vld [vmem:[%s1 + $0x14] sm:$0xf]
      %v254 = vld [vmem:[%s1 + $0x18] sm:$0xf]
      %v255 = vld [vmem:[%s1 + $0x1c] sm:$0xf]
      %v320 = vunpack.c.l.b16 %v184
      %v321 = vunpack.c.l.b16 %v185
      %v322 = vunpack.c.l.b16 %v186
      %v323 = vunpack.c.l.b16 %v187
      %v324 = vunpack.c.l.b16 %v188
      %v325 = vunpack.c.l.b16 %v189
      %v326 = vunpack.c.l.b16 %v190
      %v327 = vunpack.c.l.b16 %v191
      %v328 = vunpack.c.l.b16 %v192
      %v329 = vunpack.c.l.b16 %v193
      %v330 = vunpack.c.l.b16 %v194
      %v331 = vunpack.c.l.b16 %v195
      %v332 = vunpack.c.l.b16 %v196
      %v333 = vunpack.c.l.b16 %v197
      %v334 = vunpack.c.l.b16 %v198
      %v335 = vunpack.c.l.b16 %v199
      %v336 = vunpack.c.l.b16 %v200
      %v337 = vunpack.c.l.b16 %v201
      %v338 = vunpack.c.l.b16 %v202
      %v339 = vunpack.c.l.b16 %v203
      %v340 = vunpack.c.l.b16 %v204
      %v341 = vunpack.c.l.b16 %v205
      %v342 = vunpack.c.l.b16 %v206
      %v343 = vunpack.c.l.b16 %v207
      %v344 = vunpack.c.l.b16 %v208
      %v345 = vunpack.c.l.b16 %v209
      %v346 = vunpack.c.l.b16 %v210
      %v347 = vunpack.c.l.b16 %v211
      %v348 = vunpack.c.l.b16 %v212
      %v349 = vunpack.c.l.b16 %v213
      %v350 = vunpack.c.l.b16 %v214
      %v351 = vunpack.c.l.b16 %v215
      %v352 = vunpack.c.l.b16 %v216
      %v353 = vunpack.c.l.b16 %v217
      %v354 = vunpack.c.l.b16 %v218
      %v355 = vunpack.c.l.b16 %v219
      %v356 = vunpack.c.l.b16 %v220
      %v357 = vunpack.c.l.b16 %v221
      %v358 = vunpack.c.l.b16 %v222
      %v359 = vunpack.c.l.b16 %v223
      %v360 = vunpack.c.l.b16 %v224
      %v361 = vunpack.c.l.b16 %v225
      %v362 = vunpack.c.l.b16 %v226
      %v363 = vunpack.c.l.b16 %v227
      %v364 = vunpack.c.l.b16 %v228
      %v365 = vunpack.c.l.b16 %v229
      %v366 = vunpack.c.l.b16 %v230
      %v367 = vunpack.c.l.b16 %v231
      %v368 = vunpack.c.l.b16 %v232
      %v369 = vunpack.c.l.b16 %v233
      %v370 = vunpack.c.l.b16 %v234
      %v371 = vunpack.c.l.b16 %v235
      %v372 = vunpack.c.l.b16 %v236
      %v373 = vunpack.c.l.b16 %v237
      %v374 = vunpack.c.l.b16 %v238
      %v375 = vunpack.c.l.b16 %v239
      %v376 = vunpack.c.l.b16 %v240
      %v377 = vunpack.c.l.b16 %v241
      %v378 = vunpack.c.l.b16 %v242
      %v379 = vunpack.c.l.b16 %v243
      %v380 = vunpack.c.l.b16 %v244
      %v381 = vunpack.c.l.b16 %v245
      %v382 = vunpack.c.l.b16 %v246
      %v383 = vunpack.c.l.b16 %v247
      %v384 = vpack.c.b16 %v321, %v320
      %v385 = vpack.c.b16 %v323, %v322
      %v386 = vpack.c.b16 %v325, %v324
      %v387 = vpack.c.b16 %v327, %v326
      %v388 = vpack.c.b16 %v329, %v328
      %v389 = vpack.c.b16 %v331, %v330
      %v390 = vpack.c.b16 %v333, %v332
      %v391 = vpack.c.b16 %v335, %v334
      %v392 = vpack.c.b16 %v337, %v336
      %v393 = vpack.c.b16 %v339, %v338
      %v394 = vpack.c.b16 %v341, %v340
      %v395 = vpack.c.b16 %v343, %v342
      %v396 = vpack.c.b16 %v345, %v344
      %v397 = vpack.c.b16 %v347, %v346
      %v398 = vpack.c.b16 %v349, %v348
      %v399 = vpack.c.b16 %v351, %v350
      %v400 = vpack.c.b16 %v353, %v352
      %v401 = vpack.c.b16 %v355, %v354
      %v402 = vpack.c.b16 %v357, %v356
      %v403 = vpack.c.b16 %v359, %v358
      %v404 = vpack.c.b16 %v361, %v360
      %v405 = vpack.c.b16 %v363, %v362
      %v406 = vpack.c.b16 %v365, %v364
      %v407 = vpack.c.b16 %v367, %v366
      %v408 = vpack.c.b16 %v369, %v368
      %v409 = vpack.c.b16 %v371, %v370
      %v410 = vpack.c.b16 %v373, %v372
      %v411 = vpack.c.b16 %v375, %v374
      %v412 = vpack.c.b16 %v377, %v376
      %v413 = vpack.c.b16 %v379, %v378
      %v414 = vpack.c.b16 %v381, %v380
      %v415 = vpack.c.b16 %v383, %v382
      %v424 = vunpack.c.l.b16 %v248
      %v425 = vunpack.c.l.b16 %v249
      %v426 = vunpack.c.l.b16 %v250
      %v427 = vunpack.c.l.b16 %v251
      %v428 = vunpack.c.l.b16 %v252
      %v429 = vunpack.c.l.b16 %v253
      %v430 = vunpack.c.l.b16 %v254
      %v431 = vunpack.c.l.b16 %v255
      %v432 = vpack.c.b16 %v425, %v424
      %v433 = vpack.c.b16 %v427, %v426
      %v434 = vpack.c.b16 %v429, %v428
      %v435 = vpack.c.b16 %v431, %v430
      %vm440 = vcmask 523264
      %v442 = vsel %vm440, %v384, 0
      %v445 = vsel %vm440, %v385, 0
      %v448 = vsel %vm440, %v386, 0
      %v451 = vsel %vm440, %v387, 0
      %v454 = vsel %vm440, %v388, 0
      %v457 = vsel %vm440, %v389, 0
      %v460 = vsel %vm440, %v390, 0
      %v463 = vsel %vm440, %v391, 0
      %v466 = vsel %vm440, %v392, 0
      %v469 = vsel %vm440, %v393, 0
      %v472 = vsel %vm440, %v394, 0
      %v475 = vsel %vm440, %v395, 0
      %v478 = vsel %vm440, %v396, 0
      %v481 = vsel %vm440, %v397, 0
      %v484 = vsel %vm440, %v398, 0
      %v487 = vsel %vm440, %v399, 0
      %v490 = vsel %vm440, %v400, 0
      %v493 = vsel %vm440, %v401, 0
      %v496 = vsel %vm440, %v402, 0
      %v499 = vsel %vm440, %v403, 0
      %v502 = vsel %vm440, %v404, 0
      %v505 = vsel %vm440, %v405, 0
      %v508 = vsel %vm440, %v406, 0
      %v511 = vsel %vm440, %v407, 0
      %v514 = vsel %vm440, %v408, 0
      %v517 = vsel %vm440, %v409, 0
      %v520 = vsel %vm440, %v410, 0
      %v523 = vsel %vm440, %v411, 0
      %v526 = vsel %vm440, %v412, 0
      %v529 = vsel %vm440, %v413, 0
      %v532 = vsel %vm440, %v414, 0
      %v535 = vsel %vm440, %v415, 0
      %537 = vmatprep.subr.bf16.mxu0 0
      %538 = vmatpush1.bf16.msra.mxu0 %v432
      %539 = vmatprep.subr.bf16.mxu0 0
      %540 = vmatpush1.bf16.msra.mxu0 %v433
      %541 = vmatprep.subr.bf16.mxu0 0
      %542 = vmatpush1.bf16.msra.mxu0 %v434
      %543 = vmatprep.subr.bf16.mxu0 0
      %544 = vmatpush1.bf16.msra.mxu0 %v435
      %545 = vmatprep.subr.bf16.mxu0 0
      %546 = vmatpush1.bf16.msra.mxu0 0
      %547 = vmatprep.subr.bf16.mxu0 0
      %548 = vmatpush1.bf16.msra.mxu0 0
      %549 = vmatprep.subr.bf16.mxu0 0
      %550 = vmatpush1.bf16.msra.mxu0 0
      %551 = vmatprep.subr.bf16.mxu0 0
      %552 = vmatpush1.bf16.msra.mxu0 0
      %553 = vmatprep.subr.bf16.mxu0 0
      %554 = vmatpush1.bf16.msra.mxu0 0
      %555 = vmatprep.subr.bf16.mxu0 0
      %556 = vmatpush1.bf16.msra.mxu0 0
      %557 = vmatprep.subr.bf16.mxu0 0
      %558 = vmatpush1.bf16.msra.mxu0 0
      %559 = vmatprep.subr.bf16.mxu0 0
      %560 = vmatpush1.bf16.msra.mxu0 0
      %561 = vmatprep.subr.bf16.mxu0 0
      %562 = vmatpush1.bf16.msra.mxu0 0
      %563 = vmatprep.subr.bf16.mxu0 0
      %564 = vmatpush1.bf16.msra.mxu0 0
      %565 = vmatprep.subr.bf16.mxu0 0
      %566 = vmatpush1.bf16.msra.mxu0 0
      %567 = vmatprep.subr.bf16.mxu0 0
      %568 = vmatpush1.bf16.msra.mxu0 0
      %569 = vmatprep.mubr.bf16.mxu0 0
      %570 = vmatmul.mubr.bf16.gmra.mrb[0].mxu0 %v442
      %v571 = vpop.f32.mrb[0].mxu0
      %v572 = vadd.f32 0.0, %v571
      %v573 = vpop.f32.mrb[0].mxu0
      %v574 = vpop.f32.mrb[0].mxu0
      %v575 = vadd.f32 0.0, %v574
      %v576 = vpop.f32.mrb[0].mxu0
      %577 = vmatprep.mubr.bf16.mxu0 0
      %578 = vmatmul.mubr.bf16.gmra.mrb[0].mxu0 %v445
      %v579 = vpop.f32.mrb[0].mxu0
      %v580 = vadd.f32 0.0, %v579
      %v581 = vpop.f32.mrb[0].mxu0
      %v582 = vpop.f32.mrb[0].mxu0
      %v583 = vadd.f32 0.0, %v582
      %v584 = vpop.f32.mrb[0].mxu0
      %585 = vmatprep.mubr.bf16.mxu0 0
      %586 = vmatmul.mubr.bf16.gmra.mrb[0].mxu0 %v448
      %v587 = vpop.f32.mrb[0].mxu0
      %v588 = vadd.f32 0.0, %v587
      %v589 = vpop.f32.mrb[0].mxu0
      %v590 = vpop.f32.mrb[0].mxu0
      %v591 = vadd.f32 0.0, %v590
      %v592 = vpop.f32.mrb[0].mxu0
      %593 = vmatprep.mubr.bf16.mxu0 0
      %594 = vmatmul.mubr.bf16.gmra.mrb[0].mxu0 %v451
      %v595 = vpop.f32.mrb[0].mxu0
      %v596 = vadd.f32 0.0, %v595
      %v597 = vpop.f32.mrb[0].mxu0
      %v598 = vpop.f32.mrb[0].mxu0
      %v599 = vadd.f32 0.0, %v598
      %v600 = vpop.f32.mrb[0].mxu0
      %601 = vmatprep.mubr.bf16.mxu0 0
      %602 = vmatmul.mubr.bf16.gmra.mrb[0].mxu0 %v454
      %v603 = vpop.f32.mrb[0].mxu0
      %v604 = vadd.f32 0.0, %v603
      %v605 = vpop.f32.mrb[0].mxu0
      %v606 = vpop.f32.mrb[0].mxu0
      %v607 = vadd.f32 0.0, %v606
      %v608 = vpop.f32.mrb[0].mxu0
      %609 = vmatprep.mubr.bf16.mxu0 0
      %610 = vmatmul.mubr.bf16.gmra.mrb[0].mxu0 %v457
      %v611 = vpop.f32.mrb[0].mxu0
      %v612 = vadd.f32 0.0, %v611
      %v613 = vpop.f32.mrb[0].mxu0
      %v614 = vpop.f32.mrb[0].mxu0
      %v615 = vadd.f32 0.0, %v614
      %v616 = vpop.f32.mrb[0].mxu0
      %617 = vmatprep.mubr.bf16.mxu0 0
      %618 = vmatmul.mubr.bf16.gmra.mrb[0].mxu0 %v460
      %v619 = vpop.f32.mrb[0].mxu0
      %v620 = vadd.f32 0.0, %v619
      %v621 = vpop.f32.mrb[0].mxu0
      %v622 = vpop.f32.mrb[0].mxu0
      %v623 = vadd.f32 0.0, %v622
      %v624 = vpop.f32.mrb[0].mxu0
      %625 = vmatprep.mubr.bf16.mxu0 0
      %626 = vmatmul.mubr.bf16.gmra.mrb[0].mxu0 %v463
      %v627 = vpop.f32.mrb[0].mxu0
      %v628 = vadd.f32 0.0, %v627
      %v629 = vpop.f32.mrb[0].mxu0
      %v630 = vpop.f32.mrb[0].mxu0
      %v631 = vadd.f32 0.0, %v630
      %v632 = vpop.f32.mrb[0].mxu0
      %633 = vmatprep.mubr.bf16.mxu0 0
      %634 = vmatmul.mubr.bf16.gmra.mrb[0].mxu0 %v466
      %v635 = vpop.f32.mrb[0].mxu0
      %v636 = vadd.f32 0.0, %v635
      %v637 = vpop.f32.mrb[0].mxu0
      %v638 = vpop.f32.mrb[0].mxu0
      %v639 = vadd.f32 0.0, %v638
      %v640 = vpop.f32.mrb[0].mxu0
      %641 = vmatprep.mubr.bf16.mxu0 0
      %642 = vmatmul.mubr.bf16.gmra.mrb[0].mxu0 %v469
      %v643 = vpop.f32.mrb[0].mxu0
      %v644 = vadd.f32 0.0, %v643
      %v645 = vpop.f32.mrb[0].mxu0
      %v646 = vpop.f32.mrb[0].mxu0
      %v647 = vadd.f32 0.0, %v646
      %v648 = vpop.f32.mrb[0].mxu0
      %649 = vmatprep.mubr.bf16.mxu0 0
      %650 = vmatmul.mubr.bf16.gmra.mrb[0].mxu0 %v472
      %v651 = vpop.f32.mrb[0].mxu0
      %v652 = vadd.f32 0.0, %v651
      %v653 = vpop.f32.mrb[0].mxu0
      %v654 = vpop.f32.mrb[0].mxu0
      %v655 = vadd.f32 0.0, %v654
      %v656 = vpop.f32.mrb[0].mxu0
      %657 = vmatprep.mubr.bf16.mxu0 0
      %658 = vmatmul.mubr.bf16.gmra.mrb[0].mxu0 %v475
      %v659 = vpop.f32.mrb[0].mxu0
      %v660 = vadd.f32 0.0, %v659
      %v661 = vpop.f32.mrb[0].mxu0
      %v662 = vpop.f32.mrb[0].mxu0
      %v663 = vadd.f32 0.0, %v662
      %v664 = vpop.f32.mrb[0].mxu0
      %665 = vmatprep.mubr.bf16.mxu0 0
      %666 = vmatmul.mubr.bf16.gmra.mrb[0].mxu0 %v478
      %v667 = vpop.f32.mrb[0].mxu0
      %v668 = vadd.f32 0.0, %v667
      %v669 = vpop.f32.mrb[0].mxu0
      %v670 = vpop.f32.mrb[0].mxu0
      %v671 = vadd.f32 0.0, %v670
      %v672 = vpop.f32.mrb[0].mxu0
      %673 = vmatprep.mubr.bf16.mxu0 0
      %674 = vmatmul.mubr.bf16.gmra.mrb[0].mxu0 %v481
      %v675 = vpop.f32.mrb[0].mxu0
      %v676 = vadd.f32 0.0, %v675
      %v677 = vpop.f32.mrb[0].mxu0
      %v678 = vpop.f32.mrb[0].mxu0
      %v679 = vadd.f32 0.0, %v678
      %v680 = vpop.f32.mrb[0].mxu0
      %681 = vmatprep.mubr.bf16.mxu0 0
      %682 = vmatmul.mubr.bf16.gmra.mrb[0].mxu0 %v484
      %v683 = vpop.f32.mrb[0].mxu0
      %v684 = vadd.f32 0.0, %v683
      %v685 = vpop.f32.mrb[0].mxu0
      %v686 = vpop.f32.mrb[0].mxu0
      %v687 = vadd.f32 0.0, %v686
      %v688 = vpop.f32.mrb[0].mxu0
      %689 = vmatprep.mubr.bf16.mxu0 0
      %690 = vmatmul.mubr.bf16.gmra.mrb[0].mxu0 %v487
      %v691 = vpop.f32.mrb[0].mxu0
      %v692 = vadd.f32 0.0, %v691
      %v693 = vpop.f32.mrb[0].mxu0
      %v694 = vpop.f32.mrb[0].mxu0
      %v695 = vadd.f32 0.0, %v694
      %v696 = vpop.f32.mrb[0].mxu0
      %697 = vmatprep.mubr.bf16.mxu0 0
      %698 = vmatmul.mubr.bf16.gmra.mrb[0].mxu0 %v490
      %v699 = vpop.f32.mrb[0].mxu0
      %v700 = vadd.f32 0.0, %v699
      %v701 = vpop.f32.mrb[0].mxu0
      %v702 = vpop.f32.mrb[0].mxu0
      %v703 = vadd.f32 0.0, %v702
      %v704 = vpop.f32.mrb[0].mxu0
      %705 = vmatprep.mubr.bf16.mxu0 0
      %706 = vmatmul.mubr.bf16.gmra.mrb[0].mxu0 %v493
      %v707 = vpop.f32.mrb[0].mxu0
      %v708 = vadd.f32 0.0, %v707
      %v709 = vpop.f32.mrb[0].mxu0
      %v710 = vpop.f32.mrb[0].mxu0
      %v711 = vadd.f32 0.0, %v710
      %v712 = vpop.f32.mrb[0].mxu0
      %713 = vmatprep.mubr.bf16.mxu0 0
      %714 = vmatmul.mubr.bf16.gmra.mrb[0].mxu0 %v496
      %v715 = vpop.f32.mrb[0].mxu0
      %v716 = vadd.f32 0.0, %v715
      %v717 = vpop.f32.mrb[0].mxu0
      %v718 = vpop.f32.mrb[0].mxu0
      %v719 = vadd.f32 0.0, %v718
      %v720 = vpop.f32.mrb[0].mxu0
      %721 = vmatprep.mubr.bf16.mxu0 0
      %722 = vmatmul.mubr.bf16.gmra.mrb[0].mxu0 %v499
      %v723 = vpop.f32.mrb[0].mxu0
      %v724 = vadd.f32 0.0, %v723
      %v725 = vpop.f32.mrb[0].mxu0
      %v726 = vpop.f32.mrb[0].mxu0
      %v727 = vadd.f32 0.0, %v726
      %v728 = vpop.f32.mrb[0].mxu0
      %729 = vmatprep.mubr.bf16.mxu0 0
      %730 = vmatmul.mubr.bf16.gmra.mrb[0].mxu0 %v502
      %v731 = vpop.f32.mrb[0].mxu0
      %v732 = vadd.f32 0.0, %v731
      %v733 = vpop.f32.mrb[0].mxu0
      %v734 = vpop.f32.mrb[0].mxu0
      %v735 = vadd.f32 0.0, %v734
      %v736 = vpop.f32.mrb[0].mxu0
      %737 = vmatprep.mubr.bf16.mxu0 0
      %738 = vmatmul.mubr.bf16.gmra.mrb[0].mxu0 %v505
      %v739 = vpop.f32.mrb[0].mxu0
      %v740 = vadd.f32 0.0, %v739
      %v741 = vpop.f32.mrb[0].mxu0
      %v742 = vpop.f32.mrb[0].mxu0
      %v743 = vadd.f32 0.0, %v742
      %v744 = vpop.f32.mrb[0].mxu0
      %745 = vmatprep.mubr.bf16.mxu0 0
      %746 = vmatmul.mubr.bf16.gmra.mrb[0].mxu0 %v508
      %v747 = vpop.f32.mrb[0].mxu0
      %v748 = vadd.f32 0.0, %v747
      %v749 = vpop.f32.mrb[0].mxu0
      %v750 = vpop.f32.mrb[0].mxu0
      %v751 = vadd.f32 0.0, %v750
      %v752 = vpop.f32.mrb[0].mxu0
      %753 = vmatprep.mubr.bf16.mxu0 0
      %754 = vmatmul.mubr.bf16.gmra.mrb[0].mxu0 %v511
      %v755 = vpop.f32.mrb[0].mxu0
      %v756 = vadd.f32 0.0, %v755
      %v757 = vpop.f32.mrb[0].mxu0
      %v758 = vpop.f32.mrb[0].mxu0
      %v759 = vadd.f32 0.0, %v758
      %v760 = vpop.f32.mrb[0].mxu0
      %761 = vmatprep.mubr.bf16.mxu0 0
      %762 = vmatmul.mubr.bf16.gmra.mrb[0].mxu0 %v514
      %v763 = vpop.f32.mrb[0].mxu0
      %v764 = vadd.f32 0.0, %v763
      %v765 = vpop.f32.mrb[0].mxu0
      %v766 = vpop.f32.mrb[0].mxu0
      %v767 = vadd.f32 0.0, %v766
      %v768 = vpop.f32.mrb[0].mxu0
      %769 = vmatprep.mubr.bf16.mxu0 0
      %770 = vmatmul.mubr.bf16.gmra.mrb[0].mxu0 %v517
      %v771 = vpop.f32.mrb[0].mxu0
      %v772 = vadd.f32 0.0, %v771
      %v773 = vpop.f32.mrb[0].mxu0
      %v774 = vpop.f32.mrb[0].mxu0
      %v775 = vadd.f32 0.0, %v774
      %v776 = vpop.f32.mrb[0].mxu0
      %777 = vmatprep.mubr.bf16.mxu0 0
      %778 = vmatmul.mubr.bf16.gmra.mrb[0].mxu0 %v520
      %v779 = vpop.f32.mrb[0].mxu0
      %v780 = vadd.f32 0.0, %v779
      %v781 = vpop.f32.mrb[0].mxu0
      %v782 = vpop.f32.mrb[0].mxu0
      %v783 = vadd.f32 0.0, %v782
      %v784 = vpop.f32.mrb[0].mxu0
      %785 = vmatprep.mubr.bf16.mxu0 0
      %786 = vmatmul.mubr.bf16.gmra.mrb[0].mxu0 %v523
      %v787 = vpop.f32.mrb[0].mxu0
      %v788 = vadd.f32 0.0, %v787
      %v789 = vpop.f32.mrb[0].mxu0
      %v790 = vpop.f32.mrb[0].mxu0
      %v791 = vadd.f32 0.0, %v790
      %v792 = vpop.f32.mrb[0].mxu0
      %793 = vmatprep.mubr.bf16.mxu0 0
      %794 = vmatmul.mubr.bf16.gmra.mrb[0].mxu0 %v526
      %v795 = vpop.f32.mrb[0].mxu0
      %v796 = vadd.f32 0.0, %v795
      %v797 = vpop.f32.mrb[0].mxu0
      %v798 = vpop.f32.mrb[0].mxu0
      %v799 = vadd.f32 0.0, %v798
      %v800 = vpop.f32.mrb[0].mxu0
      %801 = vmatprep.mubr.bf16.mxu0 0
      %802 = vmatmul.mubr.bf16.gmra.mrb[0].mxu0 %v529
      %v803 = vpop.f32.mrb[0].mxu0
      %v804 = vadd.f32 0.0, %v803
      %v805 = vpop.f32.mrb[0].mxu0
      %v806 = vpop.f32.mrb[0].mxu0
      %v807 = vadd.f32 0.0, %v806
      %v808 = vpop.f32.mrb[0].mxu0
      %809 = vmatprep.mubr.bf16.mxu0 0
      %810 = vmatmul.mubr.bf16.gmra.mrb[0].mxu0 %v532
      %v811 = vpop.f32.mrb[0].mxu0
      %v812 = vadd.f32 0.0, %v811
      %v813 = vpop.f32.mrb[0].mxu0
      %v814 = vpop.f32.mrb[0].mxu0
      %v815 = vadd.f32 0.0, %v814
      %v816 = vpop.f32.mrb[0].mxu0
      %817 = vmatprep.mubr.bf16.mxu0 0
      %818 = vmatmul.mubr.bf16.gmra.mrb[0].mxu0 %v535
      %v819 = vpop.f32.mrb[0].mxu0
      %v820 = vadd.f32 0.0, %v819
      %v821 = vpop.f32.mrb[0].mxu0
      %v822 = vpop.f32.mrb[0].mxu0
      %v823 = vadd.f32 0.0, %v822
      %v824 = vpop.f32.mrb[0].mxu0
      %825 = vdwg.mxu0
      %vm826 = vcmp.ge.f32.partialorder %v572, 0.0
      %vm827 = vcmp.ge.f32.partialorder %v575, 0.0
      %vm828 = vcmp.ge.f32.partialorder %v580, 0.0
      %vm829 = vcmp.ge.f32.partialorder %v583, 0.0
      %vm830 = vcmp.ge.f32.partialorder %v588, 0.0
      %vm831 = vcmp.ge.f32.partialorder %v591, 0.0
      %vm832 = vcmp.ge.f32.partialorder %v596, 0.0
      %vm833 = vcmp.ge.f32.partialorder %v599, 0.0
      %vm834 = vcmp.ge.f32.partialorder %v604, 0.0
      %vm835 = vcmp.ge.f32.partialorder %v607, 0.0
      %vm836 = vcmp.ge.f32.partialorder %v612, 0.0
      %vm837 = vcmp.ge.f32.partialorder %v615, 0.0
      %vm838 = vcmp.ge.f32.partialorder %v620, 0.0
      %vm839 = vcmp.ge.f32.partialorder %v623, 0.0
      %vm840 = vcmp.ge.f32.partialorder %v628, 0.0
      %vm841 = vcmp.ge.f32.partialorder %v631, 0.0
      %vm842 = vcmp.ge.f32.partialorder %v636, 0.0
      %vm843 = vcmp.ge.f32.partialorder %v639, 0.0
      %vm844 = vcmp.ge.f32.partialorder %v644, 0.0
      %vm845 = vcmp.ge.f32.partialorder %v647, 0.0
      %vm846 = vcmp.ge.f32.partialorder %v652, 0.0
      %vm847 = vcmp.ge.f32.partialorder %v655, 0.0
      %vm848 = vcmp.ge.f32.partialorder %v660, 0.0
      %vm849 = vcmp.ge.f32.partialorder %v663, 0.0
      %vm850 = vcmp.ge.f32.partialorder %v668, 0.0
      %vm851 = vcmp.ge.f32.partialorder %v671, 0.0
      %vm852 = vcmp.ge.f32.partialorder %v676, 0.0
      %vm853 = vcmp.ge.f32.partialorder %v679, 0.0
      %vm854 = vcmp.ge.f32.partialorder %v684, 0.0
      %vm855 = vcmp.ge.f32.partialorder %v687, 0.0
      %vm856 = vcmp.ge.f32.partialorder %v692, 0.0
      %vm857 = vcmp.ge.f32.partialorder %v695, 0.0
      %vm858 = vcmp.ge.f32.partialorder %v700, 0.0
      %vm859 = vcmp.ge.f32.partialorder %v703, 0.0
      %vm860 = vcmp.ge.f32.partialorder %v708, 0.0
      %vm861 = vcmp.ge.f32.partialorder %v711, 0.0
      %vm862 = vcmp.ge.f32.partialorder %v716, 0.0
      %vm863 = vcmp.ge.f32.partialorder %v719, 0.0
      %vm864 = vcmp.ge.f32.partialorder %v724, 0.0
      %vm865 = vcmp.ge.f32.partialorder %v727, 0.0
      %vm866 = vcmp.ge.f32.partialorder %v732, 0.0
      %vm867 = vcmp.ge.f32.partialorder %v735, 0.0
      %vm868 = vcmp.ge.f32.partialorder %v740, 0.0
      %vm869 = vcmp.ge.f32.partialorder %v743, 0.0
      %vm870 = vcmp.ge.f32.partialorder %v748, 0.0
      %vm871 = vcmp.ge.f32.partialorder %v751, 0.0
      %vm872 = vcmp.ge.f32.partialorder %v756, 0.0
      %vm873 = vcmp.ge.f32.partialorder %v759, 0.0
      %vm874 = vcmp.ge.f32.partialorder %v764, 0.0
      %vm875 = vcmp.ge.f32.partialorder %v767, 0.0
      %vm876 = vcmp.ge.f32.partialorder %v772, 0.0
      %vm877 = vcmp.ge.f32.partialorder %v775, 0.0
      %vm878 = vcmp.ge.f32.partialorder %v780, 0.0
      %vm879 = vcmp.ge.f32.partialorder %v783, 0.0
      %vm880 = vcmp.ge.f32.partialorder %v788, 0.0
      %vm881 = vcmp.ge.f32.partialorder %v791, 0.0
      %vm882 = vcmp.ge.f32.partialorder %v796, 0.0
      %vm883 = vcmp.ge.f32.partialorder %v799, 0.0
      %vm884 = vcmp.ge.f32.partialorder %v804, 0.0
      %vm885 = vcmp.ge.f32.partialorder %v807, 0.0
      %vm886 = vcmp.ge.f32.partialorder %v812, 0.0
      %vm887 = vcmp.ge.f32.partialorder %v815, 0.0
      %vm888 = vcmp.ge.f32.partialorder %v820, 0.0
      %vm889 = vcmp.ge.f32.partialorder %v823, 0.0
      %v890 = vmul.f32 %v572, 0.2
      %v891 = vmul.f32 %v575, 0.2
      %v892 = vmul.f32 %v580, 0.2
      %v893 = vmul.f32 %v583, 0.2
      %v894 = vmul.f32 %v588, 0.2
      %v895 = vmul.f32 %v591, 0.2
      %v896 = vmul.f32 %v596, 0.2
      %v897 = vmul.f32 %v599, 0.2
      %v898 = vmul.f32 %v604, 0.2
      %v899 = vmul.f32 %v607, 0.2
      %v900 = vmul.f32 %v612, 0.2
      %v901 = vmul.f32 %v615, 0.2
      %v902 = vmul.f32 %v620, 0.2
      %v903 = vmul.f32 %v623, 0.2
      %v904 = vmul.f32 %v628, 0.2
      %v905 = vmul.f32 %v631, 0.2
      %v906 = vmul.f32 %v636, 0.2
      %v907 = vmul.f32 %v639, 0.2
      %v908 = vmul.f32 %v644, 0.2
      %v909 = vmul.f32 %v647, 0.2
      %v910 = vmul.f32 %v652, 0.2
      %v911 = vmul.f32 %v655, 0.2
      %v912 = vmul.f32 %v660, 0.2
      %v913 = vmul.f32 %v663, 0.2
      %v914 = vmul.f32 %v668, 0.2
      %v915 = vmul.f32 %v671, 0.2
      %v916 = vmul.f32 %v676, 0.2
      %v917 = vmul.f32 %v679, 0.2
      %v918 = vmul.f32 %v684, 0.2
      %v919 = vmul.f32 %v687, 0.2
      %v920 = vmul.f32 %v692, 0.2
      %v921 = vmul.f32 %v695, 0.2
      %v922 = vmul.f32 %v700, 0.2
      %v923 = vmul.f32 %v703, 0.2
      %v924 = vmul.f32 %v708, 0.2
      %v925 = vmul.f32 %v711, 0.2
      %v926 = vmul.f32 %v716, 0.2
      %v927 = vmul.f32 %v719, 0.2
      %v928 = vmul.f32 %v724, 0.2
      %v929 = vmul.f32 %v727, 0.2
      %v930 = vmul.f32 %v732, 0.2
      %v931 = vmul.f32 %v735, 0.2
      %v932 = vmul.f32 %v740, 0.2
      %v933 = vmul.f32 %v743, 0.2
      %v934 = vmul.f32 %v748, 0.2
      %v935 = vmul.f32 %v751, 0.2
      %v936 = vmul.f32 %v756, 0.2
      %v937 = vmul.f32 %v759, 0.2
      %v938 = vmul.f32 %v764, 0.2
      %v939 = vmul.f32 %v767, 0.2
      %v940 = vmul.f32 %v772, 0.2
      %v941 = vmul.f32 %v775, 0.2
      %v942 = vmul.f32 %v780, 0.2
      %v943 = vmul.f32 %v783, 0.2
      %v944 = vmul.f32 %v788, 0.2
      %v945 = vmul.f32 %v791, 0.2
      %v946 = vmul.f32 %v796, 0.2
      %v947 = vmul.f32 %v799, 0.2
      %v948 = vmul.f32 %v804, 0.2
      %v949 = vmul.f32 %v807, 0.2
      %v950 = vmul.f32 %v812, 0.2
      %v951 = vmul.f32 %v815, 0.2
      %v952 = vmul.f32 %v820, 0.2
      %v953 = vmul.f32 %v823, 0.2
      %v954 = vsel %vm826, %v572, %v890
      %v955 = vsel %vm827, %v575, %v891
      %v956 = vsel %vm828, %v580, %v892
      %v957 = vsel %vm829, %v583, %v893
      %v958 = vsel %vm830, %v588, %v894
      %v959 = vsel %vm831, %v591, %v895
      %v960 = vsel %vm832, %v596, %v896
      %v961 = vsel %vm833, %v599, %v897
      %v962 = vsel %vm834, %v604, %v898
      %v963 = vsel %vm835, %v607, %v899
      %v964 = vsel %vm836, %v612, %v900
      %v965 = vsel %vm837, %v615, %v901
      %v966 = vsel %vm838, %v620, %v902
      %v967 = vsel %vm839, %v623, %v903
      %v968 = vsel %vm840, %v628, %v904
      %v969 = vsel %vm841, %v631, %v905
      %v970 = vsel %vm842, %v636, %v906
      %v971 = vsel %vm843, %v639, %v907
      %v972 = vsel %vm844, %v644, %v908
      %v973 = vsel %vm845, %v647, %v909
      %v974 = vsel %vm846, %v652, %v910
      %v975 = vsel %vm847, %v655, %v911
      %v976 = vsel %vm848, %v660, %v912
      %v977 = vsel %vm849, %v663, %v913
      %v978 = vsel %vm850, %v668, %v914
      %v979 = vsel %vm851, %v671, %v915
      %v980 = vsel %vm852, %v676, %v916
      %v981 = vsel %vm853, %v679, %v917
      %v982 = vsel %vm854, %v684, %v918
      %v983 = vsel %vm855, %v687, %v919
      %v984 = vsel %vm856, %v692, %v920
      %v985 = vsel %vm857, %v695, %v921
      %v986 = vsel %vm858, %v700, %v922
      %v987 = vsel %vm859, %v703, %v923
      %v988 = vsel %vm860, %v708, %v924
      %v989 = vsel %vm861, %v711, %v925
      %v990 = vsel %vm862, %v716, %v926
      %v991 = vsel %vm863, %v719, %v927
      %v992 = vsel %vm864, %v724, %v928
      %v993 = vsel %vm865, %v727, %v929
      %v994 = vsel %vm866, %v732, %v930
      %v995 = vsel %vm867, %v735, %v931
      %v996 = vsel %vm868, %v740, %v932
      %v997 = vsel %vm869, %v743, %v933
      %v998 = vsel %vm870, %v748, %v934
      %v999 = vsel %vm871, %v751, %v935
      %v1000 = vsel %vm872, %v756, %v936
      %v1001 = vsel %vm873, %v759, %v937
      %v1002 = vsel %vm874, %v764, %v938
      %v1003 = vsel %vm875, %v767, %v939
      %v1004 = vsel %vm876, %v772, %v940
      %v1005 = vsel %vm877, %v775, %v941
      %v1006 = vsel %vm878, %v780, %v942
      %v1007 = vsel %vm879, %v783, %v943
      %v1008 = vsel %vm880, %v788, %v944
      %v1009 = vsel %vm881, %v791, %v945
      %v1010 = vsel %vm882, %v796, %v946
      %v1011 = vsel %vm883, %v799, %v947
      %v1012 = vsel %vm884, %v804, %v948
      %v1013 = vsel %vm885, %v807, %v949
      %v1014 = vsel %vm886, %v812, %v950
      %v1015 = vsel %vm887, %v815, %v951
      %v1016 = vsel %vm888, %v820, %v952
      %v1017 = vsel %vm889, %v823, %v953
      %v1018 = vpack.c.bf16 %v955, %v954
      %v1019 = vpack.c.bf16 %v957, %v956
      %v1020 = vpack.c.bf16 %v959, %v958
      %v1021 = vpack.c.bf16 %v961, %v960
      %v1022 = vpack.c.bf16 %v963, %v962
      %v1023 = vpack.c.bf16 %v965, %v964
      %v1024 = vpack.c.bf16 %v967, %v966
      %v1025 = vpack.c.bf16 %v969, %v968
      %v1026 = vpack.c.bf16 %v971, %v970
      %v1027 = vpack.c.bf16 %v973, %v972
      %v1028 = vpack.c.bf16 %v975, %v974
      %v1029 = vpack.c.bf16 %v977, %v976
      %v1030 = vpack.c.bf16 %v979, %v978
      %v1031 = vpack.c.bf16 %v981, %v980
      %v1032 = vpack.c.bf16 %v983, %v982
      %v1033 = vpack.c.bf16 %v985, %v984
      %v1034 = vpack.c.bf16 %v987, %v986
      %v1035 = vpack.c.bf16 %v989, %v988
      %v1036 = vpack.c.bf16 %v991, %v990
      %v1037 = vpack.c.bf16 %v993, %v992
      %v1038 = vpack.c.bf16 %v995, %v994
      %v1039 = vpack.c.bf16 %v997, %v996
      %v1040 = vpack.c.bf16 %v999, %v998
      %v1041 = vpack.c.bf16 %v1001, %v1000
      %v1042 = vpack.c.bf16 %v1003, %v1002
      %v1043 = vpack.c.bf16 %v1005, %v1004
      %v1044 = vpack.c.bf16 %v1007, %v1006
      %v1045 = vpack.c.bf16 %v1009, %v1008
      %v1046 = vpack.c.bf16 %v1011, %v1010
      %v1047 = vpack.c.bf16 %v1013, %v1012
      %v1048 = vpack.c.bf16 %v1015, %v1014
      %v1049 = vpack.c.bf16 %v1017, %v1016
      %v1082 = vunpack.c.l.b16 %v1018
      %v1083 = vunpack.c.h.b16 %v1018
      %v1084 = vunpack.c.l.b16 %v1019
      %v1085 = vunpack.c.h.b16 %v1019
      %v1086 = vunpack.c.l.b16 %v1020
      %v1087 = vunpack.c.h.b16 %v1020
      %v1088 = vunpack.c.l.b16 %v1021
      %v1089 = vunpack.c.h.b16 %v1021
      %v1090 = vunpack.c.l.b16 %v1022
      %v1091 = vunpack.c.h.b16 %v1022
      %v1092 = vunpack.c.l.b16 %v1023
      %v1093 = vunpack.c.h.b16 %v1023
      %v1094 = vunpack.c.l.b16 %v1024
      %v1095 = vunpack.c.h.b16 %v1024
      %v1096 = vunpack.c.l.b16 %v1025
      %v1097 = vunpack.c.h.b16 %v1025
      %v1098 = vunpack.c.l.b16 %v1026
      %v1099 = vunpack.c.h.b16 %v1026
      %v1100 = vunpack.c.l.b16 %v1027
      %v1101 = vunpack.c.h.b16 %v1027
      %v1102 = vunpack.c.l.b16 %v1028
      %v1103 = vunpack.c.h.b16 %v1028
      %v1104 = vunpack.c.l.b16 %v1029
      %v1105 = vunpack.c.h.b16 %v1029
      %v1106 = vunpack.c.l.b16 %v1030
      %v1107 = vunpack.c.h.b16 %v1030
      %v1108 = vunpack.c.l.b16 %v1031
      %v1109 = vunpack.c.h.b16 %v1031
      %v1110 = vunpack.c.l.b16 %v1032
      %v1111 = vunpack.c.h.b16 %v1032
      %v1112 = vunpack.c.l.b16 %v1033
      %v1113 = vunpack.c.h.b16 %v1033
      %v1114 = vunpack.c.l.b16 %v1034
      %v1115 = vunpack.c.h.b16 %v1034
      %v1116 = vunpack.c.l.b16 %v1035
      %v1117 = vunpack.c.h.b16 %v1035
      %v1118 = vunpack.c.l.b16 %v1036
      %v1119 = vunpack.c.h.b16 %v1036
      %v1120 = vunpack.c.l.b16 %v1037
      %v1121 = vunpack.c.h.b16 %v1037
      %v1122 = vunpack.c.l.b16 %v1038
      %v1123 = vunpack.c.h.b16 %v1038
      %v1124 = vunpack.c.l.b16 %v1039
      %v1125 = vunpack.c.h.b16 %v1039
      %v1126 = vunpack.c.l.b16 %v1040
      %v1127 = vunpack.c.h.b16 %v1040
      %v1128 = vunpack.c.l.b16 %v1041
      %v1129 = vunpack.c.h.b16 %v1041
      %v1130 = vunpack.c.l.b16 %v1042
      %v1131 = vunpack.c.h.b16 %v1042
      %v1132 = vunpack.c.l.b16 %v1043
      %v1133 = vunpack.c.h.b16 %v1043
      %v1134 = vunpack.c.l.b16 %v1044
      %v1135 = vunpack.c.h.b16 %v1044
      %v1136 = vunpack.c.l.b16 %v1045
      %v1137 = vunpack.c.h.b16 %v1045
      %v1138 = vunpack.c.l.b16 %v1046
      %v1139 = vunpack.c.h.b16 %v1046
      %v1140 = vunpack.c.l.b16 %v1047
      %v1141 = vunpack.c.h.b16 %v1047
      %v1142 = vunpack.c.l.b16 %v1048
      %v1143 = vunpack.c.h.b16 %v1048
      %v1144 = vunpack.c.l.b16 %v1049
      %v1145 = vunpack.c.h.b16 %v1049
      %v1146 = vpack.c.b16 %v1082, %v1082
      %v1147 = vpack.c.b16 %v1083, %v1083
      %v1148 = vpack.c.b16 %v1084, %v1084
      %v1149 = vpack.c.b16 %v1085, %v1085
      %v1150 = vpack.c.b16 %v1086, %v1086
      %v1151 = vpack.c.b16 %v1087, %v1087
      %v1152 = vpack.c.b16 %v1088, %v1088
      %v1153 = vpack.c.b16 %v1089, %v1089
      %v1154 = vpack.c.b16 %v1090, %v1090
      %v1155 = vpack.c.b16 %v1091, %v1091
      %v1156 = vpack.c.b16 %v1092, %v1092
      %v1157 = vpack.c.b16 %v1093, %v1093
      %v1158 = vpack.c.b16 %v1094, %v1094
      %v1159 = vpack.c.b16 %v1095, %v1095
      %v1160 = vpack.c.b16 %v1096, %v1096
      %v1161 = vpack.c.b16 %v1097, %v1097
      %v1162 = vpack.c.b16 %v1098, %v1098
      %v1163 = vpack.c.b16 %v1099, %v1099
      %v1164 = vpack.c.b16 %v1100, %v1100
      %v1165 = vpack.c.b16 %v1101, %v1101
      %v1166 = vpack.c.b16 %v1102, %v1102
      %v1167 = vpack.c.b16 %v1103, %v1103
      %v1168 = vpack.c.b16 %v1104, %v1104
      %v1169 = vpack.c.b16 %v1105, %v1105
      %v1170 = vpack.c.b16 %v1106, %v1106
      %v1171 = vpack.c.b16 %v1107, %v1107
      %v1172 = vpack.c.b16 %v1108, %v1108
      %v1173 = vpack.c.b16 %v1109, %v1109
      %v1174 = vpack.c.b16 %v1110, %v1110
      %v1175 = vpack.c.b16 %v1111, %v1111
      %v1176 = vpack.c.b16 %v1112, %v1112
      %v1177 = vpack.c.b16 %v1113, %v1113
      %v1178 = vpack.c.b16 %v1114, %v1114
      %v1179 = vpack.c.b16 %v1115, %v1115
      %v1180 = vpack.c.b16 %v1116, %v1116
      %v1181 = vpack.c.b16 %v1117, %v1117
      %v1182 = vpack.c.b16 %v1118, %v1118
      %v1183 = vpack.c.b16 %v1119, %v1119
      %v1184 = vpack.c.b16 %v1120, %v1120
      %v1185 = vpack.c.b16 %v1121, %v1121
      %v1186 = vpack.c.b16 %v1122, %v1122
      %v1187 = vpack.c.b16 %v1123, %v1123
      %v1188 = vpack.c.b16 %v1124, %v1124
      %v1189 = vpack.c.b16 %v1125, %v1125
      %v1190 = vpack.c.b16 %v1126, %v1126
      %v1191 = vpack.c.b16 %v1127, %v1127
      %v1192 = vpack.c.b16 %v1128, %v1128
      %v1193 = vpack.c.b16 %v1129, %v1129
      %v1194 = vpack.c.b16 %v1130, %v1130
      %v1195 = vpack.c.b16 %v1131, %v1131
      %v1196 = vpack.c.b16 %v1132, %v1132
      %v1197 = vpack.c.b16 %v1133, %v1133
      %v1198 = vpack.c.b16 %v1134, %v1134
      %v1199 = vpack.c.b16 %v1135, %v1135
      %v1200 = vpack.c.b16 %v1136, %v1136
      %v1201 = vpack.c.b16 %v1137, %v1137
      %v1202 = vpack.c.b16 %v1138, %v1138
      %v1203 = vpack.c.b16 %v1139, %v1139
      %v1204 = vpack.c.b16 %v1140, %v1140
      %v1205 = vpack.c.b16 %v1141, %v1141
      %v1206 = vpack.c.b16 %v1142, %v1142
      %v1207 = vpack.c.b16 %v1143, %v1143
      %v1208 = vpack.c.b16 %v1144, %v1144
      %v1209 = vpack.c.b16 %v1145, %v1145
      %1274 = vst [vmem:[%s181] sm:$0xf] %v1146
      %1275 = vst [vmem:[%s181 + $0x4] sm:$0xf] %v1147
      %1276 = vst [vmem:[%s181 + $0x8] sm:$0xf] %v1148
      %1277 = vst [vmem:[%s181 + $0xc] sm:$0xf] %v1149
      %1278 = vst [vmem:[%s181 + $0x10] sm:$0xf] %v1150
      %1279 = vst [vmem:[%s181 + $0x14] sm:$0xf] %v1151
      %1280 = vst [vmem:[%s181 + $0x18] sm:$0xf] %v1152
      %1281 = vst [vmem:[%s181 + $0x1c] sm:$0xf] %v1153
      %1282 = vst [vmem:[%s181 + $0x20] sm:$0xf] %v1154
      %1283 = vst [vmem:[%s181 + $0x24] sm:$0xf] %v1155
      %1284 = vst [vmem:[%s181 + $0x28] sm:$0xf] %v1156
      %1285 = vst [vmem:[%s181 + $0x2c] sm:$0xf] %v1157
      %1286 = vst [vmem:[%s181 + $0x30] sm:$0xf] %v1158
      %1287 = vst [vmem:[%s181 + $0x34] sm:$0xf] %v1159
      %1288 = vst [vmem:[%s181 + $0x38] sm:$0xf] %v1160
      %1289 = vst [vmem:[%s181 + $0x3c] sm:$0xf] %v1161
      %1290 = vst [vmem:[%s181 + $0x40] sm:$0xf] %v1162
      %1291 = vst [vmem:[%s181 + $0x44] sm:$0xf] %v1163
      %1292 = vst [vmem:[%s181 + $0x48] sm:$0xf] %v1164
      %1293 = vst [vmem:[%s181 + $0x4c] sm:$0xf] %v1165
      %1294 = vst [vmem:[%s181 + $0x50] sm:$0xf] %v1166
      %1295 = vst [vmem:[%s181 + $0x54] sm:$0xf] %v1167
      %1296 = vst [vmem:[%s181 + $0x58] sm:$0xf] %v1168
      %1297 = vst [vmem:[%s181 + $0x5c] sm:$0xf] %v1169
      %1298 = vst [vmem:[%s181 + $0x60] sm:$0xf] %v1170
      %1299 = vst [vmem:[%s181 + $0x64] sm:$0xf] %v1171
      %1300 = vst [vmem:[%s181 + $0x68] sm:$0xf] %v1172
      %1301 = vst [vmem:[%s181 + $0x6c] sm:$0xf] %v1173
      %1302 = vst [vmem:[%s181 + $0x70] sm:$0xf] %v1174
      %1303 = vst [vmem:[%s181 + $0x74] sm:$0xf] %v1175
      %1304 = vst [vmem:[%s181 + $0x78] sm:$0xf] %v1176
      %1305 = vst [vmem:[%s181 + $0x7c] sm:$0xf] %v1177
      %1306 = vst [vmem:[%s181 + $0x80] sm:$0xf] %v1178
      %1307 = vst [vmem:[%s181 + $0x84] sm:$0xf] %v1179
      %1308 = vst [vmem:[%s181 + $0x88] sm:$0xf] %v1180
      %1309 = vst [vmem:[%s181 + $0x8c] sm:$0xf] %v1181
      %1310 = vst [vmem:[%s181 + $0x90] sm:$0xf] %v1182
      %1311 = vst [vmem:[%s181 + $0x94] sm:$0xf] %v1183
      %1312 = vst [vmem:[%s181 + $0x98] sm:$0xf] %v1184
      %1313 = vst [vmem:[%s181 + $0x9c] sm:$0xf] %v1185
      %1314 = vst [vmem:[%s181 + $0xa0] sm:$0xf] %v1186
      %1315 = vst [vmem:[%s181 + $0xa4] sm:$0xf] %v1187
      %1316 = vst [vmem:[%s181 + $0xa8] sm:$0xf] %v1188
      %1317 = vst [vmem:[%s181 + $0xac] sm:$0xf] %v1189
      %1318 = vst [vmem:[%s181 + $0xb0] sm:$0xf] %v1190
      %1319 = vst [vmem:[%s181 + $0xb4] sm:$0xf] %v1191
      %1320 = vst [vmem:[%s181 + $0xb8] sm:$0xf] %v1192
      %1321 = vst [vmem:[%s181 + $0xbc] sm:$0xf] %v1193
      %1322 = vst [vmem:[%s181 + $0xc0] sm:$0xf] %v1194
      %1323 = vst [vmem:[%s181 + $0xc4] sm:$0xf] %v1195
      %1324 = vst [vmem:[%s181 + $0xc8] sm:$0xf] %v1196
      %1325 = vst [vmem:[%s181 + $0xcc] sm:$0xf] %v1197
      %1326 = vst [vmem:[%s181 + $0xd0] sm:$0xf] %v1198
      %1327 = vst [vmem:[%s181 + $0xd4] sm:$0xf] %v1199
      %1328 = vst [vmem:[%s181 + $0xd8] sm:$0xf] %v1200
      %1329 = vst [vmem:[%s181 + $0xdc] sm:$0xf] %v1201
      %1330 = vst [vmem:[%s181 + $0xe0] sm:$0xf] %v1202
      %1331 = vst [vmem:[%s181 + $0xe4] sm:$0xf] %v1203
      %1332 = vst [vmem:[%s181 + $0xe8] sm:$0xf] %v1204
      %1333 = vst [vmem:[%s181 + $0xec] sm:$0xf] %v1205
      %1334 = vst [vmem:[%s181 + $0xf0] sm:$0xf] %v1206
      %1335 = vst [vmem:[%s181 + $0xf4] sm:$0xf] %v1207
      %1336 = vst [vmem:[%s181 + $0xf8] sm:$0xf] %v1208
      %1337 = vst [vmem:[%s181 + $0xfc] sm:$0xf] %v1209
      %s1338 = smul.u32 64, %s18
      %p1339 = scmp.lt.s32.totalorder %s17, 1
      %s1340 = scalar_select %p1339, %s17, 1
      %p1341 = scmp.lt.s32.totalorder %s1338, 127
      %s1342 = scalar_select %p1341, %s1338, 127
      %s1343 = smul.addr %s1340, 128
      %s1344 = sadd.s32 %s1342, %s1343
      %s1345 = smul.addr %s1344, 4
      %s1346 = scalar_lea.vmem %s2, %s1345
      // Predicated region
      $region29: #{discriminator_forward.4} parent=27 // pred_check
        %p1347 = pneg %p94
      $region30: #{discriminator_forward.4} parent=27 // pred_check_branch
        %1349 = sbr.rel (%p1347) target = $region32
      $region31: #{discriminator_forward.4} parent=27 // pred_region
        %s1350 = smul.u32 64, %s18
      $region32: #{discriminator_forward.4} parent=27 // pred_fallthru
        _
    $region28: #{discriminator_forward.4} parent=5 // pred_fallthru
      _
    %p1351 = scmp.le.s32.totalorder 2, %s8
    // Predicated region
    $region33: #{discriminator_forward.4} parent=5 // pred_check
      %p1352 = pneg %p1351
    $region34: #{discriminator_forward.4} parent=5 // pred_check_branch
      %1354 = sbr.rel (%p1352) target = $region36
    $region35: #{discriminator_forward.4} parent=5 // pred_region
      %s1355 = ssub.s32 %s8, 2
      // Predicated region
      $region37: #{discriminator_forward.4} parent=35 // pred_check
        %p1356 = pneg %p100
      $region38: #{discriminator_forward.4} parent=35 // pred_check_branch
        %1358 = sbr.rel (%p1356) target = $region40
      $region39: #{discriminator_forward.4} parent=35 // pred_region
        %s1359 = smul.u32 64, %s20
        %p1360 = scmp.lt.s32.totalorder %s19, 1
        %s1361 = scalar_select %p1360, %s19, 1
        %p1362 = scmp.lt.s32.totalorder %s1359, 127
        %s1363 = scalar_select %p1362, %s1359, 127
        %s1364 = smul.addr %s1361, 128
        %s1365 = sadd.s32 %s1363, %s1364
        %s1366 = smul.addr %s1365, 4
        %s1367 = scalar_lea.vmem %s2, %s1366
      $region40: #{discriminator_forward.4} parent=35 // pred_fallthru
        _
    $region36: #{discriminator_forward.4} parent=5 // pred_fallthru
      _
  $region6: #{discriminator_forward.4} parent=0 // loop_footer
    %s12 = sadd.s32 1, %s8
  $region7: #{discriminator_forward.4} parent=0 // loop_footer_branch
    %7 = sbr.rel target = $region3
  $region8: #{discriminator_forward.4} parent=0 // loop_exit
    _

// kernel: discriminator_forward.5
$region0: #{discriminator_forward.5}
  #allocation0 [shape = 'u32[]', space=smem, size = 0x4, offset = 0x4, fixed_abs, tag = 'smem constant byte address 0x4 - core index']
  #allocation1 [shape = 'u32[144,128]{1,0:T(1,128)}', space=vmem, size = 0x12000, scoped, tag = 'internal scratch']
  %s0 = inlined_call_operand.vmem [shape: bf16[512,128], index: 0, kind: input, shape index: {}]
  %s1 = inlined_call_operand.vmem [shape: bf16[128,128], index: 1, kind: input, shape index: {}]
  %s2 = inlined_call_operand.vmem [shape: f32[1,128], index: 2, kind: input, shape index: {}]
  %s3 = inlined_call_operand.vmem [shape: f32[1,128], index: 3, kind: input, shape index: {}]
  %s4 = inlined_call_operand.vmem [shape: bf16[512,128], index: 4, kind: output, shape index: {}]
  %s5 = sld [smem:[#allocation0]]
  $region26: #{discriminator_forward.5} parent=0
    _
  %s7 = ssub.s32 1, %s5
  %s8 = scalar_select 0, %s7, %s5
  // Predicated region
  $region2: #{discriminator_forward.5} parent=0 // pred_check
    _
  $region3: #{discriminator_forward.5} parent=0 // pred_check_branch
    %10 = sbr.rel (0) target = $region5
  $region4: #{discriminator_forward.5} parent=0 // pred_region
    _
  $region5: #{discriminator_forward.5} parent=0 // pred_fallthru
    _
  // Predicated region
  $region6: #{discriminator_forward.5} parent=0 // pred_check
    _
  $region7: #{discriminator_forward.5} parent=0 // pred_check_branch
    %12 = sbr.rel (0) target = $region9
  $region8: #{discriminator_forward.5} parent=0 // pred_region
    _
  $region9: #{discriminator_forward.5} parent=0 // pred_fallthru
    _
  // Predicated region
  $region10: #{discriminator_forward.5} parent=0 // pred_check
    _
  $region11: #{discriminator_forward.5} parent=0 // pred_check_branch
    %14 = sbr.rel (0) target = $region13
  $region12: #{discriminator_forward.5} parent=0 // pred_region
    _
  $region13: #{discriminator_forward.5} parent=0 // pred_fallthru
    _
  // Predicated region
  $region14: #{discriminator_forward.5} parent=0 // pred_check
    _
  $region15: #{discriminator_forward.5} parent=0 // pred_check_branch
    %16 = sbr.rel (0) target = $region17
  $region16: #{discriminator_forward.5} parent=0 // pred_region
    _
  $region17: #{discriminator_forward.5} parent=0 // pred_fallthru
    _
  %v18 = vld [vmem:[%s0] sm:$0xf]
  %v19 = vld [vmem:[%s0 + $0x4] sm:$0xf]
  %v20 = vld [vmem:[%s0 + $0x8] sm:$0xf]
  %v21 = vld [vmem:[%s0 + $0xc] sm:$0xf]
  %v22 = vld [vmem:[%s0 + $0x10] sm:$0xf]
  %v23 = vld [vmem:[%s0 + $0x14] sm:$0xf]
  %v24 = vld [vmem:[%s0 + $0x18] sm:$0xf]
  %v25 = vld [vmem:[%s0 + $0x1c] sm:$0xf]
  %v26 = vld [vmem:[%s0 + $0x20] sm:$0xf]
  %v27 = vld [vmem:[%s0 + $0x24] sm:$0xf]
  %v28 = vld [vmem:[%s0 + $0x28] sm:$0xf]
  %v29 = vld [vmem:[%s0 + $0x2c] sm:$0xf]
  %v30 = vld [vmem:[%s0 + $0x30] sm:$0xf]
  %v31 = vld [vmem:[%s0 + $0x34] sm:$0xf]
  %v32 = vld [vmem:[%s0 + $0x38] sm:$0xf]
  %v33 = vld [vmem:[%s0 + $0x3c] sm:$0xf]
  %v34 = vld [vmem:[%s0 + $0x40] sm:$0xf]
  %v35 = vld [vmem:[%s0 + $0x44] sm:$0xf]
  %v36 = vld [vmem:[%s0 + $0x48] sm:$0xf]
  %v37 = vld [vmem:[%s0 + $0x4c] sm:$0xf]
  %v38 = vld [vmem:[%s0 + $0x50] sm:$0xf]
  %v39 = vld [vmem:[%s0 + $0x54] sm:$0xf]
  %v40 = vld [vmem:[%s0 + $0x58] sm:$0xf]
  %v41 = vld [vmem:[%s0 + $0x5c] sm:$0xf]
  %v42 = vld [vmem:[%s0 + $0x60] sm:$0xf]
  %v43 = vld [vmem:[%s0 + $0x64] sm:$0xf]
  %v44 = vld [vmem:[%s0 + $0x68] sm:$0xf]
  %v45 = vld [vmem:[%s0 + $0x6c] sm:$0xf]
  %v46 = vld [vmem:[%s0 + $0x70] sm:$0xf]
  %v47 = vld [vmem:[%s0 + $0x74] sm:$0xf]
  %v48 = vld [vmem:[%s0 + $0x78] sm:$0xf]
  %v49 = vld [vmem:[%s0 + $0x7c] sm:$0xf]
  %v50 = vld [vmem:[%s0 + $0x80] sm:$0xf]
  %v51 = vld [vmem:[%s0 + $0x84] sm:$0xf]
  %v52 = vld [vmem:[%s0 + $0x88] sm:$0xf]
  %v53 = vld [vmem:[%s0 + $0x8c] sm:$0xf]
  %v54 = vld [vmem:[%s0 + $0x90] sm:$0xf]
  %v55 = vld [vmem:[%s0 + $0x94] sm:$0xf]
  %v56 = vld [vmem:[%s0 + $0x98] sm:$0xf]
  %v57 = vld [vmem:[%s0 + $0x9c] sm:$0xf]
  %v58 = vld [vmem:[%s0 + $0xa0] sm:$0xf]
  %v59 = vld [vmem:[%s0 + $0xa4] sm:$0xf]
  %v60 = vld [vmem:[%s0 + $0xa8] sm:$0xf]
  %v61 = vld [vmem:[%s0 + $0xac] sm:$0xf]
  %v62 = vld [vmem:[%s0 + $0xb0] sm:$0xf]
  %v63 = vld [vmem:[%s0 + $0xb4] sm:$0xf]
  %v64 = vld [vmem:[%s0 + $0xb8] sm:$0xf]
  %v65 = vld [vmem:[%s0 + $0xbc] sm:$0xf]
  %v66 = vld [vmem:[%s0 + $0xc0] sm:$0xf]
  %v67 = vld [vmem:[%s0 + $0xc4] sm:$0xf]
  %v68 = vld [vmem:[%s0 + $0xc8] sm:$0xf]
  %v69 = vld [vmem:[%s0 + $0xcc] sm:$0xf]
  %v70 = vld [vmem:[%s0 + $0xd0] sm:$0xf]
  %v71 = vld [vmem:[%s0 + $0xd4] sm:$0xf]
  %v72 = vld [vmem:[%s0 + $0xd8] sm:$0xf]
  %v73 = vld [vmem:[%s0 + $0xdc] sm:$0xf]
  %v74 = vld [vmem:[%s0 + $0xe0] sm:$0xf]
  %v75 = vld [vmem:[%s0 + $0xe4] sm:$0xf]
  %v76 = vld [vmem:[%s0 + $0xe8] sm:$0xf]
  %v77 = vld [vmem:[%s0 + $0xec] sm:$0xf]
  %v78 = vld [vmem:[%s0 + $0xf0] sm:$0xf]
  %v79 = vld [vmem:[%s0 + $0xf4] sm:$0xf]
  %v80 = vld [vmem:[%s0 + $0xf8] sm:$0xf]
  %v81 = vld [vmem:[%s0 + $0xfc] sm:$0xf]
  %v82 = vld [vmem:[%s1] sm:$0xf]
  %v83 = vld [vmem:[%s1 + $0x4] sm:$0xf]
  %v84 = vld [vmem:[%s1 + $0x8] sm:$0xf]
  %v85 = vld [vmem:[%s1 + $0xc] sm:$0xf]
  %v86 = vld [vmem:[%s1 + $0x10] sm:$0xf]
  %v87 = vld [vmem:[%s1 + $0x14] sm:$0xf]
  %v88 = vld [vmem:[%s1 + $0x18] sm:$0xf]
  %v89 = vld [vmem:[%s1 + $0x1c] sm:$0xf]
  %v90 = vld [vmem:[%s1 + $0x20] sm:$0xf]
  %v91 = vld [vmem:[%s1 + $0x24] sm:$0xf]
  %v92 = vld [vmem:[%s1 + $0x28] sm:$0xf]
  %v93 = vld [vmem:[%s1 + $0x2c] sm:$0xf]
  %v94 = vld [vmem:[%s1 + $0x30] sm:$0xf]
  %v95 = vld [vmem:[%s1 + $0x34] sm:$0xf]
  %v96 = vld [vmem:[%s1 + $0x38] sm:$0xf]
  %v97 = vld [vmem:[%s1 + $0x3c] sm:$0xf]
  %v162 = vunpack.c.l.b16 %v18
  %v163 = vunpack.c.l.b16 %v19
  %v164 = vunpack.c.l.b16 %v20
  %v165 = vunpack.c.l.b16 %v21
  %v166 = vunpack.c.l.b16 %v22
  %v167 = vunpack.c.l.b16 %v23
  %v168 = vunpack.c.l.b16 %v24
  %v169 = vunpack.c.l.b16 %v25
  %v170 = vunpack.c.l.b16 %v26
  %v171 = vunpack.c.l.b16 %v27
  %v172 = vunpack.c.l.b16 %v28
  %v173 = vunpack.c.l.b16 %v29
  %v174 = vunpack.c.l.b16 %v30
  %v175 = vunpack.c.l.b16 %v31
  %v176 = vunpack.c.l.b16 %v32
  %v177 = vunpack.c.l.b16 %v33
  %v178 = vunpack.c.l.b16 %v34
  %v179 = vunpack.c.l.b16 %v35
  %v180 = vunpack.c.l.b16 %v36
  %v181 = vunpack.c.l.b16 %v37
  %v182 = vunpack.c.l.b16 %v38
  %v183 = vunpack.c.l.b16 %v39
  %v184 = vunpack.c.l.b16 %v40
  %v185 = vunpack.c.l.b16 %v41
  %v186 = vunpack.c.l.b16 %v42
  %v187 = vunpack.c.l.b16 %v43
  %v188 = vunpack.c.l.b16 %v44
  %v189 = vunpack.c.l.b16 %v45
  %v190 = vunpack.c.l.b16 %v46
  %v191 = vunpack.c.l.b16 %v47
  %v192 = vunpack.c.l.b16 %v48
  %v193 = vunpack.c.l.b16 %v49
  %v194 = vunpack.c.l.b16 %v50
  %v195 = vunpack.c.l.b16 %v51
  %v196 = vunpack.c.l.b16 %v52
  %v197 = vunpack.c.l.b16 %v53
  %v198 = vunpack.c.l.b16 %v54
  %v199 = vunpack.c.l.b16 %v55
  %v200 = vunpack.c.l.b16 %v56
  %v201 = vunpack.c.l.b16 %v57
  %v202 = vunpack.c.l.b16 %v58
  %v203 = vunpack.c.l.b16 %v59
  %v204 = vunpack.c.l.b16 %v60
  %v205 = vunpack.c.l.b16 %v61
  %v206 = vunpack.c.l.b16 %v62
  %v207 = vunpack.c.l.b16 %v63
  %v208 = vunpack.c.l.b16 %v64
  %v209 = vunpack.c.l.b16 %v65
  %v210 = vunpack.c.l.b16 %v66
  %v211 = vunpack.c.l.b16 %v67
  %v212 = vunpack.c.l.b16 %v68
  %v213 = vunpack.c.l.b16 %v69
  %v214 = vunpack.c.l.b16 %v70
  %v215 = vunpack.c.l.b16 %v71
  %v216 = vunpack.c.l.b16 %v72
  %v217 = vunpack.c.l.b16 %v73
  %v218 = vunpack.c.l.b16 %v74
  %v219 = vunpack.c.l.b16 %v75
  %v220 = vunpack.c.l.b16 %v76
  %v221 = vunpack.c.l.b16 %v77
  %v222 = vunpack.c.l.b16 %v78
  %v223 = vunpack.c.l.b16 %v79
  %v224 = vunpack.c.l.b16 %v80
  %v225 = vunpack.c.l.b16 %v81
  %v226 = vpack.c.b16 %v163, %v162
  %v227 = vpack.c.b16 %v165, %v164
  %v228 = vpack.c.b16 %v167, %v166
  %v229 = vpack.c.b16 %v169, %v168
  %v230 = vpack.c.b16 %v171, %v170
  %v231 = vpack.c.b16 %v173, %v172
  %v232 = vpack.c.b16 %v175, %v174
  %v233 = vpack.c.b16 %v177, %v176
  %v234 = vpack.c.b16 %v179, %v178
  %v235 = vpack.c.b16 %v181, %v180
  %v236 = vpack.c.b16 %v183, %v182
  %v237 = vpack.c.b16 %v185, %v184
  %v238 = vpack.c.b16 %v187, %v186
  %v239 = vpack.c.b16 %v189, %v188
  %v240 = vpack.c.b16 %v191, %v190
  %v241 = vpack.c.b16 %v193, %v192
  %v242 = vpack.c.b16 %v195, %v194
  %v243 = vpack.c.b16 %v197, %v196
  %v244 = vpack.c.b16 %v199, %v198
  %v245 = vpack.c.b16 %v201, %v200
  %v246 = vpack.c.b16 %v203, %v202
  %v247 = vpack.c.b16 %v205, %v204
  %v248 = vpack.c.b16 %v207, %v206
  %v249 = vpack.c.b16 %v209, %v208
  %v250 = vpack.c.b16 %v211, %v210
  %v251 = vpack.c.b16 %v213, %v212
  %v252 = vpack.c.b16 %v215, %v214
  %v253 = vpack.c.b16 %v217, %v216
  %v254 = vpack.c.b16 %v219, %v218
  %v255 = vpack.c.b16 %v221, %v220
  %v256 = vpack.c.b16 %v223, %v222
  %v257 = vpack.c.b16 %v225, %v224
  %v306 = vunpack.c.l.b16 %v82
  %v307 = vunpack.c.l.b16 %v83
  %v308 = vunpack.c.l.b16 %v84
  %v309 = vunpack.c.l.b16 %v85
  %v310 = vunpack.c.l.b16 %v86
  %v311 = vunpack.c.l.b16 %v87
  %v312 = vunpack.c.l.b16 %v88
  %v313 = vunpack.c.l.b16 %v89
  %v314 = vunpack.c.l.b16 %v90
  %v315 = vunpack.c.l.b16 %v91
  %v316 = vunpack.c.l.b16 %v92
  %v317 = vunpack.c.l.b16 %v93
  %v318 = vunpack.c.l.b16 %v94
  %v319 = vunpack.c.l.b16 %v95
  %v320 = vunpack.c.l.b16 %v96
  %v321 = vunpack.c.l.b16 %v97
  %v322 = vpack.c.b16 %v307, %v306
  %v323 = vpack.c.b16 %v309, %v308
  %v324 = vpack.c.b16 %v311, %v310
  %v325 = vpack.c.b16 %v313, %v312
  %v326 = vpack.c.b16 %v315, %v314
  %v327 = vpack.c.b16 %v317, %v316
  %v328 = vpack.c.b16 %v319, %v318
  %v329 = vpack.c.b16 %v321, %v320
  %338 = vmatprep.subr.bf16.mxu0 0
  %339 = vmatpush1.bf16.msra.mxu0 %v322
  %340 = vmatprep.subr.bf16.mxu0 0
  %341 = vmatpush1.bf16.msra.mxu0 %v323
  %342 = vmatprep.subr.bf16.mxu0 0
  %343 = vmatpush1.bf16.msra.mxu0 %v324
  %344 = vmatprep.subr.bf16.mxu0 0
  %345 = vmatpush1.bf16.msra.mxu0 %v325
  %346 = vmatprep.subr.bf16.mxu0 0
  %347 = vmatpush1.bf16.msra.mxu0 %v326
  %348 = vmatprep.subr.bf16.mxu0 0
  %349 = vmatpush1.bf16.msra.mxu0 %v327
  %350 = vmatprep.subr.bf16.mxu0 0
  %351 = vmatpush1.bf16.msra.mxu0 %v328
  %352 = vmatprep.subr.bf16.mxu0 0
  %353 = vmatpush1.bf16.msra.mxu0 %v329
  %354 = vmatprep.subr.bf16.mxu0 0
  %355 = vmatpush1.bf16.msra.mxu0 0
  %356 = vmatprep.subr.bf16.mxu0 0
  %357 = vmatpush1.bf16.msra.mxu0 0
  %358 = vmatprep.subr.bf16.mxu0 0
  %359 = vmatpush1.bf16.msra.mxu0 0
  %360 = vmatprep.subr.bf16.mxu0 0
  %361 = vmatpush1.bf16.msra.mxu0 0
  %362 = vmatprep.subr.bf16.mxu0 0
  %363 = vmatpush1.bf16.msra.mxu0 0
  %364 = vmatprep.subr.bf16.mxu0 0
  %365 = vmatpush1.bf16.msra.mxu0 0
  %366 = vmatprep.subr.bf16.mxu0 0
  %367 = vmatpush1.bf16.msra.mxu0 0
  %368 = vmatprep.subr.bf16.mxu0 0
  %369 = vmatpush1.bf16.msra.mxu0 0
  %370 = vmatprep.mubr.bf16.mxu0 0
  %371 = vmatmul.mubr.bf16.gmra.mrb[0].mxu0 %v226
  %v372 = vpop.f32.mrb[0].mxu0
  %v373 = vadd.f32 0.0, %v372
  %v374 = vpop.f32.mrb[0].mxu0
  %v375 = vpop.f32.mrb[0].mxu0
  %v376 = vadd.f32 0.0, %v375
  %v377 = vpop.f32.mrb[0].mxu0
  %378 = vmatprep.mubr.bf16.mxu0 0
  %379 = vmatmul.mubr.bf16.gmra.mrb[0].mxu0 %v227
  %v380 = vpop.f32.mrb[0].mxu0
  %v381 = vadd.f32 0.0, %v380
  %v382 = vpop.f32.mrb[0].mxu0
  %v383 = vpop.f32.mrb[0].mxu0
  %v384 = vadd.f32 0.0, %v383
  %v385 = vpop.f32.mrb[0].mxu0
  %386 = vmatprep.mubr.bf16.mxu0 0
  %387 = vmatmul.mubr.bf16.gmra.mrb[0].mxu0 %v228
  %v388 = vpop.f32.mrb[0].mxu0
  %v389 = vadd.f32 0.0, %v388
  %v390 = vpop.f32.mrb[0].mxu0
  %v391 = vpop.f32.mrb[0].mxu0
  %v392 = vadd.f32 0.0, %v391
  %v393 = vpop.f32.mrb[0].mxu0
  %394 = vmatprep.mubr.bf16.mxu0 0
  %395 = vmatmul.mubr.bf16.gmra.mrb[0].mxu0 %v229
  %v396 = vpop.f32.mrb[0].mxu0
  %v397 = vadd.f32 0.0, %v396
  %v398 = vpop.f32.mrb[0].mxu0
  %v399 = vpop.f32.mrb[0].mxu0
  %v400 = vadd.f32 0.0, %v399
  %v401 = vpop.f32.mrb[0].mxu0
  %402 = vmatprep.mubr.bf16.mxu0 0
  %403 = vmatmul.mubr.bf16.gmra.mrb[0].mxu0 %v230
  %v404 = vpop.f32.mrb[0].mxu0
  %v405 = vadd.f32 0.0, %v404
  %v406 = vpop.f32.mrb[0].mxu0
  %v407 = vpop.f32.mrb[0].mxu0
  %v408 = vadd.f32 0.0, %v407
  %v409 = vpop.f32.mrb[0].mxu0
  %410 = vmatprep.mubr.bf16.mxu0 0
  %411 = vmatmul.mubr.bf16.gmra.mrb[0].mxu0 %v231
  %v412 = vpop.f32.mrb[0].mxu0
  %v413 = vadd.f32 0.0, %v412
  %v414 = vpop.f32.mrb[0].mxu0
  %v415 = vpop.f32.mrb[0].mxu0
  %v416 = vadd.f32 0.0, %v415
  %v417 = vpop.f32.mrb[0].mxu0
  %418 = vmatprep.mubr.bf16.mxu0 0
  %419 = vmatmul.mubr.bf16.gmra.mrb[0].mxu0 %v232
  %v420 = vpop.f32.mrb[0].mxu0
  %v421 = vadd.f32 0.0, %v420
  %v422 = vpop.f32.mrb[0].mxu0
  %v423 = vpop.f32.mrb[0].mxu0
  %v424 = vadd.f32 0.0, %v423
  %v425 = vpop.f32.mrb[0].mxu0
  %426 = vmatprep.mubr.bf16.mxu0 0
  %427 = vmatmul.mubr.bf16.gmra.mrb[0].mxu0 %v233
  %v428 = vpop.f32.mrb[0].mxu0
  %v429 = vadd.f32 0.0, %v428
  %v430 = vpop.f32.mrb[0].mxu0
  %v431 = vpop.f32.mrb[0].mxu0
  %v432 = vadd.f32 0.0, %v431
  %v433 = vpop.f32.mrb[0].mxu0
  %434 = vmatprep.mubr.bf16.mxu0 0
  %435 = vmatmul.mubr.bf16.gmra.mrb[0].mxu0 %v234
  %v436 = vpop.f32.mrb[0].mxu0
  %v437 = vadd.f32 0.0, %v436
  %v438 = vpop.f32.mrb[0].mxu0
  %v439 = vpop.f32.mrb[0].mxu0
  %v440 = vadd.f32 0.0, %v439
  %v441 = vpop.f32.mrb[0].mxu0
  %442 = vmatprep.mubr.bf16.mxu0 0
  %443 = vmatmul.mubr.bf16.gmra.mrb[0].mxu0 %v235
  %v444 = vpop.f32.mrb[0].mxu0
  %v445 = vadd.f32 0.0, %v444
  %v446 = vpop.f32.mrb[0].mxu0
  %v447 = vpop.f32.mrb[0].mxu0
  %v448 = vadd.f32 0.0, %v447
  %v449 = vpop.f32.mrb[0].mxu0
  %450 = vmatprep.mubr.bf16.mxu0 0
  %451 = vmatmul.mubr.bf16.gmra.mrb[0].mxu0 %v236
  %v452 = vpop.f32.mrb[0].mxu0
  %v453 = vadd.f32 0.0, %v452
  %v454 = vpop.f32.mrb[0].mxu0
  %v455 = vpop.f32.mrb[0].mxu0
  %v456 = vadd.f32 0.0, %v455
  %v457 = vpop.f32.mrb[0].mxu0
  %458 = vmatprep.mubr.bf16.mxu0 0
  %459 = vmatmul.mubr.bf16.gmra.mrb[0].mxu0 %v237
  %v460 = vpop.f32.mrb[0].mxu0
  %v461 = vadd.f32 0.0, %v460
  %v462 = vpop.f32.mrb[0].mxu0
  %v463 = vpop.f32.mrb[0].mxu0
  %v464 = vadd.f32 0.0, %v463
  %v465 = vpop.f32.mrb[0].mxu0
  %466 = vmatprep.mubr.bf16.mxu0 0
  %467 = vmatmul.mubr.bf16.gmra.mrb[0].mxu0 %v238
  %v468 = vpop.f32.mrb[0].mxu0
  %v469 = vadd.f32 0.0, %v468
  %v470 = vpop.f32.mrb[0].mxu0
  %v471 = vpop.f32.mrb[0].mxu0
  %v472 = vadd.f32 0.0, %v471
  %v473 = vpop.f32.mrb[0].mxu0
  %474 = vmatprep.mubr.bf16.mxu0 0
  %475 = vmatmul.mubr.bf16.gmra.mrb[0].mxu0 %v239
  %v476 = vpop.f32.mrb[0].mxu0
  %v477 = vadd.f32 0.0, %v476
  %v478 = vpop.f32.mrb[0].mxu0
  %v479 = vpop.f32.mrb[0].mxu0
  %v480 = vadd.f32 0.0, %v479
  %v481 = vpop.f32.mrb[0].mxu0
  %482 = vmatprep.mubr.bf16.mxu0 0
  %483 = vmatmul.mubr.bf16.gmra.mrb[0].mxu0 %v240
  %v484 = vpop.f32.mrb[0].mxu0
  %v485 = vadd.f32 0.0, %v484
  %v486 = vpop.f32.mrb[0].mxu0
  %v487 = vpop.f32.mrb[0].mxu0
  %v488 = vadd.f32 0.0, %v487
  %v489 = vpop.f32.mrb[0].mxu0
  %490 = vmatprep.mubr.bf16.mxu0 0
  %491 = vmatmul.mubr.bf16.gmra.mrb[0].mxu0 %v241
  %v492 = vpop.f32.mrb[0].mxu0
  %v493 = vadd.f32 0.0, %v492
  %v494 = vpop.f32.mrb[0].mxu0
  %v495 = vpop.f32.mrb[0].mxu0
  %v496 = vadd.f32 0.0, %v495
  %v497 = vpop.f32.mrb[0].mxu0
  %498 = vmatprep.mubr.bf16.mxu0 0
  %499 = vmatmul.mubr.bf16.gmra.mrb[0].mxu0 %v242
  %v500 = vpop.f32.mrb[0].mxu0
  %v501 = vadd.f32 0.0, %v500
  %v502 = vpop.f32.mrb[0].mxu0
  %v503 = vpop.f32.mrb[0].mxu0
  %v504 = vadd.f32 0.0, %v503
  %v505 = vpop.f32.mrb[0].mxu0
  %506 = vmatprep.mubr.bf16.mxu0 0
  %507 = vmatmul.mubr.bf16.gmra.mrb[0].mxu0 %v243
  %v508 = vpop.f32.mrb[0].mxu0
  %v509 = vadd.f32 0.0, %v508
  %v510 = vpop.f32.mrb[0].mxu0
  %v511 = vpop.f32.mrb[0].mxu0
  %v512 = vadd.f32 0.0, %v511
  %v513 = vpop.f32.mrb[0].mxu0
  %514 = vmatprep.mubr.bf16.mxu0 0
  %515 = vmatmul.mubr.bf16.gmra.mrb[0].mxu0 %v244
  %v516 = vpop.f32.mrb[0].mxu0
  %v517 = vadd.f32 0.0, %v516
  %v518 = vpop.f32.mrb[0].mxu0
  %v519 = vpop.f32.mrb[0].mxu0
  %v520 = vadd.f32 0.0, %v519
  %v521 = vpop.f32.mrb[0].mxu0
  %522 = vmatprep.mubr.bf16.mxu0 0
  %523 = vmatmul.mubr.bf16.gmra.mrb[0].mxu0 %v245
  %v524 = vpop.f32.mrb[0].mxu0
  %v525 = vadd.f32 0.0, %v524
  %v526 = vpop.f32.mrb[0].mxu0
  %v527 = vpop.f32.mrb[0].mxu0
  %v528 = vadd.f32 0.0, %v527
  %v529 = vpop.f32.mrb[0].mxu0
  %530 = vmatprep.mubr.bf16.mxu0 0
  %531 = vmatmul.mubr.bf16.gmra.mrb[0].mxu0 %v246
  %v532 = vpop.f32.mrb[0].mxu0
  %v533 = vadd.f32 0.0, %v532
  %v534 = vpop.f32.mrb[0].mxu0
  %v535 = vpop.f32.mrb[0].mxu0
  %v536 = vadd.f32 0.0, %v535
  %v537 = vpop.f32.mrb[0].mxu0
  %538 = vmatprep.mubr.bf16.mxu0 0
  %539 = vmatmul.mubr.bf16.gmra.mrb[0].mxu0 %v247
  %v540 = vpop.f32.mrb[0].mxu0
  %v541 = vadd.f32 0.0, %v540
  %v542 = vpop.f32.mrb[0].mxu0
  %v543 = vpop.f32.mrb[0].mxu0
  %v544 = vadd.f32 0.0, %v543
  %v545 = vpop.f32.mrb[0].mxu0
  %546 = vmatprep.mubr.bf16.mxu0 0
  %547 = vmatmul.mubr.bf16.gmra.mrb[0].mxu0 %v248
  %v548 = vpop.f32.mrb[0].mxu0
  %v549 = vadd.f32 0.0, %v548
  %v550 = vpop.f32.mrb[0].mxu0
  %v551 = vpop.f32.mrb[0].mxu0
  %v552 = vadd.f32 0.0, %v551
  %v553 = vpop.f32.mrb[0].mxu0
  %554 = vmatprep.mubr.bf16.mxu0 0
  %555 = vmatmul.mubr.bf16.gmra.mrb[0].mxu0 %v249
  %v556 = vpop.f32.mrb[0].mxu0
  %v557 = vadd.f32 0.0, %v556
  %v558 = vpop.f32.mrb[0].mxu0
  %v559 = vpop.f32.mrb[0].mxu0
  %v560 = vadd.f32 0.0, %v559
  %v561 = vpop.f32.mrb[0].mxu0
  %562 = vmatprep.mubr.bf16.mxu0 0
  %563 = vmatmul.mubr.bf16.gmra.mrb[0].mxu0 %v250
  %v564 = vpop.f32.mrb[0].mxu0
  %v565 = vadd.f32 0.0, %v564
  %v566 = vpop.f32.mrb[0].mxu0
  %v567 = vpop.f32.mrb[0].mxu0
  %v568 = vadd.f32 0.0, %v567
  %v569 = vpop.f32.mrb[0].mxu0
  %570 = vmatprep.mubr.bf16.mxu0 0
  %571 = vmatmul.mubr.bf16.gmra.mrb[0].mxu0 %v251
  %v572 = vpop.f32.mrb[0].mxu0
  %v573 = vadd.f32 0.0, %v572
  %v574 = vpop.f32.mrb[0].mxu0
  %v575 = vpop.f32.mrb[0].mxu0
  %v576 = vadd.f32 0.0, %v575
  %v577 = vpop.f32.mrb[0].mxu0
  %578 = vmatprep.mubr.bf16.mxu0 0
  %579 = vmatmul.mubr.bf16.gmra.mrb[0].mxu0 %v252
  %v580 = vpop.f32.mrb[0].mxu0
  %v581 = vadd.f32 0.0, %v580
  %v582 = vpop.f32.mrb[0].mxu0
  %v583 = vpop.f32.mrb[0].mxu0
  %v584 = vadd.f32 0.0, %v583
  %v585 = vpop.f32.mrb[0].mxu0
  %586 = vmatprep.mubr.bf16.mxu0 0
  %587 = vmatmul.mubr.bf16.gmra.mrb[0].mxu0 %v253
  %v588 = vpop.f32.mrb[0].mxu0
  %v589 = vadd.f32 0.0, %v588
  %v590 = vpop.f32.mrb[0].mxu0
  %v591 = vpop.f32.mrb[0].mxu0
  %v592 = vadd.f32 0.0, %v591
  %v593 = vpop.f32.mrb[0].mxu0
  %594 = vmatprep.mubr.bf16.mxu0 0
  %595 = vmatmul.mubr.bf16.gmra.mrb[0].mxu0 %v254
  %v596 = vpop.f32.mrb[0].mxu0
  %v597 = vadd.f32 0.0, %v596
  %v598 = vpop.f32.mrb[0].mxu0
  %v599 = vpop.f32.mrb[0].mxu0
  %v600 = vadd.f32 0.0, %v599
  %v601 = vpop.f32.mrb[0].mxu0
  %602 = vmatprep.mubr.bf16.mxu0 0
  %603 = vmatmul.mubr.bf16.gmra.mrb[0].mxu0 %v255
  %v604 = vpop.f32.mrb[0].mxu0
  %v605 = vadd.f32 0.0, %v604
  %v606 = vpop.f32.mrb[0].mxu0
  %v607 = vpop.f32.mrb[0].mxu0
  %v608 = vadd.f32 0.0, %v607
  %v609 = vpop.f32.mrb[0].mxu0
  %610 = vmatprep.mubr.bf16.mxu0 0
  %611 = vmatmul.mubr.bf16.gmra.mrb[0].mxu0 %v256
  %v612 = vpop.f32.mrb[0].mxu0
  %v613 = vadd.f32 0.0, %v612
  %v614 = vpop.f32.mrb[0].mxu0
  %v615 = vpop.f32.mrb[0].mxu0
  %v616 = vadd.f32 0.0, %v615
  %v617 = vpop.f32.mrb[0].mxu0
  %618 = vmatprep.mubr.bf16.mxu0 0
  %619 = vmatmul.mubr.bf16.gmra.mrb[0].mxu0 %v257
  %v620 = vpop.f32.mrb[0].mxu0
  %v621 = vadd.f32 0.0, %v620
  %v622 = vpop.f32.mrb[0].mxu0
  %v623 = vpop.f32.mrb[0].mxu0
  %v624 = vadd.f32 0.0, %v623
  %v625 = vpop.f32.mrb[0].mxu0
  %626 = vdwg.mxu0
  %v627 = vadd.f32 %v373, %v376
  %v628 = vadd.f32 %v627, %v381
  %v629 = vadd.f32 %v628, %v384
  %v630 = vadd.f32 %v629, %v389
  %v631 = vadd.f32 %v630, %v392
  %v632 = vadd.f32 %v631, %v397
  %v633 = vadd.f32 %v632, %v400
  %v634 = vadd.f32 %v633, %v405
  %v635 = vadd.f32 %v634, %v408
  %v636 = vadd.f32 %v635, %v413
  %v637 = vadd.f32 %v636, %v416
  %v638 = vadd.f32 %v637, %v421
  %v639 = vadd.f32 %v638, %v424
  %v640 = vadd.f32 %v639, %v429
  %v641 = vadd.f32 %v640, %v432
  %v642 = vadd.f32 %v641, %v437
  %v643 = vadd.f32 %v642, %v440
  %v644 = vadd.f32 %v643, %v445
  %v645 = vadd.f32 %v644, %v448
  %v646 = vadd.f32 %v645, %v453
  %v647 = vadd.f32 %v646, %v456
  %v648 = vadd.f32 %v647, %v461
  %v649 = vadd.f32 %v648, %v464
  %v650 = vadd.f32 %v649, %v469
  %v651 = vadd.f32 %v650, %v472
  %v652 = vadd.f32 %v651, %v477
  %v653 = vadd.f32 %v652, %v480
  %v654 = vadd.f32 %v653, %v485
  %v655 = vadd.f32 %v654, %v488
  %v656 = vadd.f32 %v655, %v493
  %v657 = vadd.f32 %v656, %v496
  %v658 = vadd.f32 %v657, %v501
  %v659 = vadd.f32 %v658, %v504
  %v660 = vadd.f32 %v659, %v509
  %v661 = vadd.f32 %v660, %v512
  %v662 = vadd.f32 %v661, %v517
  %v663 = vadd.f32 %v662, %v520
  %v664 = vadd.f32 %v663, %v525
  %v665 = vadd.f32 %v664, %v528
  %v666 = vadd.f32 %v665, %v533
  %v667 = vadd.f32 %v666, %v536
  %v668 = vadd.f32 %v667, %v541
  %v669 = vadd.f32 %v668, %v544
  %v670 = vadd.f32 %v669, %v549
  %v671 = vadd.f32 %v670, %v552
  %v672 = vadd.f32 %v671, %v557
  %v673 = vadd.f32 %v672, %v560
  %v674 = vadd.f32 %v673, %v565
  %v675 = vadd.f32 %v674, %v568
  %v676 = vadd.f32 %v675, %v573
  %v677 = vadd.f32 %v676, %v576
  %v678 = vadd.f32 %v677, %v581
  %v679 = vadd.f32 %v678, %v584
  %v680 = vadd.f32 %v679, %v589
  %v681 = vadd.f32 %v680, %v592
  %v682 = vadd.f32 %v681, %v597
  %v683 = vadd.f32 %v682, %v600
  %v684 = vadd.f32 %v683, %v605
  %v685 = vadd.f32 %v684, %v608
  %v686 = vadd.f32 %v685, %v613
  %v687 = vadd.f32 %v686, %v616
  %v688 = vadd.f32 %v687, %v621
  %v689 = vadd.f32 %v688, %v624
  %v690 = vrot.slane %v689, 4
  %v691 = vadd.f32 %v689, %v690
  %v692 = vrot.slane %v691, 2
  %v693 = vadd.f32 %v691, %v692
  %v694 = vrot.slane %v693, 1
  %v695 = vadd.f32 %v693, %v694
  %v696 = vmul.f32 %v695, 0.001953125
  %v697 = vsub.f32 %v373, %v696
  %v698 = vsub.f32 %v376, %v696
  %v699 = vsub.f32 %v381, %v696
  %v700 = vsub.f32 %v384, %v696
  %v701 = vsub.f32 %v389, %v696
  %v702 = vsub.f32 %v392, %v696
  %v703 = vsub.f32 %v397, %v696
  %v704 = vsub.f32 %v400, %v696
  %v705 = vsub.f32 %v405, %v696
  %v706 = vsub.f32 %v408, %v696
  %v707 = vsub.f32 %v413, %v696
  %v708 = vsub.f32 %v416, %v696
  %v709 = vsub.f32 %v421, %v696
  %v710 = vsub.f32 %v424, %v696
  %v711 = vsub.f32 %v429, %v696
  %v712 = vsub.f32 %v432, %v696
  %v713 = vsub.f32 %v437, %v696
  %v714 = vsub.f32 %v440, %v696
  %v715 = vsub.f32 %v445, %v696
  %v716 = vsub.f32 %v448, %v696
  %v717 = vsub.f32 %v453, %v696
  %v718 = vsub.f32 %v456, %v696
  %v719 = vsub.f32 %v461, %v696
  %v720 = vsub.f32 %v464, %v696
  %v721 = vsub.f32 %v469, %v696
  %v722 = vsub.f32 %v472, %v696
  %v723 = vsub.f32 %v477, %v696
  %v724 = vsub.f32 %v480, %v696
  %v725 = vsub.f32 %v485, %v696
  %v726 = vsub.f32 %v488, %v696
  %v727 = vsub.f32 %v493, %v696
  %v728 = vsub.f32 %v496, %v696
  %v729 = vsub.f32 %v501, %v696
  %v730 = vsub.f32 %v504, %v696
  %v731 = vsub.f32 %v509, %v696
  %v732 = vsub.f32 %v512, %v696
  %v733 = vsub.f32 %v517, %v696
  %v734 = vsub.f32 %v520, %v696
  %v735 = vsub.f32 %v525, %v696
  %v736 = vsub.f32 %v528, %v696
  %v737 = vsub.f32 %v533, %v696
  %v738 = vsub.f32 %v536, %v696
  %v739 = vsub.f32 %v541, %v696
  %v740 = vsub.f32 %v544, %v696
  %v741 = vsub.f32 %v549, %v696
  %v742 = vsub.f32 %v552, %v696
  %v743 = vsub.f32 %v557, %v696
  %v744 = vsub.f32 %v560, %v696
  %v745 = vsub.f32 %v565, %v696
  %v746 = vsub.f32 %v568, %v696
  %v747 = vsub.f32 %v573, %v696
  %v748 = vsub.f32 %v576, %v696
  %v749 = vsub.f32 %v581, %v696
  %v750 = vsub.f32 %v584, %v696
  %v751 = vsub.f32 %v589, %v696
  %v752 = vsub.f32 %v592, %v696
  %v753 = vsub.f32 %v597, %v696
  %v754 = vsub.f32 %v600, %v696
  %v755 = vsub.f32 %v605, %v696
  %v756 = vsub.f32 %v608, %v696
  %v757 = vsub.f32 %v613, %v696
  %v758 = vsub.f32 %v616, %v696
  %v759 = vsub.f32 %v621, %v696
  %v760 = vsub.f32 %v624, %v696
  %v761 = vmul.f32 %v697, %v697
  %v762 = vmul.f32 %v698, %v698
  %v763 = vmul.f32 %v699, %v699
  %v764 = vmul.f32 %v700, %v700
  %v765 = vmul.f32 %v701, %v701
  %v766 = vmul.f32 %v702, %v702
  %v767 = vmul.f32 %v703, %v703
  %v768 = vmul.f32 %v704, %v704
  %v769 = vmul.f32 %v705, %v705
  %v770 = vmul.f32 %v706, %v706
  %v771 = vmul.f32 %v707, %v707
  %v772 = vmul.f32 %v708, %v708
  %v773 = vmul.f32 %v709, %v709
  %v774 = vmul.f32 %v710, %v710
  %v775 = vmul.f32 %v711, %v711
  %v776 = vmul.f32 %v712, %v712
  %v777 = vmul.f32 %v713, %v713
  %v778 = vmul.f32 %v714, %v714
  %v779 = vmul.f32 %v715, %v715
  %v780 = vmul.f32 %v716, %v716
  %v781 = vmul.f32 %v717, %v717
  %v782 = vmul.f32 %v718, %v718
  %v783 = vmul.f32 %v719, %v719
  %v784 = vmul.f32 %v720, %v720
  %v785 = vmul.f32 %v721, %v721
  %v786 = vmul.f32 %v722, %v722
  %v787 = vmul.f32 %v723, %v723
  %v788 = vmul.f32 %v724, %v724
  %v789 = vmul.f32 %v725, %v725
  %v790 = vmul.f32 %v726, %v726
  %v791 = vmul.f32 %v727, %v727
  %v792 = vmul.f32 %v728, %v728
  %v793 = vmul.f32 %v729, %v729
  %v794 = vmul.f32 %v730, %v730
  %v795 = vmul.f32 %v731, %v731
  %v796 = vmul.f32 %v732, %v732
  %v797 = vmul.f32 %v733, %v733
  %v798 = vmul.f32 %v734, %v734
  %v799 = vmul.f32 %v735, %v735
  %v800 = vmul.f32 %v736, %v736
  %v801 = vmul.f32 %v737, %v737
  %v802 = vmul.f32 %v738, %v738
  %v803 = vmul.f32 %v739, %v739
  %v804 = vmul.f32 %v740, %v740
  %v805 = vmul.f32 %v741, %v741
  %v806 = vmul.f32 %v742, %v742
  %v807 = vmul.f32 %v743, %v743
  %v808 = vmul.f32 %v744, %v744
  %v809 = vmul.f32 %v745, %v745
  %v810 = vmul.f32 %v746, %v746
  %v811 = vmul.f32 %v747, %v747
  %v812 = vmul.f32 %v748, %v748
  %v813 = vmul.f32 %v749, %v749
  %v814 = vmul.f32 %v750, %v750
  %v815 = vmul.f32 %v751, %v751
  %v816 = vmul.f32 %v752, %v752
  %v817 = vmul.f32 %v753, %v753
  %v818 = vmul.f32 %v754, %v754
  %v819 = vmul.f32 %v755, %v755
  %v820 = vmul.f32 %v756, %v756
  %v821 = vmul.f32 %v757, %v757
  %v822 = vmul.f32 %v758, %v758
  %v823 = vmul.f32 %v759, %v759
  %v824 = vmul.f32 %v760, %v760
  %v825 = vadd.f32 %v761, %v762
  %v826 = vadd.f32 %v825, %v763
  %v827 = vadd.f32 %v826, %v764
  %v828 = vadd.f32 %v827, %v765
  %v829 = vadd.f32 %v828, %v766
  %v830 = vadd.f32 %v829, %v767
  %v831 = vadd.f32 %v830, %v768
  %v832 = vadd.f32 %v831, %v769
  %v833 = vadd.f32 %v832, %v770
  %v834 = vadd.f32 %v833, %v771
  %v835 = vadd.f32 %v834, %v772
  %v836 = vadd.f32 %v835, %v773
  %v837 = vadd.f32 %v836, %v774
  %v838 = vadd.f32 %v837, %v775
  %v839 = vadd.f32 %v838, %v776
  %v840 = vadd.f32 %v839, %v777
  %v841 = vadd.f32 %v840, %v778
  %v842 = vadd.f32 %v841, %v779
  %v843 = vadd.f32 %v842, %v780
  %v844 = vadd.f32 %v843, %v781
  %v845 = vadd.f32 %v844, %v782
  %v846 = vadd.f32 %v845, %v783
  %v847 = vadd.f32 %v846, %v784
  %v848 = vadd.f32 %v847, %v785
  %v849 = vadd.f32 %v848, %v786
  %v850 = vadd.f32 %v849, %v787
  %v851 = vadd.f32 %v850, %v788
  %v852 = vadd.f32 %v851, %v789
  %v853 = vadd.f32 %v852, %v790
  %v854 = vadd.f32 %v853, %v791
  %v855 = vadd.f32 %v854, %v792
  %v856 = vadd.f32 %v855, %v793
  %v857 = vadd.f32 %v856, %v794
  %v858 = vadd.f32 %v857, %v795
  %v859 = vadd.f32 %v858, %v796
  %v860 = vadd.f32 %v859, %v797
  %v861 = vadd.f32 %v860, %v798
  %v862 = vadd.f32 %v861, %v799
  %v863 = vadd.f32 %v862, %v800
  %v864 = vadd.f32 %v863, %v801
  %v865 = vadd.f32 %v864, %v802
  %v866 = vadd.f32 %v865, %v803
  %v867 = vadd.f32 %v866, %v804
  %v868 = vadd.f32 %v867, %v805
  %v869 = vadd.f32 %v868, %v806
  %v870 = vadd.f32 %v869, %v807
  %v871 = vadd.f32 %v870, %v808
  %v872 = vadd.f32 %v871, %v809
  %v873 = vadd.f32 %v872, %v810
  %v874 = vadd.f32 %v873, %v811
  %v875 = vadd.f32 %v874, %v812
  %v876 = vadd.f32 %v875, %v813
  %v877 = vadd.f32 %v876, %v814
  %v878 = vadd.f32 %v877, %v815
  %v879 = vadd.f32 %v878, %v816
  %v880 = vadd.f32 %v879, %v817
  %v881 = vadd.f32 %v880, %v818
  %v882 = vadd.f32 %v881, %v819
  %v883 = vadd.f32 %v882, %v820
  %v884 = vadd.f32 %v883, %v821
  %v885 = vadd.f32 %v884, %v822
  %v886 = vadd.f32 %v885, %v823
  %v887 = vadd.f32 %v886, %v824
  %v888 = vrot.slane %v887, 4
  %v889 = vadd.f32 %v887, %v888
  %v890 = vrot.slane %v889, 2
  %v891 = vadd.f32 %v889, %v890
  %v892 = vrot.slane %v891, 1
  %v893 = vadd.f32 %v891, %v892
  %v894 = vmul.f32 %v893, 0.001953125
  %v895 = vld [vmem:[%s2] sm:$0x1]
  %v896 = vadd.f32 %v894, 1e-05
  %v897 = vrsqrt.pop %v896
  %v898 = vmul.f32 %v895, %v897
  %v900 = vlaneseq
  %v901 = vshrl.u32 %v900, 7
  %v902 = vsub.s32 0, %v901
  %v903 = vrot.slane %v898, %v902
  %v905 = vmul.f32 %v697, %v903
  %v906 = vmul.f32 %v698, %v903
  %v907 = vmul.f32 %v699, %v903
  %v908 = vmul.f32 %v700, %v903
  %v909 = vmul.f32 %v701, %v903
  %v910 = vmul.f32 %v702, %v903
  %v911 = vmul.f32 %v703, %v903
  %v912 = vmul.f32 %v704, %v903
  %v913 = vmul.f32 %v705, %v903
  %v914 = vmul.f32 %v706, %v903
  %v915 = vmul.f32 %v707, %v903
  %v916 = vmul.f32 %v708, %v903
  %v917 = vmul.f32 %v709, %v903
  %v918 = vmul.f32 %v710, %v903
  %v919 = vmul.f32 %v711, %v903
  %v920 = vmul.f32 %v712, %v903
  %v921 = vmul.f32 %v713, %v903
  %v922 = vmul.f32 %v714, %v903
  %v923 = vmul.f32 %v715, %v903
  %v924 = vmul.f32 %v716, %v903
  %v925 = vmul.f32 %v717, %v903
  %v926 = vmul.f32 %v718, %v903
  %v927 = vmul.f32 %v719, %v903
  %v928 = vmul.f32 %v720, %v903
  %v929 = vmul.f32 %v721, %v903
  %v930 = vmul.f32 %v722, %v903
  %v931 = vmul.f32 %v723, %v903
  %v932 = vmul.f32 %v724, %v903
  %v933 = vmul.f32 %v725, %v903
  %v934 = vmul.f32 %v726, %v903
  %v935 = vmul.f32 %v727, %v903
  %v936 = vmul.f32 %v728, %v903
  %v937 = vmul.f32 %v729, %v903
  %v938 = vmul.f32 %v730, %v903
  %v939 = vmul.f32 %v731, %v903
  %v940 = vmul.f32 %v732, %v903
  %v941 = vmul.f32 %v733, %v903
  %v942 = vmul.f32 %v734, %v903
  %v943 = vmul.f32 %v735, %v903
  %v944 = vmul.f32 %v736, %v903
  %v945 = vmul.f32 %v737, %v903
  %v946 = vmul.f32 %v738, %v903
  %v947 = vmul.f32 %v739, %v903
  %v948 = vmul.f32 %v740, %v903
  %v949 = vmul.f32 %v741, %v903
  %v950 = vmul.f32 %v742, %v903
  %v951 = vmul.f32 %v743, %v903
  %v952 = vmul.f32 %v744, %v903
  %v953 = vmul.f32 %v745, %v903
  %v954 = vmul.f32 %v746, %v903
  %v955 = vmul.f32 %v747, %v903
  %v956 = vmul.f32 %v748, %v903
  %v957 = vmul.f32 %v749, %v903
  %v958 = vmul.f32 %v750, %v903
  %v959 = vmul.f32 %v751, %v903
  %v960 = vmul.f32 %v752, %v903
  %v961 = vmul.f32 %v753, %v903
  %v962 = vmul.f32 %v754, %v903
  %v963 = vmul.f32 %v755, %v903
  %v964 = vmul.f32 %v756, %v903
  %v965 = vmul.f32 %v757, %v903
  %v966 = vmul.f32 %v758, %v903
  %v967 = vmul.f32 %v759, %v903
  %v968 = vmul.f32 %v760, %v903
  %v969 = vld [vmem:[%s3] sm:$0x1]
  %v971 = vlaneseq
  %v972 = vshrl.u32 %v971, 7
  %v973 = vsub.s32 0, %v972
  %v974 = vrot.slane %v969, %v973
  %v976 = vadd.f32 %v905, %v974
  %v977 = vadd.f32 %v906, %v974
  %v978 = vadd.f32 %v907, %v974
  %v979 = vadd.f32 %v908, %v974
  %v980 = vadd.f32 %v909, %v974
  %v981 = vadd.f32 %v910, %v974
  %v982 = vadd.f32 %v911, %v974
  %v983 = vadd.f32 %v912, %v974
  %v984 = vadd.f32 %v913, %v974
  %v985 = vadd.f32 %v914, %v974
  %v986 = vadd.f32 %v915, %v974
  %v987 = vadd.f32 %v916, %v974
  %v988 = vadd.f32 %v917, %v974
  %v989 = vadd.f32 %v918, %v974
  %v990 = vadd.f32 %v919, %v974
  %v991 = vadd.f32 %v920, %v974
  %v992 = vadd.f32 %v921, %v974
  %v993 = vadd.f32 %v922, %v974
  %v994 = vadd.f32 %v923, %v974
  %v995 = vadd.f32 %v924, %v974
  %v996 = vadd.f32 %v925, %v974
  %v997 = vadd.f32 %v926, %v974
  %v998 = vadd.f32 %v927, %v974
  %v999 = vadd.f32 %v928, %v974
  %v1000 = vadd.f32 %v929, %v974
  %v1001 = vadd.f32 %v930, %v974
  %v1002 = vadd.f32 %v931, %v974
  %v1003 = vadd.f32 %v932, %v974
  %v1004 = vadd.f32 %v933, %v974
  %v1005 = vadd.f32 %v934, %v974
  %v1006 = vadd.f32 %v935, %v974
  %v1007 = vadd.f32 %v936, %v974
  %v1008 = vadd.f32 %v937, %v974
  %v1009 = vadd.f32 %v938, %v974
  %v1010 = vadd.f32 %v939, %v974
  %v1011 = vadd.f32 %v940, %v974
  %v1012 = vadd.f32 %v941, %v974
  %v1013 = vadd.f32 %v942, %v974
  %v1014 = vadd.f32 %v943, %v974
  %v1015 = vadd.f32 %v944, %v974
  %v1016 = vadd.f32 %v945, %v974
  %v1017 = vadd.f32 %v946, %v974
  %v1018 = vadd.f32 %v947, %v974
  %v1019 = vadd.f32 %v948, %v974
  %v1020 = vadd.f32 %v949, %v974
  %v1021 = vadd.f32 %v950, %v974
  %v1022 = vadd.f32 %v951, %v974
  %v1023 = vadd.f32 %v952, %v974
  %v1024 = vadd.f32 %v953, %v974
  %v1025 = vadd.f32 %v954, %v974
  %v1026 = vadd.f32 %v955, %v974
  %v1027 = vadd.f32 %v956, %v974
  %v1028 = vadd.f32 %v957, %v974
  %v1029 = vadd.f32 %v958, %v974
  %v1030 = vadd.f32 %v959, %v974
  %v1031 = vadd.f32 %v960, %v974
  %v1032 = vadd.f32 %v961, %v974
  %v1033 = vadd.f32 %v962, %v974
  %v1034 = vadd.f32 %v963, %v974
  %v1035 = vadd.f32 %v964, %v974
  %v1036 = vadd.f32 %v965, %v974
  %v1037 = vadd.f32 %v966, %v974
  %v1038 = vadd.f32 %v967, %v974
  %v1039 = vadd.f32 %v968, %v974
  %vm1040 = vcmp.ge.f32.partialorder %v976, 0.0
  %vm1041 = vcmp.ge.f32.partialorder %v977, 0.0
  %vm1042 = vcmp.ge.f32.partialorder %v978, 0.0
  %vm1043 = vcmp.ge.f32.partialorder %v979, 0.0
  %vm1044 = vcmp.ge.f32.partialorder %v980, 0.0
  %vm1045 = vcmp.ge.f32.partialorder %v981, 0.0
  %vm1046 = vcmp.ge.f32.partialorder %v982, 0.0
  %vm1047 = vcmp.ge.f32.partialorder %v983, 0.0
  %vm1048 = vcmp.ge.f32.partialorder %v984, 0.0
  %vm1049 = vcmp.ge.f32.partialorder %v985, 0.0
  %vm1050 = vcmp.ge.f32.partialorder %v986, 0.0
  %vm1051 = vcmp.ge.f32.partialorder %v987, 0.0
  %vm1052 = vcmp.ge.f32.partialorder %v988, 0.0
  %vm1053 = vcmp.ge.f32.partialorder %v989, 0.0
  %vm1054 = vcmp.ge.f32.partialorder %v990, 0.0
  %vm1055 = vcmp.ge.f32.partialorder %v991, 0.0
  %vm1056 = vcmp.ge.f32.partialorder %v992, 0.0
  %vm1057 = vcmp.ge.f32.partialorder %v993, 0.0
  %vm1058 = vcmp.ge.f32.partialorder %v994, 0.0
  %vm1059 = vcmp.ge.f32.partialorder %v995, 0.0
  %vm1060 = vcmp.ge.f32.partialorder %v996, 0.0
  %vm1061 = vcmp.ge.f32.partialorder %v997, 0.0
  %vm1062 = vcmp.ge.f32.partialorder %v998, 0.0
  %vm1063 = vcmp.ge.f32.partialorder %v999, 0.0
  %vm1064 = vcmp.ge.f32.partialorder %v1000, 0.0
  %vm1065 = vcmp.ge.f32.partialorder %v1001, 0.0
  %vm1066 = vcmp.ge.f32.partialorder %v1002, 0.0
  %vm1067 = vcmp.ge.f32.partialorder %v1003, 0.0
  %vm1068 = vcmp.ge.f32.partialorder %v1004, 0.0
  %vm1069 = vcmp.ge.f32.partialorder %v1005, 0.0
  %vm1070 = vcmp.ge.f32.partialorder %v1006, 0.0
  %vm1071 = vcmp.ge.f32.partialorder %v1007, 0.0
  %vm1072 = vcmp.ge.f32.partialorder %v1008, 0.0
  %vm1073 = vcmp.ge.f32.partialorder %v1009, 0.0
  %vm1074 = vcmp.ge.f32.partialorder %v1010, 0.0
  %vm1075 = vcmp.ge.f32.partialorder %v1011, 0.0
  %vm1076 = vcmp.ge.f32.partialorder %v1012, 0.0
  %vm1077 = vcmp.ge.f32.partialorder %v1013, 0.0
  %vm1078 = vcmp.ge.f32.partialorder %v1014, 0.0
  %vm1079 = vcmp.ge.f32.partialorder %v1015, 0.0
  %vm1080 = vcmp.ge.f32.partialorder %v1016, 0.0
  %vm1081 = vcmp.ge.f32.partialorder %v1017, 0.0
  %vm1082 = vcmp.ge.f32.partialorder %v1018, 0.0
  %vm1083 = vcmp.ge.f32.partialorder %v1019, 0.0
  %vm1084 = vcmp.ge.f32.partialorder %v1020, 0.0
  %vm1085 = vcmp.ge.f32.partialorder %v1021, 0.0
  %vm1086 = vcmp.ge.f32.partialorder %v1022, 0.0
  %vm1087 = vcmp.ge.f32.partialorder %v1023, 0.0
  %vm1088 = vcmp.ge.f32.partialorder %v1024, 0.0
  %vm1089 = vcmp.ge.f32.partialorder %v1025, 0.0
  %vm1090 = vcmp.ge.f32.partialorder %v1026, 0.0
  %vm1091 = vcmp.ge.f32.partialorder %v1027, 0.0
  %vm1092 = vcmp.ge.f32.partialorder %v1028, 0.0
  %vm1093 = vcmp.ge.f32.partialorder %v1029, 0.0
  %vm1094 = vcmp.ge.f32.partialorder %v1030, 0.0
  %vm1095 = vcmp.ge.f32.partialorder %v1031, 0.0
  %vm1096 = vcmp.ge.f32.partialorder %v1032, 0.0
  %vm1097 = vcmp.ge.f32.partialorder %v1033, 0.0
  %vm1098 = vcmp.ge.f32.partialorder %v1034, 0.0
  %vm1099 = vcmp.ge.f32.partialorder %v1035, 0.0
  %vm1100 = vcmp.ge.f32.partialorder %v1036, 0.0
  %vm1101 = vcmp.ge.f32.partialorder %v1037, 0.0
  %vm1102 = vcmp.ge.f32.partialorder %v1038, 0.0
  %vm1103 = vcmp.ge.f32.partialorder %v1039, 0.0
  %v1104 = vmul.f32 %v976, 0.2
  %v1105 = vmul.f32 %v977, 0.2
  %v1106 = vmul.f32 %v978, 0.2
  %v1107 = vmul.f32 %v979, 0.2
  %v1108 = vmul.f32 %v980, 0.2
  %v1109 = vmul.f32 %v981, 0.2
  %v1110 = vmul.f32 %v982, 0.2
  %v1111 = vmul.f32 %v983, 0.2
  %v1112 = vmul.f32 %v984, 0.2
  %v1113 = vmul.f32 %v985, 0.2
  %v1114 = vmul.f32 %v986, 0.2
  %v1115 = vmul.f32 %v987, 0.2
  %v1116 = vmul.f32 %v988, 0.2
  %v1117 = vmul.f32 %v989, 0.2
  %v1118 = vmul.f32 %v990, 0.2
  %v1119 = vmul.f32 %v991, 0.2
  %v1120 = vmul.f32 %v992, 0.2
  %v1121 = vmul.f32 %v993, 0.2
  %v1122 = vmul.f32 %v994, 0.2
  %v1123 = vmul.f32 %v995, 0.2
  %v1124 = vmul.f32 %v996, 0.2
  %v1125 = vmul.f32 %v997, 0.2
  %v1126 = vmul.f32 %v998, 0.2
  %v1127 = vmul.f32 %v999, 0.2
  %v1128 = vmul.f32 %v1000, 0.2
  %v1129 = vmul.f32 %v1001, 0.2
  %v1130 = vmul.f32 %v1002, 0.2
  %v1131 = vmul.f32 %v1003, 0.2
  %v1132 = vmul.f32 %v1004, 0.2
  %v1133 = vmul.f32 %v1005, 0.2
  %v1134 = vmul.f32 %v1006, 0.2
  %v1135 = vmul.f32 %v1007, 0.2
  %v1136 = vmul.f32 %v1008, 0.2
  %v1137 = vmul.f32 %v1009, 0.2
  %v1138 = vmul.f32 %v1010, 0.2
  %v1139 = vmul.f32 %v1011, 0.2
  %v1140 = vmul.f32 %v1012, 0.2
  %v1141 = vmul.f32 %v1013, 0.2
  %v1142 = vmul.f32 %v1014, 0.2
  %v1143 = vmul.f32 %v1015, 0.2
  %v1144 = vmul.f32 %v1016, 0.2
  %v1145 = vmul.f32 %v1017, 0.2
  %v1146 = vmul.f32 %v1018, 0.2
  %v1147 = vmul.f32 %v1019, 0.2
  %v1148 = vmul.f32 %v1020, 0.2
  %v1149 = vmul.f32 %v1021, 0.2
  %v1150 = vmul.f32 %v1022, 0.2
  %v1151 = vmul.f32 %v1023, 0.2
  %v1152 = vmul.f32 %v1024, 0.2
  %v1153 = vmul.f32 %v1025, 0.2
  %v1154 = vmul.f32 %v1026, 0.2
  %v1155 = vmul.f32 %v1027, 0.2
  %v1156 = vmul.f32 %v1028, 0.2
  %v1157 = vmul.f32 %v1029, 0.2
  %v1158 = vmul.f32 %v1030, 0.2
  %v1159 = vmul.f32 %v1031, 0.2
  %v1160 = vmul.f32 %v1032, 0.2
  %v1161 = vmul.f32 %v1033, 0.2
  %v1162 = vmul.f32 %v1034, 0.2
  %v1163 = vmul.f32 %v1035, 0.2
  %v1164 = vmul.f32 %v1036, 0.2
  %v1165 = vmul.f32 %v1037, 0.2
  %v1166 = vmul.f32 %v1038, 0.2
  %v1167 = vmul.f32 %v1039, 0.2
  %v1168 = vsel %vm1040, %v976, %v1104
  %v1169 = vsel %vm1041, %v977, %v1105
  %v1170 = vsel %vm1042, %v978, %v1106
  %v1171 = vsel %vm1043, %v979, %v1107
  %v1172 = vsel %vm1044, %v980, %v1108
  %v1173 = vsel %vm1045, %v981, %v1109
  %v1174 = vsel %vm1046, %v982, %v1110
  %v1175 = vsel %vm1047, %v983, %v1111
  %v1176 = vsel %vm1048, %v984, %v1112
  %v1177 = vsel %vm1049, %v985, %v1113
  %v1178 = vsel %vm1050, %v986, %v1114
  %v1179 = vsel %vm1051, %v987, %v1115
  %v1180 = vsel %vm1052, %v988, %v1116
  %v1181 = vsel %vm1053, %v989, %v1117
  %v1182 = vsel %vm1054, %v990, %v1118
  %v1183 = vsel %vm1055, %v991, %v1119
  %v1184 = vsel %vm1056, %v992, %v1120
  %v1185 = vsel %vm1057, %v993, %v1121
  %v1186 = vsel %vm1058, %v994, %v1122
  %v1187 = vsel %vm1059, %v995, %v1123
  %v1188 = vsel %vm1060, %v996, %v1124
  %v1189 = vsel %vm1061, %v997, %v1125
  %v1190 = vsel %vm1062, %v998, %v1126
  %v1191 = vsel %vm1063, %v999, %v1127
  %v1192 = vsel %vm1064, %v1000, %v1128
  %v1193 = vsel %vm1065, %v1001, %v1129
  %v1194 = vsel %vm1066, %v1002, %v1130
  %v1195 = vsel %vm1067, %v1003, %v1131
  %v1196 = vsel %vm1068, %v1004, %v1132
  %v1197 = vsel %vm1069, %v1005, %v1133
  %v1198 = vsel %vm1070, %v1006, %v1134
  %v1199 = vsel %vm1071, %v1007, %v1135
  %v1200 = vsel %vm1072, %v1008, %v1136
  %v1201 = vsel %vm1073, %v1009, %v1137
  %v1202 = vsel %vm1074, %v1010, %v1138
  %v1203 = vsel %vm1075, %v1011, %v1139
  %v1204 = vsel %vm1076, %v1012, %v1140
  %v1205 = vsel %vm1077, %v1013, %v1141
  %v1206 = vsel %vm1078, %v1014, %v1142
  %v1207 = vsel %vm1079, %v1015, %v1143
  %v1208 = vsel %vm1080, %v1016, %v1144
  %v1209 = vsel %vm1081, %v1017, %v1145
  %v1210 = vsel %vm1082, %v1018, %v1146
  %v1211 = vsel %vm1083, %v1019, %v1147
  %v1212 = vsel %vm1084, %v1020, %v1148
  %v1213 = vsel %vm1085, %v1021, %v1149
  %v1214 = vsel %vm1086, %v1022, %v1150
  %v1215 = vsel %vm1087, %v1023, %v1151
  %v1216 = vsel %vm1088, %v1024, %v1152
  %v1217 = vsel %vm1089, %v1025, %v1153
  %v1218 = vsel %vm1090, %v1026, %v1154
  %v1219 = vsel %vm1091, %v1027, %v1155
  %v1220 = vsel %vm1092, %v1028, %v1156
  %v1221 = vsel %vm1093, %v1029, %v1157
  %v1222 = vsel %vm1094, %v1030, %v1158
  %v1223 = vsel %vm1095, %v1031, %v1159
  %v1224 = vsel %vm1096, %v1032, %v1160
  %v1225 = vsel %vm1097, %v1033, %v1161
  %v1226 = vsel %vm1098, %v1034, %v1162
  %v1227 = vsel %vm1099, %v1035, %v1163
  %v1228 = vsel %vm1100, %v1036, %v1164
  %v1229 = vsel %vm1101, %v1037, %v1165
  %v1230 = vsel %vm1102, %v1038, %v1166
  %v1231 = vsel %vm1103, %v1039, %v1167
  %v1232 = vpack.c.bf16 %v1169, %v1168
  %v1233 = vpack.c.bf16 %v1171, %v1170
  %v1234 = vpack.c.bf16 %v1173, %v1172
  %v1235 = vpack.c.bf16 %v1175, %v1174
  %v1236 = vpack.c.bf16 %v1177, %v1176
  %v1237 = vpack.c.bf16 %v1179, %v1178
  %v1238 = vpack.c.bf16 %v1181, %v1180
  %v1239 = vpack.c.bf16 %v1183, %v1182
  %v1240 = vpack.c.bf16 %v1185, %v1184
  %v1241 = vpack.c.bf16 %v1187, %v1186
  %v1242 = vpack.c.bf16 %v1189, %v1188
  %v1243 = vpack.c.bf16 %v1191, %v1190
  %v1244 = vpack.c.bf16 %v1193, %v1192
  %v1245 = vpack.c.bf16 %v1195, %v1194
  %v1246 = vpack.c.bf16 %v1197, %v1196
  %v1247 = vpack.c.bf16 %v1199, %v1198
  %v1248 = vpack.c.bf16 %v1201, %v1200
  %v1249 = vpack.c.bf16 %v1203, %v1202
  %v1250 = vpack.c.bf16 %v1205, %v1204
  %v1251 = vpack.c.bf16 %v1207, %v1206
  %v1252 = vpack.c.bf16 %v1209, %v1208
  %v1253 = vpack.c.bf16 %v1211, %v1210
  %v1254 = vpack.c.bf16 %v1213, %v1212
  %v1255 = vpack.c.bf16 %v1215, %v1214
  %v1256 = vpack.c.bf16 %v1217, %v1216
  %v1257 = vpack.c.bf16 %v1219, %v1218
  %v1258 = vpack.c.bf16 %v1221, %v1220
  %v1259 = vpack.c.bf16 %v1223, %v1222
  %v1260 = vpack.c.bf16 %v1225, %v1224
  %v1261 = vpack.c.bf16 %v1227, %v1226
  %v1262 = vpack.c.bf16 %v1229, %v1228
  %v1263 = vpack.c.bf16 %v1231, %v1230
  %v1296 = vunpack.c.l.b16 %v1232
  %v1297 = vunpack.c.h.b16 %v1232
  %v1298 = vunpack.c.l.b16 %v1233
  %v1299 = vunpack.c.h.b16 %v1233
  %v1300 = vunpack.c.l.b16 %v1234
  %v1301 = vunpack.c.h.b16 %v1234
  %v1302 = vunpack.c.l.b16 %v1235
  %v1303 = vunpack.c.h.b16 %v1235
  %v1304 = vunpack.c.l.b16 %v1236
  %v1305 = vunpack.c.h.b16 %v1236
  %v1306 = vunpack.c.l.b16 %v1237
  %v1307 = vunpack.c.h.b16 %v1237
  %v1308 = vunpack.c.l.b16 %v1238
  %v1309 = vunpack.c.h.b16 %v1238
  %v1310 = vunpack.c.l.b16 %v1239
  %v1311 = vunpack.c.h.b16 %v1239
  %v1312 = vunpack.c.l.b16 %v1240
  %v1313 = vunpack.c.h.b16 %v1240
  %v1314 = vunpack.c.l.b16 %v1241
  %v1315 = vunpack.c.h.b16 %v1241
  %v1316 = vunpack.c.l.b16 %v1242
  %v1317 = vunpack.c.h.b16 %v1242
  %v1318 = vunpack.c.l.b16 %v1243
  %v1319 = vunpack.c.h.b16 %v1243
  %v1320 = vunpack.c.l.b16 %v1244
  %v1321 = vunpack.c.h.b16 %v1244
  %v1322 = vunpack.c.l.b16 %v1245
  %v1323 = vunpack.c.h.b16 %v1245
  %v1324 = vunpack.c.l.b16 %v1246
  %v1325 = vunpack.c.h.b16 %v1246
  %v1326 = vunpack.c.l.b16 %v1247
  %v1327 = vunpack.c.h.b16 %v1247
  %v1328 = vunpack.c.l.b16 %v1248
  %v1329 = vunpack.c.h.b16 %v1248
  %v1330 = vunpack.c.l.b16 %v1249
  %v1331 = vunpack.c.h.b16 %v1249
  %v1332 = vunpack.c.l.b16 %v1250
  %v1333 = vunpack.c.h.b16 %v1250
  %v1334 = vunpack.c.l.b16 %v1251
  %v1335 = vunpack.c.h.b16 %v1251
  %v1336 = vunpack.c.l.b16 %v1252
  %v1337 = vunpack.c.h.b16 %v1252
  %v1338 = vunpack.c.l.b16 %v1253
  %v1339 = vunpack.c.h.b16 %v1253
  %v1340 = vunpack.c.l.b16 %v1254
  %v1341 = vunpack.c.h.b16 %v1254
  %v1342 = vunpack.c.l.b16 %v1255
  %v1343 = vunpack.c.h.b16 %v1255
  %v1344 = vunpack.c.l.b16 %v1256
  %v1345 = vunpack.c.h.b16 %v1256
  %v1346 = vunpack.c.l.b16 %v1257
  %v1347 = vunpack.c.h.b16 %v1257
  %v1348 = vunpack.c.l.b16 %v1258
  %v1349 = vunpack.c.h.b16 %v1258
  %v1350 = vunpack.c.l.b16 %v1259
  %v1351 = vunpack.c.h.b16 %v1259
  %v1352 = vunpack.c.l.b16 %v1260
  %v1353 = vunpack.c.h.b16 %v1260
  %v1354 = vunpack.c.l.b16 %v1261
  %v1355 = vunpack.c.h.b16 %v1261
  %v1356 = vunpack.c.l.b16 %v1262
  %v1357 = vunpack.c.h.b16 %v1262
  %v1358 = vunpack.c.l.b16 %v1263
  %v1359 = vunpack.c.h.b16 %v1263
  %v1360 = vpack.c.b16 %v1296, %v1296
  %v1361 = vpack.c.b16 %v1297, %v1297
  %v1362 = vpack.c.b16 %v1298, %v1298
  %v1363 = vpack.c.b16 %v1299, %v1299
  %v1364 = vpack.c.b16 %v1300, %v1300
  %v1365 = vpack.c.b16 %v1301, %v1301
  %v1366 = vpack.c.b16 %v1302, %v1302
  %v1367 = vpack.c.b16 %v1303, %v1303
  %v1368 = vpack.c.b16 %v1304, %v1304
  %v1369 = vpack.c.b16 %v1305, %v1305
  %v1370 = vpack.c.b16 %v1306, %v1306
  %v1371 = vpack.c.b16 %v1307, %v1307
  %v1372 = vpack.c.b16 %v1308, %v1308
  %v1373 = vpack.c.b16 %v1309, %v1309
  %v1374 = vpack.c.b16 %v1310, %v1310
  %v1375 = vpack.c.b16 %v1311, %v1311
  %v1376 = vpack.c.b16 %v1312, %v1312
  %v1377 = vpack.c.b16 %v1313, %v1313
  %v1378 = vpack.c.b16 %v1314, %v1314
  %v1379 = vpack.c.b16 %v1315, %v1315
  %v1380 = vpack.c.b16 %v1316, %v1316
  %v1381 = vpack.c.b16 %v1317, %v1317
  %v1382 = vpack.c.b16 %v1318, %v1318
  %v1383 = vpack.c.b16 %v1319, %v1319
  %v1384 = vpack.c.b16 %v1320, %v1320
  %v1385 = vpack.c.b16 %v1321, %v1321
  %v1386 = vpack.c.b16 %v1322, %v1322
  %v1387 = vpack.c.b16 %v1323, %v1323
  %v1388 = vpack.c.b16 %v1324, %v1324
  %v1389 = vpack.c.b16 %v1325, %v1325
  %v1390 = vpack.c.b16 %v1326, %v1326
  %v1391 = vpack.c.b16 %v1327, %v1327
  %v1392 = vpack.c.b16 %v1328, %v1328
  %v1393 = vpack.c.b16 %v1329, %v1329
  %v1394 = vpack.c.b16 %v1330, %v1330
  %v1395 = vpack.c.b16 %v1331, %v1331
  %v1396 = vpack.c.b16 %v1332, %v1332
  %v1397 = vpack.c.b16 %v1333, %v1333
  %v1398 = vpack.c.b16 %v1334, %v1334
  %v1399 = vpack.c.b16 %v1335, %v1335
  %v1400 = vpack.c.b16 %v1336, %v1336
  %v1401 = vpack.c.b16 %v1337, %v1337
  %v1402 = vpack.c.b16 %v1338, %v1338
  %v1403 = vpack.c.b16 %v1339, %v1339
  %v1404 = vpack.c.b16 %v1340, %v1340
  %v1405 = vpack.c.b16 %v1341, %v1341
  %v1406 = vpack.c.b16 %v1342, %v1342
  %v1407 = vpack.c.b16 %v1343, %v1343
  %v1408 = vpack.c.b16 %v1344, %v1344
  %v1409 = vpack.c.b16 %v1345, %v1345
  %v1410 = vpack.c.b16 %v1346, %v1346
  %v1411 = vpack.c.b16 %v1347, %v1347
  %v1412 = vpack.c.b16 %v1348, %v1348
  %v1413 = vpack.c.b16 %v1349, %v1349
  %v1414 = vpack.c.b16 %v1350, %v1350
  %v1415 = vpack.c.b16 %v1351, %v1351
  %v1416 = vpack.c.b16 %v1352, %v1352
  %v1417 = vpack.c.b16 %v1353, %v1353
  %v1418 = vpack.c.b16 %v1354, %v1354
  %v1419 = vpack.c.b16 %v1355, %v1355
  %v1420 = vpack.c.b16 %v1356, %v1356
  %v1421 = vpack.c.b16 %v1357, %v1357
  %v1422 = vpack.c.b16 %v1358, %v1358
  %v1423 = vpack.c.b16 %v1359, %v1359
  %1488 = vst [vmem:[%s4] sm:$0xf] %v1360
  %1489 = vst [vmem:[%s4 + $0x4] sm:$0xf] %v1361
  %1490 = vst [vmem:[%s4 + $0x8] sm:$0xf] %v1362
  %1491 = vst [vmem:[%s4 + $0xc] sm:$0xf] %v1363
  %1492 = vst [vmem:[%s4 + $0x10] sm:$0xf] %v1364
  %1493 = vst [vmem:[%s4 + $0x14] sm:$0xf] %v1365
  %1494 = vst [vmem:[%s4 + $0x18] sm:$0xf] %v1366
  %1495 = vst [vmem:[%s4 + $0x1c] sm:$0xf] %v1367
  %1496 = vst [vmem:[%s4 + $0x20] sm:$0xf] %v1368
  %1497 = vst [vmem:[%s4 + $0x24] sm:$0xf] %v1369
  %1498 = vst [vmem:[%s4 + $0x28] sm:$0xf] %v1370
  %1499 = vst [vmem:[%s4 + $0x2c] sm:$0xf] %v1371
  %1500 = vst [vmem:[%s4 + $0x30] sm:$0xf] %v1372
  %1501 = vst [vmem:[%s4 + $0x34] sm:$0xf] %v1373
  %1502 = vst [vmem:[%s4 + $0x38] sm:$0xf] %v1374
  %1503 = vst [vmem:[%s4 + $0x3c] sm:$0xf] %v1375
  %1504 = vst [vmem:[%s4 + $0x40] sm:$0xf] %v1376
  %1505 = vst [vmem:[%s4 + $0x44] sm:$0xf] %v1377
  %1506 = vst [vmem:[%s4 + $0x48] sm:$0xf] %v1378
  %1507 = vst [vmem:[%s4 + $0x4c] sm:$0xf] %v1379
  %1508 = vst [vmem:[%s4 + $0x50] sm:$0xf] %v1380
  %1509 = vst [vmem:[%s4 + $0x54] sm:$0xf] %v1381
  %1510 = vst [vmem:[%s4 + $0x58] sm:$0xf] %v1382
  %1511 = vst [vmem:[%s4 + $0x5c] sm:$0xf] %v1383
  %1512 = vst [vmem:[%s4 + $0x60] sm:$0xf] %v1384
  %1513 = vst [vmem:[%s4 + $0x64] sm:$0xf] %v1385
  %1514 = vst [vmem:[%s4 + $0x68] sm:$0xf] %v1386
  %1515 = vst [vmem:[%s4 + $0x6c] sm:$0xf] %v1387
  %1516 = vst [vmem:[%s4 + $0x70] sm:$0xf] %v1388
  %1517 = vst [vmem:[%s4 + $0x74] sm:$0xf] %v1389
  %1518 = vst [vmem:[%s4 + $0x78] sm:$0xf] %v1390
  %1519 = vst [vmem:[%s4 + $0x7c] sm:$0xf] %v1391
  %1520 = vst [vmem:[%s4 + $0x80] sm:$0xf] %v1392
  %1521 = vst [vmem:[%s4 + $0x84] sm:$0xf] %v1393
  %1522 = vst [vmem:[%s4 + $0x88] sm:$0xf] %v1394
  %1523 = vst [vmem:[%s4 + $0x8c] sm:$0xf] %v1395
  %1524 = vst [vmem:[%s4 + $0x90] sm:$0xf] %v1396
  %1525 = vst [vmem:[%s4 + $0x94] sm:$0xf] %v1397
  %1526 = vst [vmem:[%s4 + $0x98] sm:$0xf] %v1398
  %1527 = vst [vmem:[%s4 + $0x9c] sm:$0xf] %v1399
  %1528 = vst [vmem:[%s4 + $0xa0] sm:$0xf] %v1400
  %1529 = vst [vmem:[%s4 + $0xa4] sm:$0xf] %v1401
  %1530 = vst [vmem:[%s4 + $0xa8] sm:$0xf] %v1402
  %1531 = vst [vmem:[%s4 + $0xac] sm:$0xf] %v1403
  %1532 = vst [vmem:[%s4 + $0xb0] sm:$0xf] %v1404
  %1533 = vst [vmem:[%s4 + $0xb4] sm:$0xf] %v1405
  %1534 = vst [vmem:[%s4 + $0xb8] sm:$0xf] %v1406
  %1535 = vst [vmem:[%s4 + $0xbc] sm:$0xf] %v1407
  %1536 = vst [vmem:[%s4 + $0xc0] sm:$0xf] %v1408
  %1537 = vst [vmem:[%s4 + $0xc4] sm:$0xf] %v1409
  %1538 = vst [vmem:[%s4 + $0xc8] sm:$0xf] %v1410
  %1539 = vst [vmem:[%s4 + $0xcc] sm:$0xf] %v1411
  %1540 = vst [vmem:[%s4 + $0xd0] sm:$0xf] %v1412
  %1541 = vst [vmem:[%s4 + $0xd4] sm:$0xf] %v1413
  %1542 = vst [vmem:[%s4 + $0xd8] sm:$0xf] %v1414
  %1543 = vst [vmem:[%s4 + $0xdc] sm:$0xf] %v1415
  %1544 = vst [vmem:[%s4 + $0xe0] sm:$0xf] %v1416
  %1545 = vst [vmem:[%s4 + $0xe4] sm:$0xf] %v1417
  %1546 = vst [vmem:[%s4 + $0xe8] sm:$0xf] %v1418
  %1547 = vst [vmem:[%s4 + $0xec] sm:$0xf] %v1419
  %1548 = vst [vmem:[%s4 + $0xf0] sm:$0xf] %v1420
  %1549 = vst [vmem:[%s4 + $0xf4] sm:$0xf] %v1421
  %1550 = vst [vmem:[%s4 + $0xf8] sm:$0xf] %v1422
  %1551 = vst [vmem:[%s4 + $0xfc] sm:$0xf] %v1423
  // Predicated region
  $region18: #{discriminator_forward.5} parent=0 // pred_check
    _
  $region19: #{discriminator_forward.5} parent=0 // pred_check_branch
    %1553 = sbr.rel (0) target = $region21
  $region20: #{discriminator_forward.5} parent=0 // pred_region
    _
  $region21: #{discriminator_forward.5} parent=0 // pred_fallthru
    _
  // Predicated region
  $region22: #{discriminator_forward.5} parent=0 // pred_check
    _
  $region23: #{discriminator_forward.5} parent=0 // pred_check_branch
    %1555 = sbr.rel (0) target = $region25
  $region24: #{discriminator_forward.5} parent=0 // pred_region
    _
  $region25: #{discriminator_forward.5} parent=0 // pred_fallthru
    _

// kernel: discriminator_forward.6
$region0: #{discriminator_forward.6}
  #allocation0 [shape = 'u32[]', space=smem, size = 0x4, offset = 0x4, fixed_abs, tag = 'smem constant byte address 0x4 - core index']
  #allocation1 [shape = 'u32[144,128]{1,0:T(1,128)}', space=vmem, size = 0x12000, scoped, tag = 'internal scratch']
  %s0 = inlined_call_operand.vmem [shape: bf16[128,256], index: 0, kind: input, shape index: {}]
  %s1 = inlined_call_operand.vmem [shape: bf16[256,128], index: 1, kind: input, shape index: {}]
  %s2 = inlined_call_operand.vmem [shape: f32[1,128], index: 2, kind: input, shape index: {}]
  %s3 = inlined_call_operand.vmem [shape: f32[1,128], index: 3, kind: input, shape index: {}]
  %s4 = inlined_call_operand.vmem [shape: bf16[128,128], index: 4, kind: output, shape index: {}]
  %s5 = sld [smem:[#allocation0]]
  $region26: #{discriminator_forward.6} parent=0
    _
  %s7 = ssub.s32 1, %s5
  %s8 = scalar_select 0, %s7, %s5
  // Predicated region
  $region2: #{discriminator_forward.6} parent=0 // pred_check
    _
  $region3: #{discriminator_forward.6} parent=0 // pred_check_branch
    %10 = sbr.rel (0) target = $region5
  $region4: #{discriminator_forward.6} parent=0 // pred_region
    _
  $region5: #{discriminator_forward.6} parent=0 // pred_fallthru
    _
  // Predicated region
  $region6: #{discriminator_forward.6} parent=0 // pred_check
    _
  $region7: #{discriminator_forward.6} parent=0 // pred_check_branch
    %12 = sbr.rel (0) target = $region9
  $region8: #{discriminator_forward.6} parent=0 // pred_region
    _
  $region9: #{discriminator_forward.6} parent=0 // pred_fallthru
    _
  // Predicated region
  $region10: #{discriminator_forward.6} parent=0 // pred_check
    _
  $region11: #{discriminator_forward.6} parent=0 // pred_check_branch
    %14 = sbr.rel (0) target = $region13
  $region12: #{discriminator_forward.6} parent=0 // pred_region
    _
  $region13: #{discriminator_forward.6} parent=0 // pred_fallthru
    _
  // Predicated region
  $region14: #{discriminator_forward.6} parent=0 // pred_check
    _
  $region15: #{discriminator_forward.6} parent=0 // pred_check_branch
    %16 = sbr.rel (0) target = $region17
  $region16: #{discriminator_forward.6} parent=0 // pred_region
    _
  $region17: #{discriminator_forward.6} parent=0 // pred_fallthru
    _
  %v18 = vld [vmem:[%s0] sm:$0xff]
  %v19 = vld [vmem:[%s0 + $0x8] sm:$0xff]
  %v20 = vld [vmem:[%s0 + $0x10] sm:$0xff]
  %v21 = vld [vmem:[%s0 + $0x18] sm:$0xff]
  %v22 = vld [vmem:[%s0 + $0x20] sm:$0xff]
  %v23 = vld [vmem:[%s0 + $0x28] sm:$0xff]
  %v24 = vld [vmem:[%s0 + $0x30] sm:$0xff]
  %v25 = vld [vmem:[%s0 + $0x38] sm:$0xff]
  %v26 = vld [vmem:[%s0 + $0x40] sm:$0xff]
  %v27 = vld [vmem:[%s0 + $0x48] sm:$0xff]
  %v28 = vld [vmem:[%s0 + $0x50] sm:$0xff]
  %v29 = vld [vmem:[%s0 + $0x58] sm:$0xff]
  %v30 = vld [vmem:[%s0 + $0x60] sm:$0xff]
  %v31 = vld [vmem:[%s0 + $0x68] sm:$0xff]
  %v32 = vld [vmem:[%s0 + $0x70] sm:$0xff]
  %v33 = vld [vmem:[%s0 + $0x78] sm:$0xff]
  %v34 = vld [vmem:[%s1] sm:$0xf]
  %v35 = vld [vmem:[%s1 + $0x4] sm:$0xf]
  %v36 = vld [vmem:[%s1 + $0x8] sm:$0xf]
  %v37 = vld [vmem:[%s1 + $0xc] sm:$0xf]
  %v38 = vld [vmem:[%s1 + $0x10] sm:$0xf]
  %v39 = vld [vmem:[%s1 + $0x14] sm:$0xf]
  %v40 = vld [vmem:[%s1 + $0x18] sm:$0xf]
  %v41 = vld [vmem:[%s1 + $0x1c] sm:$0xf]
  %v42 = vld [vmem:[%s1 + $0x20] sm:$0xf]
  %v43 = vld [vmem:[%s1 + $0x24] sm:$0xf]
  %v44 = vld [vmem:[%s1 + $0x28] sm:$0xf]
  %v45 = vld [vmem:[%s1 + $0x2c] sm:$0xf]
  %v46 = vld [vmem:[%s1 + $0x30] sm:$0xf]
  %v47 = vld [vmem:[%s1 + $0x34] sm:$0xf]
  %v48 = vld [vmem:[%s1 + $0x38] sm:$0xf]
  %v49 = vld [vmem:[%s1 + $0x3c] sm:$0xf]
  %v50 = vld [vmem:[%s1 + $0x40] sm:$0xf]
  %v51 = vld [vmem:[%s1 + $0x44] sm:$0xf]
  %v52 = vld [vmem:[%s1 + $0x48] sm:$0xf]
  %v53 = vld [vmem:[%s1 + $0x4c] sm:$0xf]
  %v54 = vld [vmem:[%s1 + $0x50] sm:$0xf]
  %v55 = vld [vmem:[%s1 + $0x54] sm:$0xf]
  %v56 = vld [vmem:[%s1 + $0x58] sm:$0xf]
  %v57 = vld [vmem:[%s1 + $0x5c] sm:$0xf]
  %v58 = vld [vmem:[%s1 + $0x60] sm:$0xf]
  %v59 = vld [vmem:[%s1 + $0x64] sm:$0xf]
  %v60 = vld [vmem:[%s1 + $0x68] sm:$0xf]
  %v61 = vld [vmem:[%s1 + $0x6c] sm:$0xf]
  %v62 = vld [vmem:[%s1 + $0x70] sm:$0xf]
  %v63 = vld [vmem:[%s1 + $0x74] sm:$0xf]
  %v64 = vld [vmem:[%s1 + $0x78] sm:$0xf]
  %v65 = vld [vmem:[%s1 + $0x7c] sm:$0xf]
  %v82 = vunpack.c.l.b16 %v18
  %v83 = vunpack.c.h.b16 %v18
  %v84 = vunpack.c.l.b16 %v19
  %v85 = vunpack.c.h.b16 %v19
  %v86 = vunpack.c.l.b16 %v20
  %v87 = vunpack.c.h.b16 %v20
  %v88 = vunpack.c.l.b16 %v21
  %v89 = vunpack.c.h.b16 %v21
  %v90 = vunpack.c.l.b16 %v22
  %v91 = vunpack.c.h.b16 %v22
  %v92 = vunpack.c.l.b16 %v23
  %v93 = vunpack.c.h.b16 %v23
  %v94 = vunpack.c.l.b16 %v24
  %v95 = vunpack.c.h.b16 %v24
  %v96 = vunpack.c.l.b16 %v25
  %v97 = vunpack.c.h.b16 %v25
  %v98 = vunpack.c.l.b16 %v26
  %v99 = vunpack.c.h.b16 %v26
  %v100 = vunpack.c.l.b16 %v27
  %v101 = vunpack.c.h.b16 %v27
  %v102 = vunpack.c.l.b16 %v28
  %v103 = vunpack.c.h.b16 %v28
  %v104 = vunpack.c.l.b16 %v29
  %v105 = vunpack.c.h.b16 %v29
  %v106 = vunpack.c.l.b16 %v30
  %v107 = vunpack.c.h.b16 %v30
  %v108 = vunpack.c.l.b16 %v31
  %v109 = vunpack.c.h.b16 %v31
  %v110 = vunpack.c.l.b16 %v32
  %v111 = vunpack.c.h.b16 %v32
  %v112 = vunpack.c.l.b16 %v33
  %v113 = vunpack.c.h.b16 %v33
  %v114 = vpack.c.b16 %v84, %v82
  %v115 = vpack.c.b16 %v85, %v83
  %v116 = vpack.c.b16 %v88, %v86
  %v117 = vpack.c.b16 %v89, %v87
  %v118 = vpack.c.b16 %v92, %v90
  %v119 = vpack.c.b16 %v93, %v91
  %v120 = vpack.c.b16 %v96, %v94
  %v121 = vpack.c.b16 %v97, %v95
  %v122 = vpack.c.b16 %v100, %v98
  %v123 = vpack.c.b16 %v101, %v99
  %v124 = vpack.c.b16 %v104, %v102
  %v125 = vpack.c.b16 %v105, %v103
  %v126 = vpack.c.b16 %v108, %v106
  %v127 = vpack.c.b16 %v109, %v107
  %v128 = vpack.c.b16 %v112, %v110
  %v129 = vpack.c.b16 %v113, %v111
  %v178 = vunpack.c.l.b16 %v34
  %v179 = vunpack.c.l.b16 %v35
  %v180 = vunpack.c.l.b16 %v36
  %v181 = vunpack.c.l.b16 %v37
  %v182 = vunpack.c.l.b16 %v38
  %v183 = vunpack.c.l.b16 %v39
  %v184 = vunpack.c.l.b16 %v40
  %v185 = vunpack.c.l.b16 %v41
  %v186 = vunpack.c.l.b16 %v42
  %v187 = vunpack.c.l.b16 %v43
  %v188 = vunpack.c.l.b16 %v44
  %v189 = vunpack.c.l.b16 %v45
  %v190 = vunpack.c.l.b16 %v46
  %v191 = vunpack.c.l.b16 %v47
  %v192 = vunpack.c.l.b16 %v48
  %v193 = vunpack.c.l.b16 %v49
  %v194 = vunpack.c.l.b16 %v50
  %v195 = vunpack.c.l.b16 %v51
  %v196 = vunpack.c.l.b16 %v52
  %v197 = vunpack.c.l.b16 %v53
  %v198 = vunpack.c.l.b16 %v54
  %v199 = vunpack.c.l.b16 %v55
  %v200 = vunpack.c.l.b16 %v56
  %v201 = vunpack.c.l.b16 %v57
  %v202 = vunpack.c.l.b16 %v58
  %v203 = vunpack.c.l.b16 %v59
  %v204 = vunpack.c.l.b16 %v60
  %v205 = vunpack.c.l.b16 %v61
  %v206 = vunpack.c.l.b16 %v62
  %v207 = vunpack.c.l.b16 %v63
  %v208 = vunpack.c.l.b16 %v64
  %v209 = vunpack.c.l.b16 %v65
  %v210 = vpack.c.b16 %v179, %v178
  %v211 = vpack.c.b16 %v181, %v180
  %v212 = vpack.c.b16 %v183, %v182
  %v213 = vpack.c.b16 %v185, %v184
  %v214 = vpack.c.b16 %v187, %v186
  %v215 = vpack.c.b16 %v189, %v188
  %v216 = vpack.c.b16 %v191, %v190
  %v217 = vpack.c.b16 %v193, %v192
  %v218 = vpack.c.b16 %v195, %v194
  %v219 = vpack.c.b16 %v197, %v196
  %v220 = vpack.c.b16 %v199, %v198
  %v221 = vpack.c.b16 %v201, %v200
  %v222 = vpack.c.b16 %v203, %v202
  %v223 = vpack.c.b16 %v205, %v204
  %v224 = vpack.c.b16 %v207, %v206
  %v225 = vpack.c.b16 %v209, %v208
  %242 = vmatprep.subr.bf16.mxu0 0
  %243 = vmatpush1.bf16.msra.mxu0 %v210
  %244 = vmatprep.subr.bf16.mxu0 0
  %245 = vmatpush1.bf16.msra.mxu0 %v211
  %246 = vmatprep.subr.bf16.mxu0 0
  %247 = vmatpush1.bf16.msra.mxu0 %v212
  %248 = vmatprep.subr.bf16.mxu0 0
  %249 = vmatpush1.bf16.msra.mxu0 %v213
  %250 = vmatprep.subr.bf16.mxu0 0
  %251 = vmatpush1.bf16.msra.mxu0 %v214
  %252 = vmatprep.subr.bf16.mxu0 0
  %253 = vmatpush1.bf16.msra.mxu0 %v215
  %254 = vmatprep.subr.bf16.mxu0 0
  %255 = vmatpush1.bf16.msra.mxu0 %v216
  %256 = vmatprep.subr.bf16.mxu0 0
  %257 = vmatpush1.bf16.msra.mxu0 %v217
  %258 = vmatprep.subr.bf16.mxu0 0
  %259 = vmatpush1.bf16.msra.mxu0 %v218
  %260 = vmatprep.subr.bf16.mxu0 0
  %261 = vmatpush1.bf16.msra.mxu0 %v219
  %262 = vmatprep.subr.bf16.mxu0 0
  %263 = vmatpush1.bf16.msra.mxu0 %v220
  %264 = vmatprep.subr.bf16.mxu0 0
  %265 = vmatpush1.bf16.msra.mxu0 %v221
  %266 = vmatprep.subr.bf16.mxu0 0
  %267 = vmatpush1.bf16.msra.mxu0 %v222
  %268 = vmatprep.subr.bf16.mxu0 0
  %269 = vmatpush1.bf16.msra.mxu0 %v223
  %270 = vmatprep.subr.bf16.mxu0 0
  %271 = vmatpush1.bf16.msra.mxu0 %v224
  %272 = vmatprep.subr.bf16.mxu0 0
  %273 = vmatpush1.bf16.msra.mxu0 %v225
  %274 = vmatprep.mubr.bf16.mxu0 %v115
  %275 = vmatmul.mubr.bf16.gmra.mrb[0].mxu0 %v114
  %v276 = vpop.f32.mrb[0].mxu0
  %v277 = vadd.f32 0.0, %v276
  %v278 = vpop.f32.mrb[0].mxu0
  %v279 = vpop.f32.mrb[0].mxu0
  %v280 = vadd.f32 0.0, %v279
  %v281 = vpop.f32.mrb[0].mxu0
  %282 = vmatprep.mubr.bf16.mxu0 %v117
  %283 = vmatmul.mubr.bf16.gmra.mrb[0].mxu0 %v116
  %v284 = vpop.f32.mrb[0].mxu0
  %v285 = vadd.f32 0.0, %v284
  %v286 = vpop.f32.mrb[0].mxu0
  %v287 = vpop.f32.mrb[0].mxu0
  %v288 = vadd.f32 0.0, %v287
  %v289 = vpop.f32.mrb[0].mxu0
  %290 = vmatprep.mubr.bf16.mxu0 %v119
  %291 = vmatmul.mubr.bf16.gmra.mrb[0].mxu0 %v118
  %v292 = vpop.f32.mrb[0].mxu0
  %v293 = vadd.f32 0.0, %v292
  %v294 = vpop.f32.mrb[0].mxu0
  %v295 = vpop.f32.mrb[0].mxu0
  %v296 = vadd.f32 0.0, %v295
  %v297 = vpop.f32.mrb[0].mxu0
  %298 = vmatprep.mubr.bf16.mxu0 %v121
  %299 = vmatmul.mubr.bf16.gmra.mrb[0].mxu0 %v120
  %v300 = vpop.f32.mrb[0].mxu0
  %v301 = vadd.f32 0.0, %v300
  %v302 = vpop.f32.mrb[0].mxu0
  %v303 = vpop.f32.mrb[0].mxu0
  %v304 = vadd.f32 0.0, %v303
  %v305 = vpop.f32.mrb[0].mxu0
  %306 = vmatprep.mubr.bf16.mxu0 %v123
  %307 = vmatmul.mubr.bf16.gmra.mrb[0].mxu0 %v122
  %v308 = vpop.f32.mrb[0].mxu0
  %v309 = vadd.f32 0.0, %v308
  %v310 = vpop.f32.mrb[0].mxu0
  %v311 = vpop.f32.mrb[0].mxu0
  %v312 = vadd.f32 0.0, %v311
  %v313 = vpop.f32.mrb[0].mxu0
  %314 = vmatprep.mubr.bf16.mxu0 %v125
  %315 = vmatmul.mubr.bf16.gmra.mrb[0].mxu0 %v124
  %v316 = vpop.f32.mrb[0].mxu0
  %v317 = vadd.f32 0.0, %v316
  %v318 = vpop.f32.mrb[0].mxu0
  %v319 = vpop.f32.mrb[0].mxu0
  %v320 = vadd.f32 0.0, %v319
  %v321 = vpop.f32.mrb[0].mxu0
  %322 = vmatprep.mubr.bf16.mxu0 %v127
  %323 = vmatmul.mubr.bf16.gmra.mrb[0].mxu0 %v126
  %v324 = vpop.f32.mrb[0].mxu0
  %v325 = vadd.f32 0.0, %v324
  %v326 = vpop.f32.mrb[0].mxu0
  %v327 = vpop.f32.mrb[0].mxu0
  %v328 = vadd.f32 0.0, %v327
  %v329 = vpop.f32.mrb[0].mxu0
  %330 = vmatprep.mubr.bf16.mxu0 %v129
  %331 = vmatmul.mubr.bf16.gmra.mrb[0].mxu0 %v128
  %v332 = vpop.f32.mrb[0].mxu0
  %v333 = vadd.f32 0.0, %v332
  %v334 = vpop.f32.mrb[0].mxu0
  %v335 = vpop.f32.mrb[0].mxu0
  %v336 = vadd.f32 0.0, %v335
  %v337 = vpop.f32.mrb[0].mxu0
  %338 = vdwg.mxu0
  %v339 = vadd.f32 %v277, %v280
  %v340 = vadd.f32 %v339, %v285
  %v341 = vadd.f32 %v340, %v288
  %v342 = vadd.f32 %v341, %v293
  %v343 = vadd.f32 %v342, %v296
  %v344 = vadd.f32 %v343, %v301
  %v345 = vadd.f32 %v344, %v304
  %v346 = vadd.f32 %v345, %v309
  %v347 = vadd.f32 %v346, %v312
  %v348 = vadd.f32 %v347, %v317
  %v349 = vadd.f32 %v348, %v320
  %v350 = vadd.f32 %v349, %v325
  %v351 = vadd.f32 %v350, %v328
  %v352 = vadd.f32 %v351, %v333
  %v353 = vadd.f32 %v352, %v336
  %v354 = vrot.slane %v353, 4
  %v355 = vadd.f32 %v353, %v354
  %v356 = vrot.slane %v355, 2
  %v357 = vadd.f32 %v355, %v356
  %v358 = vrot.slane %v357, 1
  %v359 = vadd.f32 %v357, %v358
  %v360 = vmul.f32 %v359, 0.0078125
  %v361 = vsub.f32 %v277, %v360
  %v362 = vsub.f32 %v280, %v360
  %v363 = vsub.f32 %v285, %v360
  %v364 = vsub.f32 %v288, %v360
  %v365 = vsub.f32 %v293, %v360
  %v366 = vsub.f32 %v296, %v360
  %v367 = vsub.f32 %v301, %v360
  %v368 = vsub.f32 %v304, %v360
  %v369 = vsub.f32 %v309, %v360
  %v370 = vsub.f32 %v312, %v360
  %v371 = vsub.f32 %v317, %v360
  %v372 = vsub.f32 %v320, %v360
  %v373 = vsub.f32 %v325, %v360
  %v374 = vsub.f32 %v328, %v360
  %v375 = vsub.f32 %v333, %v360
  %v376 = vsub.f32 %v336, %v360
  %v377 = vmul.f32 %v361, %v361
  %v378 = vmul.f32 %v362, %v362
  %v379 = vmul.f32 %v363, %v363
  %v380 = vmul.f32 %v364, %v364
  %v381 = vmul.f32 %v365, %v365
  %v382 = vmul.f32 %v366, %v366
  %v383 = vmul.f32 %v367, %v367
  %v384 = vmul.f32 %v368, %v368
  %v385 = vmul.f32 %v369, %v369
  %v386 = vmul.f32 %v370, %v370
  %v387 = vmul.f32 %v371, %v371
  %v388 = vmul.f32 %v372, %v372
  %v389 = vmul.f32 %v373, %v373
  %v390 = vmul.f32 %v374, %v374
  %v391 = vmul.f32 %v375, %v375
  %v392 = vmul.f32 %v376, %v376
  %v393 = vadd.f32 %v377, %v378
  %v394 = vadd.f32 %v393, %v379
  %v395 = vadd.f32 %v394, %v380
  %v396 = vadd.f32 %v395, %v381
  %v397 = vadd.f32 %v396, %v382
  %v398 = vadd.f32 %v397, %v383
  %v399 = vadd.f32 %v398, %v384
  %v400 = vadd.f32 %v399, %v385
  %v401 = vadd.f32 %v400, %v386
  %v402 = vadd.f32 %v401, %v387
  %v403 = vadd.f32 %v402, %v388
  %v404 = vadd.f32 %v403, %v389
  %v405 = vadd.f32 %v404, %v390
  %v406 = vadd.f32 %v405, %v391
  %v407 = vadd.f32 %v406, %v392
  %v408 = vrot.slane %v407, 4
  %v409 = vadd.f32 %v407, %v408
  %v410 = vrot.slane %v409, 2
  %v411 = vadd.f32 %v409, %v410
  %v412 = vrot.slane %v411, 1
  %v413 = vadd.f32 %v411, %v412
  %v414 = vmul.f32 %v413, 0.0078125
  %v415 = vld [vmem:[%s2] sm:$0x1]
  %v416 = vadd.f32 %v414, 1e-05
  %v417 = vrsqrt.pop %v416
  %v418 = vmul.f32 %v415, %v417
  %v420 = vlaneseq
  %v421 = vshrl.u32 %v420, 7
  %v422 = vsub.s32 0, %v421
  %v423 = vrot.slane %v418, %v422
  %v425 = vmul.f32 %v361, %v423
  %v426 = vmul.f32 %v362, %v423
  %v427 = vmul.f32 %v363, %v423
  %v428 = vmul.f32 %v364, %v423
  %v429 = vmul.f32 %v365, %v423
  %v430 = vmul.f32 %v366, %v423
  %v431 = vmul.f32 %v367, %v423
  %v432 = vmul.f32 %v368, %v423
  %v433 = vmul.f32 %v369, %v423
  %v434 = vmul.f32 %v370, %v423
  %v435 = vmul.f32 %v371, %v423
  %v436 = vmul.f32 %v372, %v423
  %v437 = vmul.f32 %v373, %v423
  %v438 = vmul.f32 %v374, %v423
  %v439 = vmul.f32 %v375, %v423
  %v440 = vmul.f32 %v376, %v423
  %v441 = vld [vmem:[%s3] sm:$0x1]
  %v443 = vlaneseq
  %v444 = vshrl.u32 %v443, 7
  %v445 = vsub.s32 0, %v444
  %v446 = vrot.slane %v441, %v445
  %v448 = vadd.f32 %v425, %v446
  %v449 = vadd.f32 %v426, %v446
  %v450 = vadd.f32 %v427, %v446
  %v451 = vadd.f32 %v428, %v446
  %v452 = vadd.f32 %v429, %v446
  %v453 = vadd.f32 %v430, %v446
  %v454 = vadd.f32 %v431, %v446
  %v455 = vadd.f32 %v432, %v446
  %v456 = vadd.f32 %v433, %v446
  %v457 = vadd.f32 %v434, %v446
  %v458 = vadd.f32 %v435, %v446
  %v459 = vadd.f32 %v436, %v446
  %v460 = vadd.f32 %v437, %v446
  %v461 = vadd.f32 %v438, %v446
  %v462 = vadd.f32 %v439, %v446
  %v463 = vadd.f32 %v440, %v446
  %vm464 = vcmp.ge.f32.partialorder %v448, 0.0
  %vm465 = vcmp.ge.f32.partialorder %v449, 0.0
  %vm466 = vcmp.ge.f32.partialorder %v450, 0.0
  %vm467 = vcmp.ge.f32.partialorder %v451, 0.0
  %vm468 = vcmp.ge.f32.partialorder %v452, 0.0
  %vm469 = vcmp.ge.f32.partialorder %v453, 0.0
  %vm470 = vcmp.ge.f32.partialorder %v454, 0.0
  %vm471 = vcmp.ge.f32.partialorder %v455, 0.0
  %vm472 = vcmp.ge.f32.partialorder %v456, 0.0
  %vm473 = vcmp.ge.f32.partialorder %v457, 0.0
  %vm474 = vcmp.ge.f32.partialorder %v458, 0.0
  %vm475 = vcmp.ge.f32.partialorder %v459, 0.0
  %vm476 = vcmp.ge.f32.partialorder %v460, 0.0
  %vm477 = vcmp.ge.f32.partialorder %v461, 0.0
  %vm478 = vcmp.ge.f32.partialorder %v462, 0.0
  %vm479 = vcmp.ge.f32.partialorder %v463, 0.0
  %v480 = vmul.f32 %v448, 0.2
  %v481 = vmul.f32 %v449, 0.2
  %v482 = vmul.f32 %v450, 0.2
  %v483 = vmul.f32 %v451, 0.2
  %v484 = vmul.f32 %v452, 0.2
  %v485 = vmul.f32 %v453, 0.2
  %v486 = vmul.f32 %v454, 0.2
  %v487 = vmul.f32 %v455, 0.2
  %v488 = vmul.f32 %v456, 0.2
  %v489 = vmul.f32 %v457, 0.2
  %v490 = vmul.f32 %v458, 0.2
  %v491 = vmul.f32 %v459, 0.2
  %v492 = vmul.f32 %v460, 0.2
  %v493 = vmul.f32 %v461, 0.2
  %v494 = vmul.f32 %v462, 0.2
  %v495 = vmul.f32 %v463, 0.2
  %v496 = vsel %vm464, %v448, %v480
  %v497 = vsel %vm465, %v449, %v481
  %v498 = vsel %vm466, %v450, %v482
  %v499 = vsel %vm467, %v451, %v483
  %v500 = vsel %vm468, %v452, %v484
  %v501 = vsel %vm469, %v453, %v485
  %v502 = vsel %vm470, %v454, %v486
  %v503 = vsel %vm471, %v455, %v487
  %v504 = vsel %vm472, %v456, %v488
  %v505 = vsel %vm473, %v457, %v489
  %v506 = vsel %vm474, %v458, %v490
  %v507 = vsel %vm475, %v459, %v491
  %v508 = vsel %vm476, %v460, %v492
  %v509 = vsel %vm477, %v461, %v493
  %v510 = vsel %vm478, %v462, %v494
  %v511 = vsel %vm479, %v463, %v495
  %v512 = vpack.c.bf16 %v497, %v496
  %v513 = vpack.c.bf16 %v499, %v498
  %v514 = vpack.c.bf16 %v501, %v500
  %v515 = vpack.c.bf16 %v503, %v502
  %v516 = vpack.c.bf16 %v505, %v504
  %v517 = vpack.c.bf16 %v507, %v506
  %v518 = vpack.c.bf16 %v509, %v508
  %v519 = vpack.c.bf16 %v511, %v510
  %v528 = vunpack.c.l.b16 %v512
  %v529 = vunpack.c.h.b16 %v512
  %v530 = vunpack.c.l.b16 %v513
  %v531 = vunpack.c.h.b16 %v513
  %v532 = vunpack.c.l.b16 %v514
  %v533 = vunpack.c.h.b16 %v514
  %v534 = vunpack.c.l.b16 %v515
  %v535 = vunpack.c.h.b16 %v515
  %v536 = vunpack.c.l.b16 %v516
  %v537 = vunpack.c.h.b16 %v516
  %v538 = vunpack.c.l.b16 %v517
  %v539 = vunpack.c.h.b16 %v517
  %v540 = vunpack.c.l.b16 %v518
  %v541 = vunpack.c.h.b16 %v518
  %v542 = vunpack.c.l.b16 %v519
  %v543 = vunpack.c.h.b16 %v519
  %v544 = vpack.c.b16 %v528, %v528
  %v545 = vpack.c.b16 %v529, %v529
  %v546 = vpack.c.b16 %v530, %v530
  %v547 = vpack.c.b16 %v531, %v531
  %v548 = vpack.c.b16 %v532, %v532
  %v549 = vpack.c.b16 %v533, %v533
  %v550 = vpack.c.b16 %v534, %v534
  %v551 = vpack.c.b16 %v535, %v535
  %v552 = vpack.c.b16 %v536, %v536
  %v553 = vpack.c.b16 %v537, %v537
  %v554 = vpack.c.b16 %v538, %v538
  %v555 = vpack.c.b16 %v539, %v539
  %v556 = vpack.c.b16 %v540, %v540
  %v557 = vpack.c.b16 %v541, %v541
  %v558 = vpack.c.b16 %v542, %v542
  %v559 = vpack.c.b16 %v543, %v543
  %576 = vst [vmem:[%s4] sm:$0xf] %v544
  %577 = vst [vmem:[%s4 + $0x4] sm:$0xf] %v545
  %578 = vst [vmem:[%s4 + $0x8] sm:$0xf] %v546
  %579 = vst [vmem:[%s4 + $0xc] sm:$0xf] %v547
  %580 = vst [vmem:[%s4 + $0x10] sm:$0xf] %v548
  %581 = vst [vmem:[%s4 + $0x14] sm:$0xf] %v549
  %582 = vst [vmem:[%s4 + $0x18] sm:$0xf] %v550
  %583 = vst [vmem:[%s4 + $0x1c] sm:$0xf] %v551
  %584 = vst [vmem:[%s4 + $0x20] sm:$0xf] %v552
  %585 = vst [vmem:[%s4 + $0x24] sm:$0xf] %v553
  %586 = vst [vmem:[%s4 + $0x28] sm:$0xf] %v554
  %587 = vst [vmem:[%s4 + $0x2c] sm:$0xf] %v555
  %588 = vst [vmem:[%s4 + $0x30] sm:$0xf] %v556
  %589 = vst [vmem:[%s4 + $0x34] sm:$0xf] %v557
  %590 = vst [vmem:[%s4 + $0x38] sm:$0xf] %v558
  %591 = vst [vmem:[%s4 + $0x3c] sm:$0xf] %v559
  // Predicated region
  $region18: #{discriminator_forward.6} parent=0 // pred_check
    _
  $region19: #{discriminator_forward.6} parent=0 // pred_check_branch
    %593 = sbr.rel (0) target = $region21
  $region20: #{discriminator_forward.6} parent=0 // pred_region
    _
  $region21: #{discriminator_forward.6} parent=0 // pred_fallthru
    _
  // Predicated region
  $region22: #{discriminator_forward.6} parent=0 // pred_check
    _
  $region23: #{discriminator_forward.6} parent=0 // pred_check_branch
    %595 = sbr.rel (0) target = $region25
  $region24: #{discriminator_forward.6} parent=0 // pred_region
    _
  $region25: #{discriminator_forward.6} parent=0 // pred_fallthru
    _

// kernel: discriminator_forward.7
$region0: #{discriminator_forward.7}
  #allocation0 [shape = 'u32[]', space=smem, size = 0x4, offset = 0x4, fixed_abs, tag = 'smem constant byte address 0x4 - core index']
  #allocation1 [shape = 'u32[144,128]{1,0:T(1,128)}', space=vmem, size = 0x12000, scoped, tag = 'internal scratch']
  #allocation2 [shape = 'f32[1,1]{1,0:T(1,128)S(6)}', space=smem, size = 0x200, scoped, tag = 'scoped memory for discriminator_forward.7']
  %s0 = inlined_call_operand.vmem [shape: bf16[32,512], index: 0, kind: input, shape index: {}]
  %s1 = inlined_call_operand.vmem [shape: bf16[512,128], index: 1, kind: input, shape index: {}]
  %s2 = inlined_call_operand.vmem [shape: f32[1,128], index: 2, kind: input, shape index: {}]
  %s3 = inlined_call_operand.vmem [shape: f32[1,128], index: 3, kind: input, shape index: {}]
  %s4 = inlined_call_operand.vmem [shape: f32[16,128], index: 4, kind: input, shape index: {}]
  %s5 = inlined_call_operand.vmem [shape: f32[2,32], index: 5, kind: input, shape index: {}]
  %s6 = inlined_call_operand.vmem [shape: f32[1,32], index: 6, kind: input, shape index: {}]
  %s7 = inlined_call_operand.<no memory space> [shape: f32[1,1], index: 7, kind: input, shape index: {}]
  %s8 = inlined_call_operand.vmem [shape: f32[2,1], index: 8, kind: output, shape index: {}]
  %s9 = sld [smem:[#allocation0]]
  $region42: #{discriminator_forward.7} parent=0
    _
  %s11 = ssub.s32 1, %s9
  %s12 = scalar_select 0, %s11, %s9
  %13 = sst [smem:[#allocation2]] %s7
  // Predicated region
  $region2: #{discriminator_forward.7} parent=0 // pred_check
    _
  $region3: #{discriminator_forward.7} parent=0 // pred_check_branch
    %15 = sbr.rel (0) target = $region5
  $region4: #{discriminator_forward.7} parent=0 // pred_region
    _
  $region5: #{discriminator_forward.7} parent=0 // pred_fallthru
    _
  // Predicated region
  $region6: #{discriminator_forward.7} parent=0 // pred_check
    _
  $region7: #{discriminator_forward.7} parent=0 // pred_check_branch
    %17 = sbr.rel (0) target = $region9
  $region8: #{discriminator_forward.7} parent=0 // pred_region
    _
  $region9: #{discriminator_forward.7} parent=0 // pred_fallthru
    _
  // Predicated region
  $region10: #{discriminator_forward.7} parent=0 // pred_check
    _
  $region11: #{discriminator_forward.7} parent=0 // pred_check_branch
    %19 = sbr.rel (0) target = $region13
  $region12: #{discriminator_forward.7} parent=0 // pred_region
    _
  $region13: #{discriminator_forward.7} parent=0 // pred_fallthru
    _
  // Predicated region
  $region14: #{discriminator_forward.7} parent=0 // pred_check
    _
  $region15: #{discriminator_forward.7} parent=0 // pred_check_branch
    %21 = sbr.rel (0) target = $region17
  $region16: #{discriminator_forward.7} parent=0 // pred_region
    _
  $region17: #{discriminator_forward.7} parent=0 // pred_fallthru
    _
  // Predicated region
  $region18: #{discriminator_forward.7} parent=0 // pred_check
    _
  $region19: #{discriminator_forward.7} parent=0 // pred_check_branch
    %23 = sbr.rel (0) target = $region21
  $region20: #{discriminator_forward.7} parent=0 // pred_region
    _
  $region21: #{discriminator_forward.7} parent=0 // pred_fallthru
    _
  // Predicated region
  $region22: #{discriminator_forward.7} parent=0 // pred_check
    _
  $region23: #{discriminator_forward.7} parent=0 // pred_check_branch
    %25 = sbr.rel (0) target = $region25
  $region24: #{discriminator_forward.7} parent=0 // pred_region
    _
  $region25: #{discriminator_forward.7} parent=0 // pred_fallthru
    _
  // Predicated region
  $region26: #{discriminator_forward.7} parent=0 // pred_check
    _
  $region27: #{discriminator_forward.7} parent=0 // pred_check_branch
    %27 = sbr.rel (0) target = $region29
  $region28: #{discriminator_forward.7} parent=0 // pred_region
    _
  $region29: #{discriminator_forward.7} parent=0 // pred_fallthru
    _
  // Predicated region
  $region30: #{discriminator_forward.7} parent=0 // pred_check
    _
  $region31: #{discriminator_forward.7} parent=0 // pred_check_branch
    %29 = sbr.rel (0) target = $region33
  $region32: #{discriminator_forward.7} parent=0 // pred_region
    _
  $region33: #{discriminator_forward.7} parent=0 // pred_fallthru
    _
  %v31 = vld [vmem:[%s0] sm:$0xff]
  %v32 = vld [vmem:[%s0 + $0x8] sm:$0xff]
  %v33 = vld [vmem:[%s0 + $0x10] sm:$0xff]
  %v34 = vld [vmem:[%s0 + $0x18] sm:$0xff]
  %v35 = vld [vmem:[%s0 + $0x20] sm:$0xff]
  %v36 = vld [vmem:[%s0 + $0x28] sm:$0xff]
  %v37 = vld [vmem:[%s0 + $0x30] sm:$0xff]
  %v38 = vld [vmem:[%s0 + $0x38] sm:$0xff]
  %v39 = vld [vmem:[%s1] sm:$0xf]
  %v40 = vld [vmem:[%s1 + $0x4] sm:$0xf]
  %v41 = vld [vmem:[%s1 + $0x8] sm:$0xf]
  %v42 = vld [vmem:[%s1 + $0xc] sm:$0xf]
  %v43 = vld [vmem:[%s1 + $0x10] sm:$0xf]
  %v44 = vld [vmem:[%s1 + $0x14] sm:$0xf]
  %v45 = vld [vmem:[%s1 + $0x18] sm:$0xf]
  %v46 = vld [vmem:[%s1 + $0x1c] sm:$0xf]
  %v47 = vld [vmem:[%s1 + $0x20] sm:$0xf]
  %v48 = vld [vmem:[%s1 + $0x24] sm:$0xf]
  %v49 = vld [vmem:[%s1 + $0x28] sm:$0xf]
  %v50 = vld [vmem:[%s1 + $0x2c] sm:$0xf]
  %v51 = vld [vmem:[%s1 + $0x30] sm:$0xf]
  %v52 = vld [vmem:[%s1 + $0x34] sm:$0xf]
  %v53 = vld [vmem:[%s1 + $0x38] sm:$0xf]
  %v54 = vld [vmem:[%s1 + $0x3c] sm:$0xf]
  %v55 = vld [vmem:[%s1 + $0x40] sm:$0xf]
  %v56 = vld [vmem:[%s1 + $0x44] sm:$0xf]
  %v57 = vld [vmem:[%s1 + $0x48] sm:$0xf]
  %v58 = vld [vmem:[%s1 + $0x4c] sm:$0xf]
  %v59 = vld [vmem:[%s1 + $0x50] sm:$0xf]
  %v60 = vld [vmem:[%s1 + $0x54] sm:$0xf]
  %v61 = vld [vmem:[%s1 + $0x58] sm:$0xf]
  %v62 = vld [vmem:[%s1 + $0x5c] sm:$0xf]
  %v63 = vld [vmem:[%s1 + $0x60] sm:$0xf]
  %v64 = vld [vmem:[%s1 + $0x64] sm:$0xf]
  %v65 = vld [vmem:[%s1 + $0x68] sm:$0xf]
  %v66 = vld [vmem:[%s1 + $0x6c] sm:$0xf]
  %v67 = vld [vmem:[%s1 + $0x70] sm:$0xf]
  %v68 = vld [vmem:[%s1 + $0x74] sm:$0xf]
  %v69 = vld [vmem:[%s1 + $0x78] sm:$0xf]
  %v70 = vld [vmem:[%s1 + $0x7c] sm:$0xf]
  %v71 = vld [vmem:[%s1 + $0x80] sm:$0xf]
  %v72 = vld [vmem:[%s1 + $0x84] sm:$0xf]
  %v73 = vld [vmem:[%s1 + $0x88] sm:$0xf]
  %v74 = vld [vmem:[%s1 + $0x8c] sm:$0xf]
  %v75 = vld [vmem:[%s1 + $0x90] sm:$0xf]
  %v76 = vld [vmem:[%s1 + $0x94] sm:$0xf]
  %v77 = vld [vmem:[%s1 + $0x98] sm:$0xf]
  %v78 = vld [vmem:[%s1 + $0x9c] sm:$0xf]
  %v79 = vld [vmem:[%s1 + $0xa0] sm:$0xf]
  %v80 = vld [vmem:[%s1 + $0xa4] sm:$0xf]
  %v81 = vld [vmem:[%s1 + $0xa8] sm:$0xf]
  %v82 = vld [vmem:[%s1 + $0xac] sm:$0xf]
  %v83 = vld [vmem:[%s1 + $0xb0] sm:$0xf]
  %v84 = vld [vmem:[%s1 + $0xb4] sm:$0xf]
  %v85 = vld [vmem:[%s1 + $0xb8] sm:$0xf]
  %v86 = vld [vmem:[%s1 + $0xbc] sm:$0xf]
  %v87 = vld [vmem:[%s1 + $0xc0] sm:$0xf]
  %v88 = vld [vmem:[%s1 + $0xc4] sm:$0xf]
  %v89 = vld [vmem:[%s1 + $0xc8] sm:$0xf]
  %v90 = vld [vmem:[%s1 + $0xcc] sm:$0xf]
  %v91 = vld [vmem:[%s1 + $0xd0] sm:$0xf]
  %v92 = vld [vmem:[%s1 + $0xd4] sm:$0xf]
  %v93 = vld [vmem:[%s1 + $0xd8] sm:$0xf]
  %v94 = vld [vmem:[%s1 + $0xdc] sm:$0xf]
  %v95 = vld [vmem:[%s1 + $0xe0] sm:$0xf]
  %v96 = vld [vmem:[%s1 + $0xe4] sm:$0xf]
  %v97 = vld [vmem:[%s1 + $0xe8] sm:$0xf]
  %v98 = vld [vmem:[%s1 + $0xec] sm:$0xf]
  %v99 = vld [vmem:[%s1 + $0xf0] sm:$0xf]
  %v100 = vld [vmem:[%s1 + $0xf4] sm:$0xf]
  %v101 = vld [vmem:[%s1 + $0xf8] sm:$0xf]
  %v102 = vld [vmem:[%s1 + $0xfc] sm:$0xf]
  %v111 = vunpack.c.l.b16 %v31
  %v112 = vunpack.c.h.b16 %v31
  %v113 = vunpack.c.l.b16 %v32
  %v114 = vunpack.c.h.b16 %v32
  %v115 = vunpack.c.l.b16 %v33
  %v116 = vunpack.c.h.b16 %v33
  %v117 = vunpack.c.l.b16 %v34
  %v118 = vunpack.c.h.b16 %v34
  %v119 = vunpack.c.l.b16 %v35
  %v120 = vunpack.c.h.b16 %v35
  %v121 = vunpack.c.l.b16 %v36
  %v122 = vunpack.c.h.b16 %v36
  %v123 = vunpack.c.l.b16 %v37
  %v124 = vunpack.c.h.b16 %v37
  %v125 = vunpack.c.l.b16 %v38
  %v126 = vunpack.c.h.b16 %v38
  %v127 = vpack.c.b16 %v115, %v111
  %v128 = vpack.c.b16 %v116, %v112
  %v129 = vpack.c.b16 %v117, %v113
  %v130 = vpack.c.b16 %v118, %v114
  %v131 = vpack.c.b16 %v123, %v119
  %v132 = vpack.c.b16 %v124, %v120
  %v133 = vpack.c.b16 %v125, %v121
  %v134 = vpack.c.b16 %v126, %v122
  %v207 = vunpack.c.l.b16 %v39
  %v208 = vunpack.c.l.b16 %v40
  %v209 = vunpack.c.l.b16 %v41
  %v210 = vunpack.c.l.b16 %v42
  %v211 = vunpack.c.l.b16 %v43
  %v212 = vunpack.c.l.b16 %v44
  %v213 = vunpack.c.l.b16 %v45
  %v214 = vunpack.c.l.b16 %v46
  %v215 = vunpack.c.l.b16 %v47
  %v216 = vunpack.c.l.b16 %v48
  %v217 = vunpack.c.l.b16 %v49
  %v218 = vunpack.c.l.b16 %v50
  %v219 = vunpack.c.l.b16 %v51
  %v220 = vunpack.c.l.b16 %v52
  %v221 = vunpack.c.l.b16 %v53
  %v222 = vunpack.c.l.b16 %v54
  %v223 = vunpack.c.l.b16 %v55
  %v224 = vunpack.c.l.b16 %v56
  %v225 = vunpack.c.l.b16 %v57
  %v226 = vunpack.c.l.b16 %v58
  %v227 = vunpack.c.l.b16 %v59
  %v228 = vunpack.c.l.b16 %v60
  %v229 = vunpack.c.l.b16 %v61
  %v230 = vunpack.c.l.b16 %v62
  %v231 = vunpack.c.l.b16 %v63
  %v232 = vunpack.c.l.b16 %v64
  %v233 = vunpack.c.l.b16 %v65
  %v234 = vunpack.c.l.b16 %v66
  %v235 = vunpack.c.l.b16 %v67
  %v236 = vunpack.c.l.b16 %v68
  %v237 = vunpack.c.l.b16 %v69
  %v238 = vunpack.c.l.b16 %v70
  %v239 = vunpack.c.l.b16 %v71
  %v240 = vunpack.c.l.b16 %v72
  %v241 = vunpack.c.l.b16 %v73
  %v242 = vunpack.c.l.b16 %v74
  %v243 = vunpack.c.l.b16 %v75
  %v244 = vunpack.c.l.b16 %v76
  %v245 = vunpack.c.l.b16 %v77
  %v246 = vunpack.c.l.b16 %v78
  %v247 = vunpack.c.l.b16 %v79
  %v248 = vunpack.c.l.b16 %v80
  %v249 = vunpack.c.l.b16 %v81
  %v250 = vunpack.c.l.b16 %v82
  %v251 = vunpack.c.l.b16 %v83
  %v252 = vunpack.c.l.b16 %v84
  %v253 = vunpack.c.l.b16 %v85
  %v254 = vunpack.c.l.b16 %v86
  %v255 = vunpack.c.l.b16 %v87
  %v256 = vunpack.c.l.b16 %v88
  %v257 = vunpack.c.l.b16 %v89
  %v258 = vunpack.c.l.b16 %v90
  %v259 = vunpack.c.l.b16 %v91
  %v260 = vunpack.c.l.b16 %v92
  %v261 = vunpack.c.l.b16 %v93
  %v262 = vunpack.c.l.b16 %v94
  %v263 = vunpack.c.l.b16 %v95
  %v264 = vunpack.c.l.b16 %v96
  %v265 = vunpack.c.l.b16 %v97
  %v266 = vunpack.c.l.b16 %v98
  %v267 = vunpack.c.l.b16 %v99
  %v268 = vunpack.c.l.b16 %v100
  %v269 = vunpack.c.l.b16 %v101
  %v270 = vunpack.c.l.b16 %v102
  %v271 = vpack.c.b16 %v208, %v207
  %v272 = vpack.c.b16 %v210, %v209
  %v273 = vpack.c.b16 %v212, %v211
  %v274 = vpack.c.b16 %v214, %v213
  %v275 = vpack.c.b16 %v216, %v215
  %v276 = vpack.c.b16 %v218, %v217
  %v277 = vpack.c.b16 %v220, %v219
  %v278 = vpack.c.b16 %v222, %v221
  %v279 = vpack.c.b16 %v224, %v223
  %v280 = vpack.c.b16 %v226, %v225
  %v281 = vpack.c.b16 %v228, %v227
  %v282 = vpack.c.b16 %v230, %v229
  %v283 = vpack.c.b16 %v232, %v231
  %v284 = vpack.c.b16 %v234, %v233
  %v285 = vpack.c.b16 %v236, %v235
  %v286 = vpack.c.b16 %v238, %v237
  %v287 = vpack.c.b16 %v240, %v239
  %v288 = vpack.c.b16 %v242, %v241
  %v289 = vpack.c.b16 %v244, %v243
  %v290 = vpack.c.b16 %v246, %v245
  %v291 = vpack.c.b16 %v248, %v247
  %v292 = vpack.c.b16 %v250, %v249
  %v293 = vpack.c.b16 %v252, %v251
  %v294 = vpack.c.b16 %v254, %v253
  %v295 = vpack.c.b16 %v256, %v255
  %v296 = vpack.c.b16 %v258, %v257
  %v297 = vpack.c.b16 %v260, %v259
  %v298 = vpack.c.b16 %v262, %v261
  %v299 = vpack.c.b16 %v264, %v263
  %v300 = vpack.c.b16 %v266, %v265
  %v301 = vpack.c.b16 %v268, %v267
  %v302 = vpack.c.b16 %v270, %v269
  %335 = vmatprep.subr.bf16.mxu0 0
  %336 = vmatpush1.bf16.msra.mxu0 %v271
  %337 = vmatprep.subr.bf16.mxu0 0
  %338 = vmatpush1.bf16.msra.mxu0 %v272
  %339 = vmatprep.subr.bf16.mxu0 0
  %340 = vmatpush1.bf16.msra.mxu0 %v273
  %341 = vmatprep.subr.bf16.mxu0 0
  %342 = vmatpush1.bf16.msra.mxu0 %v274
  %343 = vmatprep.subr.bf16.mxu0 0
  %344 = vmatpush1.bf16.msra.mxu0 %v275
  %345 = vmatprep.subr.bf16.mxu0 0
  %346 = vmatpush1.bf16.msra.mxu0 %v276
  %347 = vmatprep.subr.bf16.mxu0 0
  %348 = vmatpush1.bf16.msra.mxu0 %v277
  %349 = vmatprep.subr.bf16.mxu0 0
  %350 = vmatpush1.bf16.msra.mxu0 %v278
  %351 = vmatprep.subr.bf16.mxu0 0
  %352 = vmatpush1.bf16.msra.mxu0 %v279
  %353 = vmatprep.subr.bf16.mxu0 0
  %354 = vmatpush1.bf16.msra.mxu0 %v280
  %355 = vmatprep.subr.bf16.mxu0 0
  %356 = vmatpush1.bf16.msra.mxu0 %v281
  %357 = vmatprep.subr.bf16.mxu0 0
  %358 = vmatpush1.bf16.msra.mxu0 %v282
  %359 = vmatprep.subr.bf16.mxu0 0
  %360 = vmatpush1.bf16.msra.mxu0 %v283
  %361 = vmatprep.subr.bf16.mxu0 0
  %362 = vmatpush1.bf16.msra.mxu0 %v284
  %363 = vmatprep.subr.bf16.mxu0 0
  %364 = vmatpush1.bf16.msra.mxu0 %v285
  %365 = vmatprep.subr.bf16.mxu0 0
  %366 = vmatpush1.bf16.msra.mxu0 %v286
  %367 = vmatprep.mubr.bf16.mxu0 %v128
  %368 = vmatmul.mubr.bf16.gmra.mrb[0].mxu0 %v127
  %v369 = vpop.f32.mrb[0].mxu0
  %v370 = vadd.f32 0.0, %v369
  %v371 = vpop.f32.mrb[0].mxu0
  %v372 = vpop.f32.mrb[0].mxu0
  %v373 = vadd.f32 0.0, %v372
  %v374 = vpop.f32.mrb[0].mxu0
  %375 = vmatprep.mubr.bf16.mxu0 %v132
  %376 = vmatmul.mubr.bf16.gmra.mrb[0].mxu0 %v131
  %v377 = vpop.f32.mrb[0].mxu0
  %v378 = vadd.f32 0.0, %v377
  %v379 = vpop.f32.mrb[0].mxu0
  %v380 = vpop.f32.mrb[0].mxu0
  %v381 = vadd.f32 0.0, %v380
  %v382 = vpop.f32.mrb[0].mxu0
  %383 = vdwg.mxu0
  %384 = vmatprep.subr.bf16.mxu0 0
  %385 = vmatpush1.bf16.msra.mxu0 %v287
  %386 = vmatprep.subr.bf16.mxu0 0
  %387 = vmatpush1.bf16.msra.mxu0 %v288
  %388 = vmatprep.subr.bf16.mxu0 0
  %389 = vmatpush1.bf16.msra.mxu0 %v289
  %390 = vmatprep.subr.bf16.mxu0 0
  %391 = vmatpush1.bf16.msra.mxu0 %v290
  %392 = vmatprep.subr.bf16.mxu0 0
  %393 = vmatpush1.bf16.msra.mxu0 %v291
  %394 = vmatprep.subr.bf16.mxu0 0
  %395 = vmatpush1.bf16.msra.mxu0 %v292
  %396 = vmatprep.subr.bf16.mxu0 0
  %397 = vmatpush1.bf16.msra.mxu0 %v293
  %398 = vmatprep.subr.bf16.mxu0 0
  %399 = vmatpush1.bf16.msra.mxu0 %v294
  %400 = vmatprep.subr.bf16.mxu0 0
  %401 = vmatpush1.bf16.msra.mxu0 %v295
  %402 = vmatprep.subr.bf16.mxu0 0
  %403 = vmatpush1.bf16.msra.mxu0 %v296
  %404 = vmatprep.subr.bf16.mxu0 0
  %405 = vmatpush1.bf16.msra.mxu0 %v297
  %406 = vmatprep.subr.bf16.mxu0 0
  %407 = vmatpush1.bf16.msra.mxu0 %v298
  %408 = vmatprep.subr.bf16.mxu0 0
  %409 = vmatpush1.bf16.msra.mxu0 %v299
  %410 = vmatprep.subr.bf16.mxu0 0
  %411 = vmatpush1.bf16.msra.mxu0 %v300
  %412 = vmatprep.subr.bf16.mxu0 0
  %413 = vmatpush1.bf16.msra.mxu0 %v301
  %414 = vmatprep.subr.bf16.mxu0 0
  %415 = vmatpush1.bf16.msra.mxu0 %v302
  %416 = vmatprep.mubr.bf16.mxu0 %v130
  %417 = vmatmul.mubr.bf16.gmra.mrb[0].mxu0 %v129
  %v418 = vpop.f32.mrb[0].mxu0
  %v419 = vadd.f32 %v370, %v418
  %v420 = vpop.f32.mrb[0].mxu0
  %v421 = vpop.f32.mrb[0].mxu0
  %v422 = vadd.f32 %v373, %v421
  %v423 = vpop.f32.mrb[0].mxu0
  %424 = vmatprep.mubr.bf16.mxu0 %v134
  %425 = vmatmul.mubr.bf16.gmra.mrb[0].mxu0 %v133
  %v426 = vpop.f32.mrb[0].mxu0
  %v427 = vadd.f32 %v378, %v426
  %v428 = vpop.f32.mrb[0].mxu0
  %v429 = vpop.f32.mrb[0].mxu0
  %v430 = vadd.f32 %v381, %v429
  %v431 = vpop.f32.mrb[0].mxu0
  %432 = vdwg.mxu0
  %v433 = vadd.f32 %v419, %v422
  %v434 = vadd.f32 %v433, %v427
  %v435 = vadd.f32 %v434, %v430
  %v436 = vrot.slane %v435, 4
  %v437 = vadd.f32 %v435, %v436
  %v438 = vrot.slane %v437, 2
  %v439 = vadd.f32 %v437, %v438
  %v440 = vrot.slane %v439, 1
  %v441 = vadd.f32 %v439, %v440
  %v442 = vmul.f32 %v441, 0.03125
  %v443 = vsub.f32 %v419, %v442
  %v444 = vsub.f32 %v422, %v442
  %v445 = vsub.f32 %v427, %v442
  %v446 = vsub.f32 %v430, %v442
  %v447 = vmul.f32 %v443, %v443
  %v448 = vmul.f32 %v444, %v444
  %v449 = vmul.f32 %v445, %v445
  %v450 = vmul.f32 %v446, %v446
  %v451 = vadd.f32 %v447, %v448
  %v452 = vadd.f32 %v451, %v449
  %v453 = vadd.f32 %v452, %v450
  %v454 = vrot.slane %v453, 4
  %v455 = vadd.f32 %v453, %v454
  %v456 = vrot.slane %v455, 2
  %v457 = vadd.f32 %v455, %v456
  %v458 = vrot.slane %v457, 1
  %v459 = vadd.f32 %v457, %v458
  %v460 = vmul.f32 %v459, 0.03125
  %v461 = vld [vmem:[%s2] sm:$0x1]
  %v462 = vadd.f32 %v460, 1e-05
  %v463 = vrsqrt.pop %v462
  %v464 = vmul.f32 %v461, %v463
  %v466 = vlaneseq
  %v467 = vshrl.u32 %v466, 7
  %v468 = vsub.s32 0, %v467
  %v469 = vrot.slane %v464, %v468
  %v471 = vmul.f32 %v443, %v469
  %v472 = vmul.f32 %v444, %v469
  %v473 = vmul.f32 %v445, %v469
  %v474 = vmul.f32 %v446, %v469
  %v475 = vld [vmem:[%s3] sm:$0x1]
  %v477 = vlaneseq
  %v478 = vshrl.u32 %v477, 7
  %v479 = vsub.s32 0, %v478
  %v480 = vrot.slane %v475, %v479
  %v482 = vadd.f32 %v471, %v480
  %v483 = vadd.f32 %v472, %v480
  %v484 = vadd.f32 %v473, %v480
  %v485 = vadd.f32 %v474, %v480
  %vm486 = vcmp.ge.f32.partialorder %v482, 0.0
  %vm487 = vcmp.ge.f32.partialorder %v483, 0.0
  %vm488 = vcmp.ge.f32.partialorder %v484, 0.0
  %vm489 = vcmp.ge.f32.partialorder %v485, 0.0
  %v490 = vmul.f32 %v482, 0.2
  %v491 = vmul.f32 %v483, 0.2
  %v492 = vmul.f32 %v484, 0.2
  %v493 = vmul.f32 %v485, 0.2
  %v494 = vsel %vm486, %v482, %v490
  %v495 = vsel %vm487, %v483, %v491
  %v496 = vsel %vm488, %v484, %v492
  %v497 = vsel %vm489, %v485, %v493
  %v498 = vld [vmem:[%s4] sm:$0xff]
  %v499 = vld [vmem:[%s4 + $0x8] sm:$0xff]
  %v500 = vmul.f32 %v494, %v498
  %v501 = vmul.f32 %v495, %v499
  %v502 = vmul.f32 %v496, %v498
  %v503 = vmul.f32 %v497, %v499
  %504 = vadd.xlane.f32.xlu0 %v500
  %v505 = vpop.xlane.xlu0 %504
  %506 = vadd.xlane.f32.xlu0 %v501
  %v507 = vpop.xlane.xlu0 %506
  %508 = vadd.xlane.f32.xlu0 %v502
  %v509 = vpop.xlane.xlu0 %508
  %510 = vadd.xlane.f32.xlu0 %v503
  %v511 = vpop.xlane.xlu0 %510
  %v516 = vlaneseq
  %v517 = vand.u32 %v516, 127
  %v518 = vlaneseq
  %v519 = vshrl.u32 %v518, 7
  %v520 = vsub.s32 %v517, %v519
  %v521 = vrot.slane %v505, %v520
  %v522 = vadd.s32 %v517, 4294967288
  %v523 = vlaneseq
  %v524 = vshrl.u32 %v523, 7
  %v525 = vsub.s32 %v522, %v524
  %v526 = vrot.slane %v507, %v525
  %vm527 = vcmask 130112
  %v528 = vsel %vm527, %v526, %v521
  %v529 = vlaneseq
  %v530 = vshrl.u32 %v529, 7
  %v531 = vsub.s32 %v517, %v530
  %v532 = vrot.slane %v509, %v531
  %v533 = vlaneseq
  %v534 = vshrl.u32 %v533, 7
  %v535 = vsub.s32 %v522, %v534
  %v536 = vrot.slane %v511, %v535
  %v537 = vsel %vm527, %v536, %v532
  %vm538 = vcmask 1041409
  %v539 = vsel %vm538, %v537, %v528
  %vm541 = vcmask 123904
  %v542 = vsel %vm541, %v539, 0.0
  %543 = vadd.xlane.f32.xlu0 %v542
  %v544 = vpop.xlane.xlu0 %543
  %v545 = vld [vmem:[%s5] sm:$0x3]
  %v546 = vld [vmem:[%s6] sm:$0x1]
  %v548 = vlaneseq
  %v549 = vshrl.u32 %v548, 7
  %v550 = vsub.s32 0, %v549
  %v551 = vrot.slane %v546, %v550
  %v553 = vmul.f32 %v545, %v551
  %vm554 = vcmask 254976
  %v555 = vsel %vm554, %v553, 0.0
  %556 = vadd.xlane.f32.xlu0 %v555
  %v557 = vpop.xlane.xlu0 %556
  %v558 = vadd.f32 %v544, %v557
  %s559 = sld [smem:[#allocation2]]
  %v560 = vstv %s559
  %v561 = vadd.f32 %v558, %v560
  %v562 = vxor.u32 %v561, 2147483648
  %v563 = vmul.f32 %v562, 1.442695
  %v564 = vpow.pop %v563
  %v565 = vadd.f32 %v564, 1.0
  %v566 = vrcp.pop %v565
  %v567 = vmul.f32 1.0, %v566
  %vm568 = vcmask 1024
  %569 = vst.msk [vmem:[%s8] sm:$0x3] %vm568, %v567
  // Predicated region
  $region34: #{discriminator_forward.7} parent=0 // pred_check
    _
  $region35: #{discriminator_forward.7} parent=0 // pred_check_branch
    %571 = sbr.rel (0) target = $region37
  $region36: #{discriminator_forward.7} parent=0 // pred_region
    _
  $region37: #{discriminator_forward.7} parent=0 // pred_fallthru
    _
  // Predicated region
  $region38: #{discriminator_forward.7} parent=0 // pred_check
    _
  $region39: #{discriminator_forward.7} parent=0 // pred_check_branch
    %573 = sbr.rel (0) target = $region41
  $region40: #{discriminator_forward.7} parent=0 // pred_region
    _
  $region41: #{discriminator_forward.7} parent=0 // pred_fallthru
    _

</llo_original>
